<compile_context>
chip_gen: v7x
topology: tpu7x:2x2x1
jax: 0.10.0
libtpu: 0.0.40
codegen_flags: <defaults>
</compile_context>

<pallas_src>
import functools

import jax
import jax.numpy as jnp
from jax.experimental import pallas as pl
from jax.experimental.pallas import tpu as pltpu


def _round_up(n, m):
    return (n + m - 1) // m * m


def _pad_axis(a, axis, new_size):
    pad = int(new_size) - a.shape[axis]
    if pad <= 0:
        return a
    widths = [(0, 0)] * a.ndim
    widths[axis] = (0, pad)
    return jnp.pad(a, widths)


def _vmem_tile_bytes(shape, itemsize):
    """Approximate VMEM footprint of one buffer, honoring (8,128) tiling (bf16 packs 16 sublanes)."""
    shape = tuple(shape)
    if len(shape) == 1:
        shape = (1,) + shape
    lead = 1
    for d in shape[:-2]:
        lead *= int(d)
    r, c = int(shape[-2]), int(shape[-1])
    sub = 8 * max(1, 4 // int(itemsize))
    return lead * _round_up(r, sub) * _round_up(c, 128) * int(itemsize)


def _ppo_kernel(
        # inputs
        x_ref, adj_ref, deg_ref,
        w1_ref, w2_ref, w3_ref, w4_ref,                                 # S2V layers (stacked over hop)
        a1_ref, ab1_ref, a2_ref, ab2_ref, a3_ref, ab3_ref,              # actor MLP
        c1s_ref, c1m_ref, cb1_ref, c2_ref, cb2_ref, c3_ref, cb3_ref,    # critic MLP (mean folded into sum)
        # outputs
        logits_ref, value_ref,
        # scratch
        h_scr, aggr_scr,
        *, num_hops, tk, nk):
    f32 = jnp.float32
    bf16 = jnp.bfloat16
    l = pl.program_id(0)          # aggregation step; actual hop index = l + 1
    k = pl.program_id(1)          # adjacency column chunk

    # ---- hop 0 (peeled): h == 0 entering, so A@h vanishes and the edge term is rank-1:
    #      h = relu(x @ W1_0 + deg * (relu(W4_0) @ W3_0))
    @pl.when(jnp.logical_and(l == 0, k == 0))
    def _():
        e0 = jnp.dot(jnp.maximum(w4_ref[0], 0.0), w3_ref[0], preferred_element_type=f32)   # (1,Hp)
        nf0 = jnp.dot(x_ref[...], w1_ref[0], preferred_element_type=f32)                   # (Np,Hp)
        h_scr[...] = jnp.maximum(nf0 + deg_ref[...] * e0, 0.0)
        # TODO(synk): nn.Dropout is identity in eval mode; training-mode dropout not modeled.

    if num_hops > 1:
        hop = l + 1

        @pl.when(k == 0)
        def _():
            aggr_scr[...] = jnp.zeros_like(aggr_scr)

        # Stream one adjacency column chunk; native bf16 x bf16 -> f32 MXU path, f32 accumulate.
        if nk == 1:
            h_chunk = h_scr[...]
        else:
            off = pl.multiple_of(k * tk, tk)
            h_chunk = h_scr[pl.ds(off, tk), :]
        aggr_scr[...] += jnp.dot(adj_ref[...], h_chunk.astype(bf16),
                                 preferred_element_type=f32)

        # Finalize this hop once the last chunk has been accumulated.
        @pl.when(k == pl.num_programs(1) - 1)
        def _():
            e = jnp.dot(jnp.maximum(w4_ref[hop], 0.0), w3_ref[hop], preferred_element_type=f32)  # (1,Hp)
            nf = jnp.dot(x_ref[...], w1_ref[hop], preferred_element_type=f32)                    # (Np,Hp)
            h_scr[...] = jnp.maximum(
                nf
                + jnp.dot(aggr_scr[...], w2_ref[hop], preferred_element_type=f32)
                + deg_ref[...] * e,
                0.0)

    # ---- final grid step: actor + critic heads ----
    @pl.when(jnp.logical_and(l == pl.num_programs(0) - 1, k == pl.num_programs(1) - 1))
    def _():
        h = h_scr[...]

        # Actor MLP: Hp -> 64 -> ReLU -> 32 -> ReLU -> 1
        a = jnp.maximum(jnp.dot(h, a1_ref[...], preferred_element_type=f32) + ab1_ref[...], 0.0)
        a = jnp.maximum(jnp.dot(a, a2_ref[...], preferred_element_type=f32) + ab2_ref[...], 0.0)
        logits_ref[...] = jnp.dot(a, a3_ref[...], preferred_element_type=f32) + ab3_ref[...]

        # Critic: mean-pool folded into sum-pool (mean = sum / N_real, pre-combined in wrapper).
        # Padded rows are zero and h >= 0, so sum/max pooling are unaffected by node padding.
        sum_h = jnp.sum(h, axis=0, keepdims=True)     # (1, Hp)
        max_h = jnp.max(h, axis=0, keepdims=True)     # (1, Hp)
        c = (jnp.dot(sum_h, c1s_ref[...], preferred_element_type=f32)
             + jnp.dot(max_h, c1m_ref[...], preferred_element_type=f32)
             + cb1_ref[...])
        c = jnp.maximum(c, 0.0)
        c = jnp.maximum(jnp.dot(c, c2_ref[...], preferred_element_type=f32) + cb2_ref[...], 0.0)
        value_ref[...] = jnp.dot(c, c3_ref[...], preferred_element_type=f32) + cb3_ref[...]


def build_dense_graph(edge_index, num_nodes):
    """Dense adjacency (edge multiplicities, zero-padded to a multiple of 128) + out-degree.

    Returns (adj_bf16 (Np,Np), deg_f32 (Np,1)); bf16 is exact for multiplicities <= 256.
    Callers with a graph that is static across rollout steps should cache the result.
    """
    np_ = _round_up(max(int(num_nodes), 128), 128)
    row, col = edge_index[0], edge_index[1]
    adj = jnp.zeros((np_, np_), jnp.float32).at[row, col].add(1.0)
    deg = jnp.sum(adj, axis=1, keepdims=True)
    return adj.astype(jnp.bfloat16), deg


def _vmem_limit_bytes():
    """85% of physical per-core VMEM (v5e/v6e ~109 MiB, v7x ~54 MiB); safe fallback otherwise."""
    try:
        cap = int(getattr(pltpu.get_tpu_info(), "vmem_capacity_bytes", 0))
    except Exception:
        cap = 0
    if cap <= 0:
        cap = 64 * 1024 * 1024
    return max(int(cap * 0.85), 48 * 1024 * 1024)


@functools.partial(jax.jit, static_argnames=("n_real",))
def _ppo_forward(params, x, adj, deg, *, n_real):
    Np, F = x.shape                                     # node-padded (multiple of 128)
    HOP, _, H = params["w1"].shape
    Hp = _round_up(H, 128)

    # ---- pad hidden dim to a full 128-lane width (lane-dense stores / full MXU lanes).
    # ReLU(0 + 0) = 0 keeps padded lanes zero through every hop, so no slicing is needed.
    w1 = _pad_axis(params["w1"], 2, Hp)
    w2 = _pad_axis(_pad_axis(params["w2"], 1, Hp), 2, Hp)
    w3 = _pad_axis(_pad_axis(params["w3"], 1, Hp), 2, Hp)
    w4 = _pad_axis(params["w4"], 2, Hp)
    a1 = _pad_axis(params["a1"], 0, Hp)

    # Fold mean pooling into sum pooling (mean = sum / n_real; n_real is static per shape).
    c1 = params["c1"]
    c1_sum = _pad_axis(c1[:H] / float(n_real) + c1[2 * H:3 * H], 0, Hp)
    c1_max = _pad_axis(c1[H:2 * H], 0, Hp)

    non_adj_inputs = (x, deg, w1, w2, w3, w4,
                      a1, params["ab1"], params["a2"], params["ab2"], params["a3"], params["ab3"],
                      c1_sum, c1_max, params["cb1"], params["c2"], params["cb2"],
                      params["c3"], params["cb3"])

    # ---- generation-aware VMEM budget -> adjacency chunk width TK ----
    vmem_limit = _vmem_limit_bytes()
    other_in_bytes = 2 * sum(_vmem_tile_bytes(a.shape, a.dtype.itemsize) for a in non_adj_inputs)
    scratch_bytes = 2 * _vmem_tile_bytes((Np, Hp), 4)
    out_bytes = 2 * (_vmem_tile_bytes((Np, 1), 4) + _vmem_tile_bytes((1, 1), 4))
    slack = 2 * 1024 * 1024
    adj_budget = vmem_limit - other_in_bytes - scratch_bytes - out_bytes - slack

    if HOP > 1:
        TK = 128
        for cand in range(Np, 127, -128):               # largest 128-multiple divisor of Np that fits
            if Np % cand == 0 and 2 * _vmem_tile_bytes((Np, cand), 2) <= adj_budget:
                TK = cand
                break
        NK = Np // TK
        adj_in = adj
        adj_spec = pl.BlockSpec((Np, TK), lambda l, k: (0, k))
    else:
        # Adjacency is never read with a single hop; don't DMA it at all.
        TK, NK = 128, 1
        adj_in = jnp.zeros((8, 128), jnp.bfloat16)
        adj_spec = pl.BlockSpec((8, 128), lambda l, k: (0, 0))
    NL = max(HOP - 1, 1)

    inputs = (x, adj_in, deg,
              w1, w2, w3, w4,
              a1, params["ab1"], params["a2"], params["ab2"], params["a3"], params["ab3"],
              c1_sum, c1_max, params["cb1"], params["c2"], params["cb2"],
              params["c3"], params["cb3"])

    def full(shape):
        n = len(shape)
        return pl.BlockSpec(shape, lambda l, k, n=n: (0,) * n)

    in_specs = [
        full((Np, F)),                                   # x
        adj_spec,                                        # adj (bf16, column-chunked or dummy)
        full((Np, 1)),                                   # deg
        full(w1.shape), full(w2.shape), full(w3.shape), full(w4.shape),
        full(a1.shape), full(params["ab1"].shape),
        full(params["a2"].shape), full(params["ab2"].shape),
        full(params["a3"].shape), full(params["ab3"].shape),
        full(c1_sum.shape), full(c1_max.shape), full(params["cb1"].shape),
        full(params["c2"].shape), full(params["cb2"].shape),
        full(params["c3"].shape), full(params["cb3"].shape),
    ]
    out_specs = [pl.BlockSpec((Np, 1), lambda l, k: (0, 0)),
                 pl.BlockSpec((1, 1), lambda l, k: (0, 0))]

    adj_reads = 1 if NK == 1 else NL
    flops = int(2 * max(HOP - 1, 0) * Np * Np * Hp               # A @ h
                + 2 * HOP * (Np * F * Hp + Np * Hp * Hp + Hp * Hp)
                + 2 * Np * (Hp * 64 + 64 * 32 + 32)              # actor
                + 2 * (2 * Hp * 256 + 256 * 128 + 128))          # critic
    bytes_accessed = int(adj_in.size * 2 * adj_reads + x.size * 4 + deg.size * 4
                         + sum(int(a.size) * a.dtype.itemsize for a in inputs[3:])
                         + Np * 4 + 4)

    kernel = functools.partial(_ppo_kernel, num_hops=HOP, tk=TK, nk=NK)

    logits2d, value2d = pl.pallas_call(
        kernel,
        out_shape=(jax.ShapeDtypeStruct((Np, 1), jnp.float32),
                   jax.ShapeDtypeStruct((1, 1), jnp.float32)),
        grid_spec=pltpu.PrefetchScalarGridSpec(
            num_scalar_prefetch=0,
            grid=(NL, NK),
            in_specs=in_specs,
            out_specs=out_specs,
            scratch_shapes=[pltpu.VMEM((Np, Hp), jnp.float32),    # h (carried across hops)
                            pltpu.VMEM((Np, Hp), jnp.float32)]),  # A @ h accumulator
        compiler_params=pltpu.CompilerParams(
            dimension_semantics=("arbitrary", "arbitrary"),
            vmem_limit_bytes=vmem_limit),
        cost_estimate=pl.CostEstimate(flops=flops, transcendentals=0,
                                      bytes_accessed=bytes_accessed),
    )(*inputs)

    return logits2d[:, 0], value2d[:, 0]


def ppo_linear_model(params, x, edge_index, valid_actions_mask=None, graph=None):
    """Wrapper: builds (or reuses) the padded dense adjacency and runs the fused Pallas kernel."""
    n = x.shape[0]
    if graph is None:
        # TODO(synk): cache build_dense_graph() across rollout steps when the graph is static.
        graph = build_dense_graph(edge_index, n)
    adj, deg = graph
    np_ = adj.shape[0]
    x_p = _pad_axis(x.astype(jnp.float32), 0, np_)
    logits_full, value = _ppo_forward(params, x_p, adj, deg, n_real=n)
    logits = logits_full[:n]
    if valid_actions_mask is not None:
        logits = jnp.where(valid_actions_mask, logits, -jnp.inf)
    return logits, value


def init_params(key, node_feature_dim, hidden_dim, hop=3):
    F, H = node_feature_dim, hidden_dim
    ks = iter(jax.random.split(key, 32))

    def lin_w(k, i, o):
        s = float(i) ** -0.5
        return jax.random.uniform(k, (i, o), jnp.float32, -s, s)

    def lin_b(k, i, o):
        s = float(i) ** -0.5
        return jax.random.uniform(k, (1, o), jnp.float32, -s, s)

    p = {}
    p["w1"] = jnp.stack([lin_w(next(ks), F, H) for _ in range(hop)])   # theta_1
    p["w2"] = jnp.stack([lin_w(next(ks), H, H) for _ in range(hop)])   # theta_2
    p["w3"] = jnp.stack([lin_w(next(ks), H, H) for _ in range(hop)])   # theta_3
    p["w4"] = jnp.stack([lin_w(next(ks), 1, H) for _ in range(hop)])   # theta_4
    # Actor: H -> 64 -> 32 -> 1
    p["a1"], p["ab1"] = lin_w(next(ks), H, 64), lin_b(next(ks), H, 64)
    p["a2"], p["ab2"] = lin_w(next(ks), 64, 32), lin_b(next(ks), 64, 32)
    p["a3"], p["ab3"] = lin_w(next(ks), 32, 1), lin_b(next(ks), 32, 1)
    # Critic: 3H -> 256 -> 128 -> 1
    p["c1"], p["cb1"] = lin_w(next(ks), 3 * H, 256), lin_b(next(ks), 3 * H, 256)
    p["c2"], p["cb2"] = lin_w(next(ks), 256, 128), lin_b(next(ks), 256, 128)
    p["c3"], p["cb3"] = lin_w(next(ks), 128, 1), lin_b(next(ks), 128, 1)
    return p


def reference_forward(params, x, edge_index, valid_actions_mask=None):
    """Pure-JAX reference mirroring the PyTorch (scatter-add) semantics."""
    N = x.shape[0]
    H = params["w2"].shape[2]
    row, col = edge_index[0], edge_index[1]
    edge_attr = jnp.ones((edge_index.shape[1], 1), jnp.float32)
    h = jnp.zeros((N, H), jnp.float32)
    for l in range(params["w1"].shape[0]):
        nfe = x @ params["w1"][l]
        h_aggr = jnp.zeros((N, H), jnp.float32).at[row].add(h[col])
        efe = jnp.maximum(edge_attr @ params["w4"][l], 0.0)
        e_aggr = jnp.zeros((N, H), jnp.float32).at[row].add(efe)
        h = jnp.maximum(nfe + h_aggr @ params["w2"][l] + e_aggr @ params["w3"][l], 0.0)
    a = jnp.maximum(h @ params["a1"] + params["ab1"], 0.0)
    a = jnp.maximum(a @ params["a2"] + params["ab2"], 0.0)
    logits = (a @ params["a3"] + params["ab3"])[:, 0]
    if valid_actions_mask is not None:
        logits = jnp.where(valid_actions_mask, logits, -jnp.inf)
    g = jnp.concatenate([h.mean(0, keepdims=True), h.max(0, keepdims=True),
                         h.sum(0, keepdims=True)], axis=-1)
    c = jnp.maximum(g @ params["c1"] + params["cb1"], 0.0)
    c = jnp.maximum(c @ params["c2"] + params["cb2"], 0.0)
    value = (c @ params["c3"] + params["cb3"])[:, 0]
    return logits, value


if __name__ == "__main__":
    key = jax.random.PRNGKey(0)
    k_x, k_p = jax.random.split(key)

    N, F, H, HOP = 16, 4, 32, 3                      # small shapes for the demo
    x = jax.random.normal(k_x, (N, F), jnp.float32)

    # Bidirectional ring graph: 2N directed edges.
    src = jnp.arange(N, dtype=jnp.int32)
    edge_index = jnp.stack([
        jnp.concatenate([src, src]),
        jnp.concatenate([(src + 1) % N, (src - 1) % N]),
    ])                                               # (2, 2N)

    valid_actions_mask = jnp.ones((N,), dtype=bool).at[3].set(False).at[7].set(False)

    params = init_params(k_p, F, H, hop=HOP)

    logits, value = ppo_linear_model(params, x, edge_index, valid_actions_mask)
    jax.block_until_ready((logits, value))

    ref_logits, ref_value = reference_forward(params, x, edge_index, valid_actions_mask)

    assert logits.shape == (N,) and value.shape == (1,)
    finite = jnp.isfinite(ref_logits)
    assert bool(jnp.all(jnp.isfinite(logits) == finite))
    # Tolerance reflects the native-bf16 MXU path on the A @ h aggregation (adjacency exact in bf16).
    assert bool(jnp.allclose(jnp.where(finite, logits, 0.0),
                             jnp.where(finite, ref_logits, 0.0), rtol=2e-2, atol=5e-2))
    assert bool(jnp.allclose(value, ref_value, rtol=2e-2, atol=5e-2))

    print("KERNEL_OK")
</pallas_src>

<mosaic_0001>
module attributes {stable_mosaic.version = 11 : i64} {
  func.func @_ppo_kernel(%arg0: i32, %arg1: i32, %arg2: memref<128x4xf32, #tpu.memory_space<vmem>>, %arg3: memref<128x128xbf16, #tpu.memory_space<vmem>>, %arg4: memref<128x1xf32, #tpu.memory_space<vmem>>, %arg5: memref<3x4x128xf32, #tpu.memory_space<vmem>>, %arg6: memref<3x128x128xf32, #tpu.memory_space<vmem>>, %arg7: memref<3x128x128xf32, #tpu.memory_space<vmem>>, %arg8: memref<3x1x128xf32, #tpu.memory_space<vmem>>, %arg9: memref<128x64xf32, #tpu.memory_space<vmem>>, %arg10: memref<1x64xf32, #tpu.memory_space<vmem>>, %arg11: memref<64x32xf32, #tpu.memory_space<vmem>>, %arg12: memref<1x32xf32, #tpu.memory_space<vmem>>, %arg13: memref<32x1xf32, #tpu.memory_space<vmem>>, %arg14: memref<1x1xf32, #tpu.memory_space<vmem>>, %arg15: memref<128x256xf32, #tpu.memory_space<vmem>>, %arg16: memref<128x256xf32, #tpu.memory_space<vmem>>, %arg17: memref<1x256xf32, #tpu.memory_space<vmem>>, %arg18: memref<256x128xf32, #tpu.memory_space<vmem>>, %arg19: memref<1x128xf32, #tpu.memory_space<vmem>>, %arg20: memref<128x1xf32, #tpu.memory_space<vmem>>, %arg21: memref<1x1xf32, #tpu.memory_space<vmem>>, %arg22: memref<128x1xf32, #tpu.memory_space<vmem>>, %arg23: memref<1x1xf32, #tpu.memory_space<vmem>>, %arg24: memref<128x128xf32, #tpu.memory_space<vmem>>, %arg25: memref<128x128xf32, #tpu.memory_space<vmem>>) attributes {dimension_semantics = [#tpu.dimension_semantics<arbitrary>, #tpu.dimension_semantics<arbitrary>], iteration_bounds = array<i64: 2, 1>, scalar_prefetch = 0 : i64, scratch_operands = 2 : i64, tpu.core_type = #tpu.core_type<tc>, window_params = [{pipeline_mode = #tpu.pipeline_mode<synchronous>, transform_indices = @transform_0, window_bounds = array<i64: 128, 4>}, {transform_indices = @transform_1, window_bounds = array<i64: 128, 128>}, {pipeline_mode = #tpu.pipeline_mode<synchronous>, transform_indices = @transform_2, window_bounds = array<i64: 128, 1>}, {pipeline_mode = #tpu.pipeline_mode<synchronous>, transform_indices = @transform_3, window_bounds = array<i64: 3, 4, 128>}, {pipeline_mode = #tpu.pipeline_mode<synchronous>, transform_indices = @transform_4, window_bounds = array<i64: 3, 128, 128>}, {pipeline_mode = #tpu.pipeline_mode<synchronous>, transform_indices = @transform_5, window_bounds = array<i64: 3, 128, 128>}, {pipeline_mode = #tpu.pipeline_mode<synchronous>, transform_indices = @transform_6, window_bounds = array<i64: 3, 1, 128>}, {pipeline_mode = #tpu.pipeline_mode<synchronous>, transform_indices = @transform_7, window_bounds = array<i64: 128, 64>}, {pipeline_mode = #tpu.pipeline_mode<synchronous>, transform_indices = @transform_8, window_bounds = array<i64: 1, 64>}, {pipeline_mode = #tpu.pipeline_mode<synchronous>, transform_indices = @transform_9, window_bounds = array<i64: 64, 32>}, {pipeline_mode = #tpu.pipeline_mode<synchronous>, transform_indices = @transform_10, window_bounds = array<i64: 1, 32>}, {pipeline_mode = #tpu.pipeline_mode<synchronous>, transform_indices = @transform_11, window_bounds = array<i64: 32, 1>}, {pipeline_mode = #tpu.pipeline_mode<synchronous>, transform_indices = @transform_12, window_bounds = array<i64: 1, 1>}, {pipeline_mode = #tpu.pipeline_mode<synchronous>, transform_indices = @transform_13, window_bounds = array<i64: 128, 256>}, {pipeline_mode = #tpu.pipeline_mode<synchronous>, transform_indices = @transform_14, window_bounds = array<i64: 128, 256>}, {pipeline_mode = #tpu.pipeline_mode<synchronous>, transform_indices = @transform_15, window_bounds = array<i64: 1, 256>}, {pipeline_mode = #tpu.pipeline_mode<synchronous>, transform_indices = @transform_16, window_bounds = array<i64: 256, 128>}, {pipeline_mode = #tpu.pipeline_mode<synchronous>, transform_indices = @transform_17, window_bounds = array<i64: 1, 128>}, {pipeline_mode = #tpu.pipeline_mode<synchronous>, transform_indices = @transform_18, window_bounds = array<i64: 128, 1>}, {pipeline_mode = #tpu.pipeline_mode<synchronous>, transform_indices = @transform_19, window_bounds = array<i64: 1, 1>}, {pipeline_mode = #tpu.pipeline_mode<synchronous>, transform_indices = @transform_20, window_bounds = array<i64: 128, 1>}, {pipeline_mode = #tpu.pipeline_mode<synchronous>, transform_indices = @transform_21, window_bounds = array<i64: 1, 1>}]} {
    %c0_i32 = arith.constant 0 : i32
    %0 = arith.cmpi eq, %arg0, %c0_i32 : i32
    %c0_i32_0 = arith.constant 0 : i32
    %1 = arith.cmpi eq, %arg1, %c0_i32_0 : i32
    %2 = arith.andi %0, %1 : i1
    %3 = arith.extui %2 : i1 to i32
    %c0_i32_1 = arith.constant 0 : i32
    %4 = arith.cmpi ne, %3, %c0_i32_1 : i32
    scf.if %4 {
      %c0_16 = arith.constant 0 : index
      %c0_17 = arith.constant 0 : index
      %c0_18 = arith.constant 0 : index
      %24 = vector.load %arg8[%c0_16, %c0_17, %c0_18] : memref<3x1x128xf32, #tpu.memory_space<vmem>>, vector<1x1x128xf32>
      %25 = vector.shape_cast %24 : vector<1x1x128xf32> to vector<1x128xf32>
      %cst_19 = arith.constant 0.000000e+00 : f32
      %26 = vector.broadcast %cst_19 : f32 to vector<1x128xf32>
      %27 = arith.maximumf %25, %26 : vector<1x128xf32>
      %c0_20 = arith.constant 0 : index
      %c0_21 = arith.constant 0 : index
      %c0_22 = arith.constant 0 : index
      %28 = vector.load %arg7[%c0_20, %c0_21, %c0_22] : memref<3x128x128xf32, #tpu.memory_space<vmem>>, vector<1x128x128xf32>
      %29 = vector.shape_cast %28 : vector<1x128x128xf32> to vector<128x128xf32>
      %cst_23 = arith.constant dense<0.000000e+00> : vector<1x128xf32>
      %30 = tpu.matmul %27, %29, %cst_23 {dimension_numbers = #tpu.dot_dimension_numbers<[1], [0], [0], [1], [0, 0, 1, 1], [], []>} : vector<1x128xf32>, vector<128x128xf32>, vector<1x128xf32> -> vector<1x128xf32>
      %c0_24 = arith.constant 0 : index
      %c0_25 = arith.constant 0 : index
      %31 = vector.load %arg2[%c0_24, %c0_25] : memref<128x4xf32, #tpu.memory_space<vmem>>, vector<128x4xf32>
      %c0_26 = arith.constant 0 : index
      %c0_27 = arith.constant 0 : index
      %c0_28 = arith.constant 0 : index
      %32 = vector.load %arg5[%c0_26, %c0_27, %c0_28] : memref<3x4x128xf32, #tpu.memory_space<vmem>>, vector<1x4x128xf32>
      %33 = vector.shape_cast %32 : vector<1x4x128xf32> to vector<4x128xf32>
      %cst_29 = arith.constant dense<0.000000e+00> : vector<128x128xf32>
      %34 = tpu.matmul %31, %33, %cst_29 {dimension_numbers = #tpu.dot_dimension_numbers<[1], [0], [0], [1], [0, 0, 1, 1], [], []>} : vector<128x4xf32>, vector<4x128xf32>, vector<128x128xf32> -> vector<128x128xf32>
      %c0_30 = arith.constant 0 : index
      %c0_31 = arith.constant 0 : index
      %35 = vector.load %arg4[%c0_30, %c0_31] : memref<128x1xf32, #tpu.memory_space<vmem>>, vector<128x1xf32>
      %36 = vector.broadcast %35 : vector<128x1xf32> to vector<128x128xf32>
      %37 = vector.broadcast %30 : vector<1x128xf32> to vector<128x128xf32>
      %38 = arith.mulf %36, %37 : vector<128x128xf32>
      %39 = arith.addf %34, %38 : vector<128x128xf32>
      %cst_32 = arith.constant 0.000000e+00 : f32
      %40 = vector.broadcast %cst_32 : f32 to vector<128x128xf32>
      %41 = arith.maximumf %39, %40 : vector<128x128xf32>
      %c0_33 = arith.constant 0 : index
      %c0_34 = arith.constant 0 : index
      %42 = vector.load %arg24[%c0_33, %c0_34] : memref<128x128xf32, #tpu.memory_space<vmem>>, vector<128x128xf32>
      tpu.vector_store %arg24[%c0_33, %c0_34], %41 {strides = array<i32>} : memref<128x128xf32, #tpu.memory_space<vmem>>, vector<128x128xf32>,
    } else {
    }
    %c1_i32 = arith.constant 1 : i32
    %5 = arith.addi %arg0, %c1_i32 : i32
    %c0_i32_2 = arith.constant 0 : i32
    %6 = arith.cmpi eq, %arg1, %c0_i32_2 : i32
    %7 = arith.extui %6 : i1 to i32
    %c0_i32_3 = arith.constant 0 : i32
    %8 = arith.cmpi ne, %7, %c0_i32_3 : i32
    scf.if %8 {
      %cst_16 = arith.constant 0.000000e+00 : f32
      %24 = vector.broadcast %cst_16 : f32 to vector<128x128xf32>
      %c0_17 = arith.constant 0 : index
      %c0_18 = arith.constant 0 : index
      %25 = vector.load %arg25[%c0_17, %c0_18] : memref<128x128xf32, #tpu.memory_space<vmem>>, vector<128x128xf32>
      tpu.vector_store %arg25[%c0_17, %c0_18], %24 {strides = array<i32>} : memref<128x128xf32, #tpu.memory_space<vmem>>, vector<128x128xf32>,
    } else {
    }
    %c0 = arith.constant 0 : index
    %c0_4 = arith.constant 0 : index
    %9 = vector.load %arg24[%c0, %c0_4] : memref<128x128xf32, #tpu.memory_space<vmem>>, vector<128x128xf32>
    %c0_5 = arith.constant 0 : index
    %c0_6 = arith.constant 0 : index
    %10 = vector.load %arg25[%c0_5, %c0_6] : memref<128x128xf32, #tpu.memory_space<vmem>>, vector<128x128xf32>
    %c0_7 = arith.constant 0 : index
    %c0_8 = arith.constant 0 : index
    %11 = vector.load %arg3[%c0_7, %c0_8] : memref<128x128xbf16, #tpu.memory_space<vmem>>, vector<128x128xbf16>
    %12 = arith.truncf %9 : vector<128x128xf32> to vector<128x128xbf16>
    %cst = arith.constant dense<0.000000e+00> : vector<128x128xf32>
    %13 = tpu.matmul %11, %12, %cst {dimension_numbers = #tpu.dot_dimension_numbers<[1], [0], [0], [1], [0, 0, 1, 1], [], []>} : vector<128x128xbf16>, vector<128x128xbf16>, vector<128x128xf32> -> vector<128x128xf32>
    %14 = arith.addf %10, %13 : vector<128x128xf32>
    %c0_9 = arith.constant 0 : index
    %c0_10 = arith.constant 0 : index
    %15 = vector.load %arg25[%c0_9, %c0_10] : memref<128x128xf32, #tpu.memory_space<vmem>>, vector<128x128xf32>
    tpu.vector_store %arg25[%c0_9, %c0_10], %14 {strides = array<i32>} : memref<128x128xf32, #tpu.memory_space<vmem>>, vector<128x128xf32>,
    %c0_i32_11 = arith.constant 0 : i32
    %16 = arith.cmpi eq, %arg1, %c0_i32_11 : i32
    %17 = arith.extui %16 : i1 to i32
    %c0_i32_12 = arith.constant 0 : i32
    %18 = arith.cmpi ne, %17, %c0_i32_12 : i32
    scf.if %18 {
      %24 = arith.index_cast %5 : i32 to index
      %c0_16 = arith.constant 0 : index
      %c0_17 = arith.constant 0 : index
      %25 = vector.load %arg8[%24, %c0_16, %c0_17] : memref<3x1x128xf32, #tpu.memory_space<vmem>>, vector<1x1x128xf32>
      %26 = vector.shape_cast %25 : vector<1x1x128xf32> to vector<1x128xf32>
      %cst_18 = arith.constant 0.000000e+00 : f32
      %27 = vector.broadcast %cst_18 : f32 to vector<1x128xf32>
      %28 = arith.maximumf %26, %27 : vector<1x128xf32>
      %29 = arith.index_cast %5 : i32 to index
      %c0_19 = arith.constant 0 : index
      %c0_20 = arith.constant 0 : index
      %30 = vector.load %arg7[%29, %c0_19, %c0_20] : memref<3x128x128xf32, #tpu.memory_space<vmem>>, vector<1x128x128xf32>
      %31 = vector.shape_cast %30 : vector<1x128x128xf32> to vector<128x128xf32>
      %cst_21 = arith.constant dense<0.000000e+00> : vector<1x128xf32>
      %32 = tpu.matmul %28, %31, %cst_21 {dimension_numbers = #tpu.dot_dimension_numbers<[1], [0], [0], [1], [0, 0, 1, 1], [], []>} : vector<1x128xf32>, vector<128x128xf32>, vector<1x128xf32> -> vector<1x128xf32>
      %c0_22 = arith.constant 0 : index
      %c0_23 = arith.constant 0 : index
      %33 = vector.load %arg2[%c0_22, %c0_23] : memref<128x4xf32, #tpu.memory_space<vmem>>, vector<128x4xf32>
      %34 = arith.index_cast %5 : i32 to index
      %c0_24 = arith.constant 0 : index
      %c0_25 = arith.constant 0 : index
      %35 = vector.load %arg5[%34, %c0_24, %c0_25] : memref<3x4x128xf32, #tpu.memory_space<vmem>>, vector<1x4x128xf32>
      %36 = vector.shape_cast %35 : vector<1x4x128xf32> to vector<4x128xf32>
      %cst_26 = arith.constant dense<0.000000e+00> : vector<128x128xf32>
      %37 = tpu.matmul %33, %36, %cst_26 {dimension_numbers = #tpu.dot_dimension_numbers<[1], [0], [0], [1], [0, 0, 1, 1], [], []>} : vector<128x4xf32>, vector<4x128xf32>, vector<128x128xf32> -> vector<128x128xf32>
      %c0_27 = arith.constant 0 : index
      %c0_28 = arith.constant 0 : index
      %38 = vector.load %arg25[%c0_27, %c0_28] : memref<128x128xf32, #tpu.memory_space<vmem>>, vector<128x128xf32>
      %39 = arith.index_cast %5 : i32 to index
      %c0_29 = arith.constant 0 : index
      %c0_30 = arith.constant 0 : index
      %40 = vector.load %arg6[%39, %c0_29, %c0_30] : memref<3x128x128xf32, #tpu.memory_space<vmem>>, vector<1x128x128xf32>
      %41 = vector.shape_cast %40 : vector<1x128x128xf32> to vector<128x128xf32>
      %cst_31 = arith.constant dense<0.000000e+00> : vector<128x128xf32>
      %42 = tpu.matmul %38, %41, %cst_31 {dimension_numbers = #tpu.dot_dimension_numbers<[1], [0], [0], [1], [0, 0, 1, 1], [], []>} : vector<128x128xf32>, vector<128x128xf32>, vector<128x128xf32> -> vector<128x128xf32>
      %43 = arith.addf %37, %42 : vector<128x128xf32>
      %c0_32 = arith.constant 0 : index
      %c0_33 = arith.constant 0 : index
      %44 = vector.load %arg4[%c0_32, %c0_33] : memref<128x1xf32, #tpu.memory_space<vmem>>, vector<128x1xf32>
      %45 = vector.broadcast %44 : vector<128x1xf32> to vector<128x128xf32>
      %46 = vector.broadcast %32 : vector<1x128xf32> to vector<128x128xf32>
      %47 = arith.mulf %45, %46 : vector<128x128xf32>
      %48 = arith.addf %43, %47 : vector<128x128xf32>
      %cst_34 = arith.constant 0.000000e+00 : f32
      %49 = vector.broadcast %cst_34 : f32 to vector<128x128xf32>
      %50 = arith.maximumf %48, %49 : vector<128x128xf32>
      %c0_35 = arith.constant 0 : index
      %c0_36 = arith.constant 0 : index
      %51 = vector.load %arg24[%c0_35, %c0_36] : memref<128x128xf32, #tpu.memory_space<vmem>>, vector<128x128xf32>
      tpu.vector_store %arg24[%c0_35, %c0_36], %50 {strides = array<i32>} : memref<128x128xf32, #tpu.memory_space<vmem>>, vector<128x128xf32>,
    } else {
    }
    %c1_i32_13 = arith.constant 1 : i32
    %19 = arith.cmpi eq, %arg0, %c1_i32_13 : i32
    %c0_i32_14 = arith.constant 0 : i32
    %20 = arith.cmpi eq, %arg1, %c0_i32_14 : i32
    %21 = arith.andi %19, %20 : i1
    %22 = arith.extui %21 : i1 to i32
    %c0_i32_15 = arith.constant 0 : i32
    %23 = arith.cmpi ne, %22, %c0_i32_15 : i32
    scf.if %23 {
      %c0_16 = arith.constant 0 : index
      %c0_17 = arith.constant 0 : index
      %24 = vector.load %arg24[%c0_16, %c0_17] : memref<128x128xf32, #tpu.memory_space<vmem>>, vector<128x128xf32>
      %c0_18 = arith.constant 0 : index
      %c0_19 = arith.constant 0 : index
      %25 = vector.load %arg9[%c0_18, %c0_19] : memref<128x64xf32, #tpu.memory_space<vmem>>, vector<128x64xf32>
      %cst_20 = arith.constant dense<0.000000e+00> : vector<128x64xf32>
      %26 = tpu.matmul %24, %25, %cst_20 {dimension_numbers = #tpu.dot_dimension_numbers<[1], [0], [0], [1], [0, 0, 1, 1], [], []>} : vector<128x128xf32>, vector<128x64xf32>, vector<128x64xf32> -> vector<128x64xf32>
      %c0_21 = arith.constant 0 : index
      %c0_22 = arith.constant 0 : index
      %27 = vector.load %arg10[%c0_21, %c0_22] : memref<1x64xf32, #tpu.memory_space<vmem>>, vector<1x64xf32>
      %28 = vector.broadcast %27 : vector<1x64xf32> to vector<128x64xf32>
      %29 = arith.addf %26, %28 : vector<128x64xf32>
      %cst_23 = arith.constant 0.000000e+00 : f32
      %30 = vector.broadcast %cst_23 : f32 to vector<128x64xf32>
      %31 = arith.maximumf %29, %30 : vector<128x64xf32>
      %c0_24 = arith.constant 0 : index
      %c0_25 = arith.constant 0 : index
      %32 = vector.load %arg11[%c0_24, %c0_25] : memref<64x32xf32, #tpu.memory_space<vmem>>, vector<64x32xf32>
      %cst_26 = arith.constant dense<0.000000e+00> : vector<128x32xf32>
      %33 = tpu.matmul %31, %32, %cst_26 {dimension_numbers = #tpu.dot_dimension_numbers<[1], [0], [0], [1], [0, 0, 1, 1], [], []>} : vector<128x64xf32>, vector<64x32xf32>, vector<128x32xf32> -> vector<128x32xf32>
      %c0_27 = arith.constant 0 : index
      %c0_28 = arith.constant 0 : index
      %34 = vector.load %arg12[%c0_27, %c0_28] : memref<1x32xf32, #tpu.memory_space<vmem>>, vector<1x32xf32>
      %35 = vector.broadcast %34 : vector<1x32xf32> to vector<128x32xf32>
      %36 = arith.addf %33, %35 : vector<128x32xf32>
      %cst_29 = arith.constant 0.000000e+00 : f32
      %37 = vector.broadcast %cst_29 : f32 to vector<128x32xf32>
      %38 = arith.maximumf %36, %37 : vector<128x32xf32>
      %c0_30 = arith.constant 0 : index
      %c0_31 = arith.constant 0 : index
      %39 = vector.load %arg13[%c0_30, %c0_31] : memref<32x1xf32, #tpu.memory_space<vmem>>, vector<32x1xf32>
      %cst_32 = arith.constant dense<0.000000e+00> : vector<128x1xf32>
      %40 = tpu.matmul %38, %39, %cst_32 {dimension_numbers = #tpu.dot_dimension_numbers<[1], [0], [0], [1], [0, 0, 1, 1], [], []>} : vector<128x32xf32>, vector<32x1xf32>, vector<128x1xf32> -> vector<128x1xf32>
      %c0_33 = arith.constant 0 : index
      %c0_34 = arith.constant 0 : index
      %41 = vector.load %arg14[%c0_33, %c0_34] : memref<1x1xf32, #tpu.memory_space<vmem>>, vector<1x1xf32>
      %42 = vector.broadcast %41 : vector<1x1xf32> to vector<128x1xf32>
      %43 = arith.addf %40, %42 : vector<128x1xf32>
      %c0_35 = arith.constant 0 : index
      %c0_36 = arith.constant 0 : index
      %44 = vector.load %arg22[%c0_35, %c0_36] : memref<128x1xf32, #tpu.memory_space<vmem>>, vector<128x1xf32>
      tpu.vector_store %arg22[%c0_35, %c0_36], %43 {strides = array<i32>} : memref<128x1xf32, #tpu.memory_space<vmem>>, vector<128x1xf32>,
      %cst_37 = arith.constant dense<0.000000e+00> : vector<128xf32>
      %45 = vector.multi_reduction <add>, %24, %cst_37 [0] : vector<128x128xf32> to vector<128xf32>
      %46 = vector.shape_cast %45 : vector<128xf32> to vector<1x128xf32>
      %cst_38 = arith.constant dense<0xFF800000> : vector<128xf32>
      %47 = vector.multi_reduction <maximumf>, %24, %cst_38 [0] : vector<128x128xf32> to vector<128xf32>
      %48 = vector.shape_cast %47 : vector<128xf32> to vector<1x128xf32>
      %c0_39 = arith.constant 0 : index
      %c0_40 = arith.constant 0 : index
      %49 = vector.load %arg15[%c0_39, %c0_40] : memref<128x256xf32, #tpu.memory_space<vmem>>, vector<128x256xf32>
      %cst_41 = arith.constant dense<0.000000e+00> : vector<1x256xf32>
      %50 = tpu.matmul %46, %49, %cst_41 {dimension_numbers = #tpu.dot_dimension_numbers<[1], [0], [0], [1], [0, 0, 1, 1], [], []>} : vector<1x128xf32>, vector<128x256xf32>, vector<1x256xf32> -> vector<1x256xf32>
      %c0_42 = arith.constant 0 : index
      %c0_43 = arith.constant 0 : index
      %51 = vector.load %arg16[%c0_42, %c0_43] : memref<128x256xf32, #tpu.memory_space<vmem>>, vector<128x256xf32>
      %cst_44 = arith.constant dense<0.000000e+00> : vector<1x256xf32>
      %52 = tpu.matmul %48, %51, %cst_44 {dimension_numbers = #tpu.dot_dimension_numbers<[1], [0], [0], [1], [0, 0, 1, 1], [], []>} : vector<1x128xf32>, vector<128x256xf32>, vector<1x256xf32> -> vector<1x256xf32>
      %53 = arith.addf %50, %52 : vector<1x256xf32>
      %c0_45 = arith.constant 0 : index
      %c0_46 = arith.constant 0 : index
      %54 = vector.load %arg17[%c0_45, %c0_46] : memref<1x256xf32, #tpu.memory_space<vmem>>, vector<1x256xf32>
      %55 = arith.addf %53, %54 : vector<1x256xf32>
      %cst_47 = arith.constant 0.000000e+00 : f32
      %56 = vector.broadcast %cst_47 : f32 to vector<1x256xf32>
      %57 = arith.maximumf %55, %56 : vector<1x256xf32>
      %c0_48 = arith.constant 0 : index
      %c0_49 = arith.constant 0 : index
      %58 = vector.load %arg18[%c0_48, %c0_49] : memref<256x128xf32, #tpu.memory_space<vmem>>, vector<256x128xf32>
      %cst_50 = arith.constant dense<0.000000e+00> : vector<1x128xf32>
      %59 = tpu.matmul %57, %58, %cst_50 {dimension_numbers = #tpu.dot_dimension_numbers<[1], [0], [0], [1], [0, 0, 1, 1], [], []>} : vector<1x256xf32>, vector<256x128xf32>, vector<1x128xf32> -> vector<1x128xf32>
      %c0_51 = arith.constant 0 : index
      %c0_52 = arith.constant 0 : index
      %60 = vector.load %arg19[%c0_51, %c0_52] : memref<1x128xf32, #tpu.memory_space<vmem>>, vector<1x128xf32>
      %61 = arith.addf %59, %60 : vector<1x128xf32>
      %cst_53 = arith.constant 0.000000e+00 : f32
      %62 = vector.broadcast %cst_53 : f32 to vector<1x128xf32>
      %63 = arith.maximumf %61, %62 : vector<1x128xf32>
      %c0_54 = arith.constant 0 : index
      %c0_55 = arith.constant 0 : index
      %64 = vector.load %arg20[%c0_54, %c0_55] : memref<128x1xf32, #tpu.memory_space<vmem>>, vector<128x1xf32>
      %cst_56 = arith.constant dense<0.000000e+00> : vector<1x1xf32>
      %65 = tpu.matmul %63, %64, %cst_56 {dimension_numbers = #tpu.dot_dimension_numbers<[1], [0], [0], [1], [0, 0, 1, 1], [], []>} : vector<1x128xf32>, vector<128x1xf32>, vector<1x1xf32> -> vector<1x1xf32>
      %c0_57 = arith.constant 0 : index
      %c0_58 = arith.constant 0 : index
      %66 = vector.load %arg21[%c0_57, %c0_58] : memref<1x1xf32, #tpu.memory_space<vmem>>, vector<1x1xf32>
      %67 = arith.addf %65, %66 : vector<1x1xf32>
      %c0_59 = arith.constant 0 : index
      %c0_60 = arith.constant 0 : index
      %68 = vector.load %arg23[%c0_59, %c0_60] : memref<1x1xf32, #tpu.memory_space<vmem>>, vector<1x1xf32>
      tpu.vector_store %arg23[%c0_59, %c0_60], %67 {strides = array<i32>} : memref<1x1xf32, #tpu.memory_space<vmem>>, vector<1x1xf32>,
    } else {
    }
    return
  }
  func.func @transform_0(%arg0: i32, %arg1: i32) -> (i32, i32) {
    %c0_i32 = arith.constant 0 : i32
    %c0_i32_0 = arith.constant 0 : i32
    %c0_i32_1 = arith.constant 0 : i32
    return %c0_i32, %c0_i32_0 : i32, i32
  }
  func.func @transform_1(%arg0: i32, %arg1: i32) -> (i32, i32) {
    %c0_i32 = arith.constant 0 : i32
    %c0_i32_0 = arith.constant 0 : i32
    return %c0_i32, %arg1 : i32, i32
  }
  func.func @transform_2(%arg0: i32, %arg1: i32) -> (i32, i32) {
    %c0_i32 = arith.constant 0 : i32
    %c0_i32_0 = arith.constant 0 : i32
    %c0_i32_1 = arith.constant 0 : i32
    return %c0_i32, %c0_i32_0 : i32, i32
  }
  func.func @transform_3(%arg0: i32, %arg1: i32) -> (i32, i32, i32) {
    %c0_i32 = arith.constant 0 : i32
    %c0_i32_0 = arith.constant 0 : i32
    %c0_i32_1 = arith.constant 0 : i32
    %c0_i32_2 = arith.constant 0 : i32
    return %c0_i32, %c0_i32_0, %c0_i32_1 : i32, i32, i32
  }
  func.func @transform_4(%arg0: i32, %arg1: i32) -> (i32, i32, i32) {
    %c0_i32 = arith.constant 0 : i32
    %c0_i32_0 = arith.constant 0 : i32
    %c0_i32_1 = arith.constant 0 : i32
    %c0_i32_2 = arith.constant 0 : i32
    return %c0_i32, %c0_i32_0, %c0_i32_1 : i32, i32, i32
  }
  func.func @transform_5(%arg0: i32, %arg1: i32) -> (i32, i32, i32) {
    %c0_i32 = arith.constant 0 : i32
    %c0_i32_0 = arith.constant 0 : i32
    %c0_i32_1 = arith.constant 0 : i32
    %c0_i32_2 = arith.constant 0 : i32
    return %c0_i32, %c0_i32_0, %c0_i32_1 : i32, i32, i32
  }
  func.func @transform_6(%arg0: i32, %arg1: i32) -> (i32, i32, i32) {
    %c0_i32 = arith.constant 0 : i32
    %c0_i32_0 = arith.constant 0 : i32
    %c0_i32_1 = arith.constant 0 : i32
    %c0_i32_2 = arith.constant 0 : i32
    return %c0_i32, %c0_i32_0, %c0_i32_1 : i32, i32, i32
  }
  func.func @transform_7(%arg0: i32, %arg1: i32) -> (i32, i32) {
    %c0_i32 = arith.constant 0 : i32
    %c0_i32_0 = arith.constant 0 : i32
    %c0_i32_1 = arith.constant 0 : i32
    return %c0_i32, %c0_i32_0 : i32, i32
  }
  func.func @transform_8(%arg0: i32, %arg1: i32) -> (i32, i32) {
    %c0_i32 = arith.constant 0 : i32
    %c0_i32_0 = arith.constant 0 : i32
    %c0_i32_1 = arith.constant 0 : i32
    return %c0_i32, %c0_i32_0 : i32, i32
  }
  func.func @transform_9(%arg0: i32, %arg1: i32) -> (i32, i32) {
    %c0_i32 = arith.constant 0 : i32
    %c0_i32_0 = arith.constant 0 : i32
    %c0_i32_1 = arith.constant 0 : i32
    return %c0_i32, %c0_i32_0 : i32, i32
  }
  func.func @transform_10(%arg0: i32, %arg1: i32) -> (i32, i32) {
    %c0_i32 = arith.constant 0 : i32
    %c0_i32_0 = arith.constant 0 : i32
    %c0_i32_1 = arith.constant 0 : i32
    return %c0_i32, %c0_i32_0 : i32, i32
  }
  func.func @transform_11(%arg0: i32, %arg1: i32) -> (i32, i32) {
    %c0_i32 = arith.constant 0 : i32
    %c0_i32_0 = arith.constant 0 : i32
    %c0_i32_1 = arith.constant 0 : i32
    return %c0_i32, %c0_i32_0 : i32, i32
  }
  func.func @transform_12(%arg0: i32, %arg1: i32) -> (i32, i32) {
    %c0_i32 = arith.constant 0 : i32
    %c0_i32_0 = arith.constant 0 : i32
    %c0_i32_1 = arith.constant 0 : i32
    return %c0_i32, %c0_i32_0 : i32, i32
  }
  func.func @transform_13(%arg0: i32, %arg1: i32) -> (i32, i32) {
    %c0_i32 = arith.constant 0 : i32
    %c0_i32_0 = arith.constant 0 : i32
    %c0_i32_1 = arith.constant 0 : i32
    return %c0_i32, %c0_i32_0 : i32, i32
  }
  func.func @transform_14(%arg0: i32, %arg1: i32) -> (i32, i32) {
    %c0_i32 = arith.constant 0 : i32
    %c0_i32_0 = arith.constant 0 : i32
    %c0_i32_1 = arith.constant 0 : i32
    return %c0_i32, %c0_i32_0 : i32, i32
  }
  func.func @transform_15(%arg0: i32, %arg1: i32) -> (i32, i32) {
    %c0_i32 = arith.constant 0 : i32
    %c0_i32_0 = arith.constant 0 : i32
    %c0_i32_1 = arith.constant 0 : i32
    return %c0_i32, %c0_i32_0 : i32, i32
  }
  func.func @transform_16(%arg0: i32, %arg1: i32) -> (i32, i32) {
    %c0_i32 = arith.constant 0 : i32
    %c0_i32_0 = arith.constant 0 : i32
    %c0_i32_1 = arith.constant 0 : i32
    return %c0_i32, %c0_i32_0 : i32, i32
  }
  func.func @transform_17(%arg0: i32, %arg1: i32) -> (i32, i32) {
    %c0_i32 = arith.constant 0 : i32
    %c0_i32_0 = arith.constant 0 : i32
    %c0_i32_1 = arith.constant 0 : i32
    return %c0_i32, %c0_i32_0 : i32, i32
  }
  func.func @transform_18(%arg0: i32, %arg1: i32) -> (i32, i32) {
    %c0_i32 = arith.constant 0 : i32
    %c0_i32_0 = arith.constant 0 : i32
    %c0_i32_1 = arith.constant 0 : i32
    return %c0_i32, %c0_i32_0 : i32, i32
  }
  func.func @transform_19(%arg0: i32, %arg1: i32) -> (i32, i32) {
    %c0_i32 = arith.constant 0 : i32
    %c0_i32_0 = arith.constant 0 : i32
    %c0_i32_1 = arith.constant 0 : i32
    return %c0_i32, %c0_i32_0 : i32, i32
  }
  func.func @transform_20(%arg0: i32, %arg1: i32) -> (i32, i32) {
    %c0_i32 = arith.constant 0 : i32
    %c0_i32_0 = arith.constant 0 : i32
    %c0_i32_1 = arith.constant 0 : i32
    return %c0_i32, %c0_i32_0 : i32, i32
  }
  func.func @transform_21(%arg0: i32, %arg1: i32) -> (i32, i32) {
    %c0_i32 = arith.constant 0 : i32
    %c0_i32_0 = arith.constant 0 : i32
    %c0_i32_1 = arith.constant 0 : i32
    return %c0_i32, %c0_i32_0 : i32, i32
  }
}

</mosaic_0001>

<llo_original>
// kernel: _ppo_forward.1
$region0: #{_ppo_forward.1}
  #allocation0 [shape = 'u32[]', space=smem, size = 0x4, offset = 0x4, fixed_abs, tag = 'smem constant byte address 0x4 - core index']
  #allocation1 [shape = 'u32[144,128]{1,0:T(1,128)}', space=vmem, size = 0x12000, scoped, tag = 'internal scratch']
  #allocation2 [shape = 'f32[128,128]{1,0:T(8,128)}', space=vmem, size = 0x10000, scoped, tag = 'scratch operand']
  #allocation3 [shape = 'f32[128,128]{1,0:T(8,128)}', space=vmem, size = 0x10000, scoped, tag = 'scratch operand']
  #allocation4 [shape = 'f32[1,1]{1,0:T(1,128)S(1)}', space=vmem, size = 0x200, scoped, tag = 'scoped memory for _ppo_forward.1']
  #allocation5 [shape = 'f32[1,1]{1,0:T(1,128)S(1)}', space=vmem, size = 0x200, scoped, tag = 'scoped memory for _ppo_forward.1']
  %s0 = inlined_call_operand.vmem [shape: f32[128,4], index: 0, kind: input, shape index: {}]
  %s1 = inlined_call_operand.vmem [shape: bf16[128,128], index: 1, kind: input, shape index: {}]
  %s2 = inlined_call_operand.vmem [shape: f32[128,1], index: 2, kind: input, shape index: {}]
  %s3 = inlined_call_operand.vmem [shape: f32[3,4,128], index: 3, kind: input, shape index: {}]
  %s4 = inlined_call_operand.vmem [shape: f32[3,128,128], index: 4, kind: input, shape index: {}]
  %s5 = inlined_call_operand.vmem [shape: f32[3,128,128], index: 5, kind: input, shape index: {}]
  %s6 = inlined_call_operand.vmem [shape: f32[3,1,128], index: 6, kind: input, shape index: {}]
  %s7 = inlined_call_operand.vmem [shape: f32[128,64], index: 7, kind: input, shape index: {}]
  %s8 = inlined_call_operand.vmem [shape: f32[1,64], index: 8, kind: input, shape index: {}]
  %s9 = inlined_call_operand.vmem [shape: f32[64,32], index: 9, kind: input, shape index: {}]
  %s10 = inlined_call_operand.vmem [shape: f32[1,32], index: 10, kind: input, shape index: {}]
  %s11 = inlined_call_operand.vmem [shape: f32[32,1], index: 11, kind: input, shape index: {}]
  %s12 = inlined_call_operand.<no memory space> [shape: f32[1,1], index: 12, kind: input, shape index: {}]
  %s13 = inlined_call_operand.vmem [shape: f32[128,256], index: 13, kind: input, shape index: {}]
  %s14 = inlined_call_operand.vmem [shape: f32[128,256], index: 14, kind: input, shape index: {}]
  %s15 = inlined_call_operand.vmem [shape: f32[1,256], index: 15, kind: input, shape index: {}]
  %s16 = inlined_call_operand.vmem [shape: f32[256,128], index: 16, kind: input, shape index: {}]
  %s17 = inlined_call_operand.vmem [shape: f32[1,128], index: 17, kind: input, shape index: {}]
  %s18 = inlined_call_operand.vmem [shape: f32[128,1], index: 18, kind: input, shape index: {}]
  %s19 = inlined_call_operand.<no memory space> [shape: f32[1,1], index: 19, kind: input, shape index: {}]
  %s20 = inlined_call_operand.vmem [shape: f32[128,1], index: 20, kind: output, shape index: {0}]
  %s21 = inlined_call_operand.hbm [shape: f32[1,1], index: 21, kind: output, shape index: {1}]
  %22 = xla_tuple %s20, %s21
  %s23 = sld [smem:[#allocation0]]
  $region137: #{_ppo_forward.1} parent=0
    _
  %s25 = ssub.s32 1, %s23
  %s26 = scalar_select 0, %s25, %s23
  %v27 = vstv %s12
  %28 = vst [vmem:[#allocation4] sm:$0x1] %v27
  %v29 = vstv %s19
  %30 = vst [vmem:[#allocation5] sm:$0x1] %v29
  $region1: #{_ppo_forward.1} parent=0
    #allocation6 [shape = 'u8[512]{0}', space=vmem, size = 0x400, scoped, tag = 'output window, operand 1, single buffered']
    #allocation7 [shape = 's32[2]{0}', space=sflag, size = 0x8, scoped, tag = 'scoped memory for _ppo_forward.1']
    %31 = vsyncpa [#allocation7], 0
    loop: start=0, step=1, limit=4
    $region2: #{_ppo_forward.1} parent=1 // loop_pre_header
      _
    $region3: #{_ppo_forward.1} parent=1 // loop_header
      %s33 = sphi 0, %s37
      %p34 = scmp.ge.s32.totalorder %s33, 4
      %s40 = sphi 0, %s52
      %s41 = sphi 0, %s48
      %s42 = sphi 0, %s40
      %s43 = sphi 0, %s41
      %s44 = sphi 0, %s42
      %s45 = sphi 0, %s43
      %s53 = sphi 0, %s53
      %s55 = sphi 0, %s53
      %s56 = sphi 0, %s55
      %s70 = sphi 0, %s56
      %s76 = sphi 0, %s78
      %s79 = sphi 0, %s76
      %s80 = sphi 0, %s79
      %s96 = sphi 0, %s80
      %s100 = sphi 0, %s100
      %s102 = sphi 0, %s100
      %s103 = sphi 0, %s102
      %s117 = sphi 0, %s103
      %s121 = sphi 0, %s121
      %s123 = sphi 0, %s121
      %s124 = sphi 0, %s123
      %s138 = sphi 0, %s124
      %s142 = sphi 0, %s142
      %s144 = sphi 0, %s142
      %s145 = sphi 0, %s144
      %s159 = sphi 0, %s145
      %s163 = sphi 0, %s163
      %s165 = sphi 0, %s163
      %s166 = sphi 0, %s165
      %s180 = sphi 0, %s166
      %s184 = sphi 0, %s184
      %s186 = sphi 0, %s184
      %s187 = sphi 0, %s186
      %s201 = sphi 0, %s187
      %s205 = sphi 0, %s205
      %s207 = sphi 0, %s205
      %s208 = sphi 0, %s207
      %s222 = sphi 0, %s208
      %s226 = sphi 0, %s226
      %s228 = sphi 0, %s226
      %s229 = sphi 0, %s228
      %s243 = sphi 0, %s229
      %s247 = sphi 0, %s247
      %s249 = sphi 0, %s247
      %s250 = sphi 0, %s249
      %s264 = sphi 0, %s250
      %s268 = sphi 0, %s268
      %s270 = sphi 0, %s268
      %s271 = sphi 0, %s270
      %s285 = sphi 0, %s271
      %s289 = sphi 0, %s289
      %s291 = sphi 0, %s289
      %s292 = sphi 0, %s291
      %s306 = sphi 0, %s292
      %s310 = sphi 0, %s310
      %s312 = sphi 0, %s310
      %s313 = sphi 0, %s312
      %s327 = sphi 0, %s313
      %s331 = sphi 0, %s331
      %s333 = sphi 0, %s331
      %s334 = sphi 0, %s333
      %s348 = sphi 0, %s334
      %s352 = sphi 0, %s352
      %s354 = sphi 0, %s352
      %s355 = sphi 0, %s354
      %s369 = sphi 0, %s355
      %s373 = sphi 0, %s373
      %s375 = sphi 0, %s373
      %s376 = sphi 0, %s375
      %s390 = sphi 0, %s376
      %s394 = sphi 0, %s394
      %s396 = sphi 0, %s394
      %s397 = sphi 0, %s396
      %s411 = sphi 0, %s397
      %s415 = sphi 0, %s415
      %s417 = sphi 0, %s415
      %s418 = sphi 0, %s417
      %s432 = sphi 0, %s418
      %s436 = sphi 0, %s436
      %s438 = sphi 0, %s436
      %s439 = sphi 0, %s438
      %s453 = sphi 0, %s439
      %s457 = sphi 0, %s457
      %s459 = sphi 0, %s457
      %s460 = sphi 0, %s459
      %s474 = sphi 0, %s460
      %s478 = sphi 0, %s478
      %s480 = sphi 0, %s478
      %s481 = sphi 0, %s480
      %s495 = sphi 0, %s481
      %s499 = sphi 0, %s499
      %s501 = sphi 0, %s499
      %s502 = sphi 0, %s501
      %s516 = sphi 0, %s502
    $region4: #{_ppo_forward.1} parent=1 // loop_header_branch
      %36 = sbr.rel (%p34) target = $region8
    $region5: #{_ppo_forward.1} parent=1 // loop_body
      %s38 = ssub.s32 %s33, 1
      %s39 = ssub.s32 %s33, 2
      %s46 = sadd.s32 1, %s41
      %p47 = scmp.ge.s32.totalorder %s46, 1
      %s48 = scalar_select %p47, 0, %s46
      %s49 = sadd.s32 1, %s40
      %s50 = scalar_select %p47, %s49, %s40
      %p51 = scmp.ge.s32.totalorder %s50, 2
      %s52 = scalar_select %p51, 0, %s50
      %s54 = sadd.s32 %s53, 1
      %p57 = scmp.eq.s32.totalorder %s33, 1
      %p58 = scmp.ne.s32.totalorder %s53, %s55
      %p59 = scmp.eq.s32.totalorder %s33, 0
      %p60 = por %p58, %p59
      %p61 = scmp.ne.s32.totalorder %s53, %s55
      %p62 = scmp.eq.s32.totalorder %s38, 1
      %p63 = por %p61, %p62
      %p64 = scmp.ne.s32.totalorder %s55, %s56
      %p65 = scmp.eq.s32.totalorder %s38, 0
      %p66 = por %p64, %p65
      %p67 = scmp.ne.s32.totalorder %s55, %s56
      %p68 = scmp.eq.s32.totalorder %s39, 1
      %p69 = por %p67, %p68
      %p71 = scmp.ne.s32.totalorder %s56, %s70
      %p72 = scmp.eq.s32.totalorder %s39, 0
      %p73 = por %p71, %p72
      %s74 = ssub.s32 %s41, %s48
      %p75 = scmp.eq.s32.totalorder %s74, 0
      %s77 = sadd.s32 %s76, 1
      %s78 = scalar_select %p75, %s76, %s77
      %p81 = pneg %p75
      %p82 = scmp.eq.s32.totalorder %s33, 1
      %p83 = por %p81, %p82
      %p84 = scmp.ne.s32.totalorder %s76, %s79
      %p85 = scmp.eq.s32.totalorder %s33, 0
      %p86 = por %p84, %p85
      %p87 = scmp.ne.s32.totalorder %s76, %s79
      %p88 = scmp.eq.s32.totalorder %s38, 1
      %p89 = por %p87, %p88
      %p90 = scmp.ne.s32.totalorder %s79, %s80
      %p91 = scmp.eq.s32.totalorder %s38, 0
      %p92 = por %p90, %p91
      %p93 = scmp.ne.s32.totalorder %s79, %s80
      %p94 = scmp.eq.s32.totalorder %s39, 1
      %p95 = por %p93, %p94
      %p97 = scmp.ne.s32.totalorder %s80, %s96
      %p98 = scmp.eq.s32.totalorder %s39, 0
      %p99 = por %p97, %p98
      %s101 = sadd.s32 %s100, 1
      %p104 = scmp.eq.s32.totalorder %s33, 1
      %p105 = scmp.ne.s32.totalorder %s100, %s102
      %p106 = scmp.eq.s32.totalorder %s33, 0
      %p107 = por %p105, %p106
      %p108 = scmp.ne.s32.totalorder %s100, %s102
      %p109 = scmp.eq.s32.totalorder %s38, 1
      %p110 = por %p108, %p109
      %p111 = scmp.ne.s32.totalorder %s102, %s103
      %p112 = scmp.eq.s32.totalorder %s38, 0
      %p113 = por %p111, %p112
      %p114 = scmp.ne.s32.totalorder %s102, %s103
      %p115 = scmp.eq.s32.totalorder %s39, 1
      %p116 = por %p114, %p115
      %p118 = scmp.ne.s32.totalorder %s103, %s117
      %p119 = scmp.eq.s32.totalorder %s39, 0
      %p120 = por %p118, %p119
      %s122 = sadd.s32 %s121, 1
      %p125 = scmp.eq.s32.totalorder %s33, 1
      %p126 = scmp.ne.s32.totalorder %s121, %s123
      %p127 = scmp.eq.s32.totalorder %s33, 0
      %p128 = por %p126, %p127
      %p129 = scmp.ne.s32.totalorder %s121, %s123
      %p130 = scmp.eq.s32.totalorder %s38, 1
      %p131 = por %p129, %p130
      %p132 = scmp.ne.s32.totalorder %s123, %s124
      %p133 = scmp.eq.s32.totalorder %s38, 0
      %p134 = por %p132, %p133
      %p135 = scmp.ne.s32.totalorder %s123, %s124
      %p136 = scmp.eq.s32.totalorder %s39, 1
      %p137 = por %p135, %p136
      %p139 = scmp.ne.s32.totalorder %s124, %s138
      %p140 = scmp.eq.s32.totalorder %s39, 0
      %p141 = por %p139, %p140
      %s143 = sadd.s32 %s142, 1
      %p146 = scmp.eq.s32.totalorder %s33, 1
      %p147 = scmp.ne.s32.totalorder %s142, %s144
      %p148 = scmp.eq.s32.totalorder %s33, 0
      %p149 = por %p147, %p148
      %p150 = scmp.ne.s32.totalorder %s142, %s144
      %p151 = scmp.eq.s32.totalorder %s38, 1
      %p152 = por %p150, %p151
      %p153 = scmp.ne.s32.totalorder %s144, %s145
      %p154 = scmp.eq.s32.totalorder %s38, 0
      %p155 = por %p153, %p154
      %p156 = scmp.ne.s32.totalorder %s144, %s145
      %p157 = scmp.eq.s32.totalorder %s39, 1
      %p158 = por %p156, %p157
      %p160 = scmp.ne.s32.totalorder %s145, %s159
      %p161 = scmp.eq.s32.totalorder %s39, 0
      %p162 = por %p160, %p161
      %s164 = sadd.s32 %s163, 1
      %p167 = scmp.eq.s32.totalorder %s33, 1
      %p168 = scmp.ne.s32.totalorder %s163, %s165
      %p169 = scmp.eq.s32.totalorder %s33, 0
      %p170 = por %p168, %p169
      %p171 = scmp.ne.s32.totalorder %s163, %s165
      %p172 = scmp.eq.s32.totalorder %s38, 1
      %p173 = por %p171, %p172
      %p174 = scmp.ne.s32.totalorder %s165, %s166
      %p175 = scmp.eq.s32.totalorder %s38, 0
      %p176 = por %p174, %p175
      %p177 = scmp.ne.s32.totalorder %s165, %s166
      %p178 = scmp.eq.s32.totalorder %s39, 1
      %p179 = por %p177, %p178
      %p181 = scmp.ne.s32.totalorder %s166, %s180
      %p182 = scmp.eq.s32.totalorder %s39, 0
      %p183 = por %p181, %p182
      %s185 = sadd.s32 %s184, 1
      %p188 = scmp.eq.s32.totalorder %s33, 1
      %p189 = scmp.ne.s32.totalorder %s184, %s186
      %p190 = scmp.eq.s32.totalorder %s33, 0
      %p191 = por %p189, %p190
      %p192 = scmp.ne.s32.totalorder %s184, %s186
      %p193 = scmp.eq.s32.totalorder %s38, 1
      %p194 = por %p192, %p193
      %p195 = scmp.ne.s32.totalorder %s186, %s187
      %p196 = scmp.eq.s32.totalorder %s38, 0
      %p197 = por %p195, %p196
      %p198 = scmp.ne.s32.totalorder %s186, %s187
      %p199 = scmp.eq.s32.totalorder %s39, 1
      %p200 = por %p198, %p199
      %p202 = scmp.ne.s32.totalorder %s187, %s201
      %p203 = scmp.eq.s32.totalorder %s39, 0
      %p204 = por %p202, %p203
      %s206 = sadd.s32 %s205, 1
      %p209 = scmp.eq.s32.totalorder %s33, 1
      %p210 = scmp.ne.s32.totalorder %s205, %s207
      %p211 = scmp.eq.s32.totalorder %s33, 0
      %p212 = por %p210, %p211
      %p213 = scmp.ne.s32.totalorder %s205, %s207
      %p214 = scmp.eq.s32.totalorder %s38, 1
      %p215 = por %p213, %p214
      %p216 = scmp.ne.s32.totalorder %s207, %s208
      %p217 = scmp.eq.s32.totalorder %s38, 0
      %p218 = por %p216, %p217
      %p219 = scmp.ne.s32.totalorder %s207, %s208
      %p220 = scmp.eq.s32.totalorder %s39, 1
      %p221 = por %p219, %p220
      %p223 = scmp.ne.s32.totalorder %s208, %s222
      %p224 = scmp.eq.s32.totalorder %s39, 0
      %p225 = por %p223, %p224
      %s227 = sadd.s32 %s226, 1
      %p230 = scmp.eq.s32.totalorder %s33, 1
      %p231 = scmp.ne.s32.totalorder %s226, %s228
      %p232 = scmp.eq.s32.totalorder %s33, 0
      %p233 = por %p231, %p232
      %p234 = scmp.ne.s32.totalorder %s226, %s228
      %p235 = scmp.eq.s32.totalorder %s38, 1
      %p236 = por %p234, %p235
      %p237 = scmp.ne.s32.totalorder %s228, %s229
      %p238 = scmp.eq.s32.totalorder %s38, 0
      %p239 = por %p237, %p238
      %p240 = scmp.ne.s32.totalorder %s228, %s229
      %p241 = scmp.eq.s32.totalorder %s39, 1
      %p242 = por %p240, %p241
      %p244 = scmp.ne.s32.totalorder %s229, %s243
      %p245 = scmp.eq.s32.totalorder %s39, 0
      %p246 = por %p244, %p245
      %s248 = sadd.s32 %s247, 1
      %p251 = scmp.eq.s32.totalorder %s33, 1
      %p252 = scmp.ne.s32.totalorder %s247, %s249
      %p253 = scmp.eq.s32.totalorder %s33, 0
      %p254 = por %p252, %p253
      %p255 = scmp.ne.s32.totalorder %s247, %s249
      %p256 = scmp.eq.s32.totalorder %s38, 1
      %p257 = por %p255, %p256
      %p258 = scmp.ne.s32.totalorder %s249, %s250
      %p259 = scmp.eq.s32.totalorder %s38, 0
      %p260 = por %p258, %p259
      %p261 = scmp.ne.s32.totalorder %s249, %s250
      %p262 = scmp.eq.s32.totalorder %s39, 1
      %p263 = por %p261, %p262
      %p265 = scmp.ne.s32.totalorder %s250, %s264
      %p266 = scmp.eq.s32.totalorder %s39, 0
      %p267 = por %p265, %p266
      %s269 = sadd.s32 %s268, 1
      %p272 = scmp.eq.s32.totalorder %s33, 1
      %p273 = scmp.ne.s32.totalorder %s268, %s270
      %p274 = scmp.eq.s32.totalorder %s33, 0
      %p275 = por %p273, %p274
      %p276 = scmp.ne.s32.totalorder %s268, %s270
      %p277 = scmp.eq.s32.totalorder %s38, 1
      %p278 = por %p276, %p277
      %p279 = scmp.ne.s32.totalorder %s270, %s271
      %p280 = scmp.eq.s32.totalorder %s38, 0
      %p281 = por %p279, %p280
      %p282 = scmp.ne.s32.totalorder %s270, %s271
      %p283 = scmp.eq.s32.totalorder %s39, 1
      %p284 = por %p282, %p283
      %p286 = scmp.ne.s32.totalorder %s271, %s285
      %p287 = scmp.eq.s32.totalorder %s39, 0
      %p288 = por %p286, %p287
      %s290 = sadd.s32 %s289, 1
      %p293 = scmp.eq.s32.totalorder %s33, 1
      %p294 = scmp.ne.s32.totalorder %s289, %s291
      %p295 = scmp.eq.s32.totalorder %s33, 0
      %p296 = por %p294, %p295
      %p297 = scmp.ne.s32.totalorder %s289, %s291
      %p298 = scmp.eq.s32.totalorder %s38, 1
      %p299 = por %p297, %p298
      %p300 = scmp.ne.s32.totalorder %s291, %s292
      %p301 = scmp.eq.s32.totalorder %s38, 0
      %p302 = por %p300, %p301
      %p303 = scmp.ne.s32.totalorder %s291, %s292
      %p304 = scmp.eq.s32.totalorder %s39, 1
      %p305 = por %p303, %p304
      %p307 = scmp.ne.s32.totalorder %s292, %s306
      %p308 = scmp.eq.s32.totalorder %s39, 0
      %p309 = por %p307, %p308
      %s311 = sadd.s32 %s310, 1
      %p314 = scmp.eq.s32.totalorder %s33, 1
      %p315 = scmp.ne.s32.totalorder %s310, %s312
      %p316 = scmp.eq.s32.totalorder %s33, 0
      %p317 = por %p315, %p316
      %p318 = scmp.ne.s32.totalorder %s310, %s312
      %p319 = scmp.eq.s32.totalorder %s38, 1
      %p320 = por %p318, %p319
      %p321 = scmp.ne.s32.totalorder %s312, %s313
      %p322 = scmp.eq.s32.totalorder %s38, 0
      %p323 = por %p321, %p322
      %p324 = scmp.ne.s32.totalorder %s312, %s313
      %p325 = scmp.eq.s32.totalorder %s39, 1
      %p326 = por %p324, %p325
      %p328 = scmp.ne.s32.totalorder %s313, %s327
      %p329 = scmp.eq.s32.totalorder %s39, 0
      %p330 = por %p328, %p329
      %s332 = sadd.s32 %s331, 1
      %p335 = scmp.eq.s32.totalorder %s33, 1
      %p336 = scmp.ne.s32.totalorder %s331, %s333
      %p337 = scmp.eq.s32.totalorder %s33, 0
      %p338 = por %p336, %p337
      %p339 = scmp.ne.s32.totalorder %s331, %s333
      %p340 = scmp.eq.s32.totalorder %s38, 1
      %p341 = por %p339, %p340
      %p342 = scmp.ne.s32.totalorder %s333, %s334
      %p343 = scmp.eq.s32.totalorder %s38, 0
      %p344 = por %p342, %p343
      %p345 = scmp.ne.s32.totalorder %s333, %s334
      %p346 = scmp.eq.s32.totalorder %s39, 1
      %p347 = por %p345, %p346
      %p349 = scmp.ne.s32.totalorder %s334, %s348
      %p350 = scmp.eq.s32.totalorder %s39, 0
      %p351 = por %p349, %p350
      %s353 = sadd.s32 %s352, 1
      %p356 = scmp.eq.s32.totalorder %s33, 1
      %p357 = scmp.ne.s32.totalorder %s352, %s354
      %p358 = scmp.eq.s32.totalorder %s33, 0
      %p359 = por %p357, %p358
      %p360 = scmp.ne.s32.totalorder %s352, %s354
      %p361 = scmp.eq.s32.totalorder %s38, 1
      %p362 = por %p360, %p361
      %p363 = scmp.ne.s32.totalorder %s354, %s355
      %p364 = scmp.eq.s32.totalorder %s38, 0
      %p365 = por %p363, %p364
      %p366 = scmp.ne.s32.totalorder %s354, %s355
      %p367 = scmp.eq.s32.totalorder %s39, 1
      %p368 = por %p366, %p367
      %p370 = scmp.ne.s32.totalorder %s355, %s369
      %p371 = scmp.eq.s32.totalorder %s39, 0
      %p372 = por %p370, %p371
      %s374 = sadd.s32 %s373, 1
      %p377 = scmp.eq.s32.totalorder %s33, 1
      %p378 = scmp.ne.s32.totalorder %s373, %s375
      %p379 = scmp.eq.s32.totalorder %s33, 0
      %p380 = por %p378, %p379
      %p381 = scmp.ne.s32.totalorder %s373, %s375
      %p382 = scmp.eq.s32.totalorder %s38, 1
      %p383 = por %p381, %p382
      %p384 = scmp.ne.s32.totalorder %s375, %s376
      %p385 = scmp.eq.s32.totalorder %s38, 0
      %p386 = por %p384, %p385
      %p387 = scmp.ne.s32.totalorder %s375, %s376
      %p388 = scmp.eq.s32.totalorder %s39, 1
      %p389 = por %p387, %p388
      %p391 = scmp.ne.s32.totalorder %s376, %s390
      %p392 = scmp.eq.s32.totalorder %s39, 0
      %p393 = por %p391, %p392
      %s395 = sadd.s32 %s394, 1
      %p398 = scmp.eq.s32.totalorder %s33, 1
      %p399 = scmp.ne.s32.totalorder %s394, %s396
      %p400 = scmp.eq.s32.totalorder %s33, 0
      %p401 = por %p399, %p400
      %p402 = scmp.ne.s32.totalorder %s394, %s396
      %p403 = scmp.eq.s32.totalorder %s38, 1
      %p404 = por %p402, %p403
      %p405 = scmp.ne.s32.totalorder %s396, %s397
      %p406 = scmp.eq.s32.totalorder %s38, 0
      %p407 = por %p405, %p406
      %p408 = scmp.ne.s32.totalorder %s396, %s397
      %p409 = scmp.eq.s32.totalorder %s39, 1
      %p410 = por %p408, %p409
      %p412 = scmp.ne.s32.totalorder %s397, %s411
      %p413 = scmp.eq.s32.totalorder %s39, 0
      %p414 = por %p412, %p413
      %s416 = sadd.s32 %s415, 1
      %p419 = scmp.eq.s32.totalorder %s33, 1
      %p420 = scmp.ne.s32.totalorder %s415, %s417
      %p421 = scmp.eq.s32.totalorder %s33, 0
      %p422 = por %p420, %p421
      %p423 = scmp.ne.s32.totalorder %s415, %s417
      %p424 = scmp.eq.s32.totalorder %s38, 1
      %p425 = por %p423, %p424
      %p426 = scmp.ne.s32.totalorder %s417, %s418
      %p427 = scmp.eq.s32.totalorder %s38, 0
      %p428 = por %p426, %p427
      %p429 = scmp.ne.s32.totalorder %s417, %s418
      %p430 = scmp.eq.s32.totalorder %s39, 1
      %p431 = por %p429, %p430
      %p433 = scmp.ne.s32.totalorder %s418, %s432
      %p434 = scmp.eq.s32.totalorder %s39, 0
      %p435 = por %p433, %p434
      %s437 = sadd.s32 %s436, 1
      %p440 = scmp.eq.s32.totalorder %s33, 1
      %p441 = scmp.ne.s32.totalorder %s436, %s438
      %p442 = scmp.eq.s32.totalorder %s33, 0
      %p443 = por %p441, %p442
      %p444 = scmp.ne.s32.totalorder %s436, %s438
      %p445 = scmp.eq.s32.totalorder %s38, 1
      %p446 = por %p444, %p445
      %p447 = scmp.ne.s32.totalorder %s438, %s439
      %p448 = scmp.eq.s32.totalorder %s38, 0
      %p449 = por %p447, %p448
      %p450 = scmp.ne.s32.totalorder %s438, %s439
      %p451 = scmp.eq.s32.totalorder %s39, 1
      %p452 = por %p450, %p451
      %p454 = scmp.ne.s32.totalorder %s439, %s453
      %p455 = scmp.eq.s32.totalorder %s39, 0
      %p456 = por %p454, %p455
      %s458 = sadd.s32 %s457, 1
      %p461 = scmp.eq.s32.totalorder %s33, 1
      %p462 = scmp.ne.s32.totalorder %s457, %s459
      %p463 = scmp.eq.s32.totalorder %s33, 0
      %p464 = por %p462, %p463
      %p465 = scmp.ne.s32.totalorder %s457, %s459
      %p466 = scmp.eq.s32.totalorder %s38, 1
      %p467 = por %p465, %p466
      %p468 = scmp.ne.s32.totalorder %s459, %s460
      %p469 = scmp.eq.s32.totalorder %s38, 0
      %p470 = por %p468, %p469
      %p471 = scmp.ne.s32.totalorder %s459, %s460
      %p472 = scmp.eq.s32.totalorder %s39, 1
      %p473 = por %p471, %p472
      %p475 = scmp.ne.s32.totalorder %s460, %s474
      %p476 = scmp.eq.s32.totalorder %s39, 0
      %p477 = por %p475, %p476
      %s479 = sadd.s32 %s478, 1
      %p482 = scmp.eq.s32.totalorder %s33, 1
      %p483 = scmp.ne.s32.totalorder %s478, %s480
      %p484 = scmp.eq.s32.totalorder %s33, 0
      %p485 = por %p483, %p484
      %p486 = scmp.ne.s32.totalorder %s478, %s480
      %p487 = scmp.eq.s32.totalorder %s38, 1
      %p488 = por %p486, %p487
      %p489 = scmp.ne.s32.totalorder %s480, %s481
      %p490 = scmp.eq.s32.totalorder %s38, 0
      %p491 = por %p489, %p490
      %p492 = scmp.ne.s32.totalorder %s480, %s481
      %p493 = scmp.eq.s32.totalorder %s39, 1
      %p494 = por %p492, %p493
      %p496 = scmp.ne.s32.totalorder %s481, %s495
      %p497 = scmp.eq.s32.totalorder %s39, 0
      %p498 = por %p496, %p497
      %s500 = sadd.s32 %s499, 1
      %p503 = scmp.eq.s32.totalorder %s33, 1
      %p504 = scmp.ne.s32.totalorder %s499, %s501
      %p505 = scmp.eq.s32.totalorder %s33, 0
      %p506 = por %p504, %p505
      %p507 = scmp.ne.s32.totalorder %s499, %s501
      %p508 = scmp.eq.s32.totalorder %s38, 1
      %p509 = por %p507, %p508
      %p510 = scmp.ne.s32.totalorder %s501, %s502
      %p511 = scmp.eq.s32.totalorder %s38, 0
      %p512 = por %p510, %p511
      %p513 = scmp.ne.s32.totalorder %s501, %s502
      %p514 = scmp.eq.s32.totalorder %s39, 1
      %p515 = por %p513, %p514
      %p517 = scmp.ne.s32.totalorder %s502, %s516
      %p518 = scmp.eq.s32.totalorder %s39, 0
      %p519 = por %p517, %p518
      %p520 = scmp.le.s32.totalorder 1, %s33
      %p521 = scmp.lt.s32.totalorder %s33, 3
      %p522 = pnand %p520, %p521
      %p523 = pneg %p522
      // Predicated region
      $region9: #{_ppo_forward.1} parent=5 // pred_check
        _
      $region10: #{_ppo_forward.1} parent=5 // pred_check_branch
        %525 = sbr.rel (%p522) target = $region12
      $region11: #{_ppo_forward.1} parent=5 // pred_region
        %s526 = ssub.s32 %s33, 1
        // Predicated region
        $region13: #{_ppo_forward.1} parent=11 // pred_check
          %p527 = pneg %p66
        $region14: #{_ppo_forward.1} parent=11 // pred_check_branch
          %529 = sbr.rel (%p527) target = $region16
        $region15: #{_ppo_forward.1} parent=11 // pred_region
          _
        $region16: #{_ppo_forward.1} parent=11 // pred_fallthru
          _
        // Predicated region
        $region17: #{_ppo_forward.1} parent=11 // pred_check
          %p530 = pneg %p92
        $region18: #{_ppo_forward.1} parent=11 // pred_check_branch
          %532 = sbr.rel (%p530) target = $region20
        $region19: #{_ppo_forward.1} parent=11 // pred_region
          %p533 = scmp.lt.s32.totalorder %s43, 0
          %s534 = scalar_select %p533, %s43, 0
          %s535 = smul.addr %s534, 4
          %s536 = scalar_lea.vmem %s1, %s535
        $region20: #{_ppo_forward.1} parent=11 // pred_fallthru
          _
        // Predicated region
        $region21: #{_ppo_forward.1} parent=11 // pred_check
          %p537 = pneg %p113
        $region22: #{_ppo_forward.1} parent=11 // pred_check_branch
          %539 = sbr.rel (%p537) target = $region24
        $region23: #{_ppo_forward.1} parent=11 // pred_region
          _
        $region24: #{_ppo_forward.1} parent=11 // pred_fallthru
          _
        // Predicated region
        $region25: #{_ppo_forward.1} parent=11 // pred_check
          %p540 = pneg %p134
        $region26: #{_ppo_forward.1} parent=11 // pred_check_branch
          %542 = sbr.rel (%p540) target = $region28
        $region27: #{_ppo_forward.1} parent=11 // pred_region
          _
        $region28: #{_ppo_forward.1} parent=11 // pred_fallthru
          _
        // Predicated region
        $region29: #{_ppo_forward.1} parent=11 // pred_check
          %p543 = pneg %p155
        $region30: #{_ppo_forward.1} parent=11 // pred_check_branch
          %545 = sbr.rel (%p543) target = $region32
        $region31: #{_ppo_forward.1} parent=11 // pred_region
          _
        $region32: #{_ppo_forward.1} parent=11 // pred_fallthru
          _
        // Predicated region
        $region33: #{_ppo_forward.1} parent=11 // pred_check
          %p546 = pneg %p176
        $region34: #{_ppo_forward.1} parent=11 // pred_check_branch
          %548 = sbr.rel (%p546) target = $region36
        $region35: #{_ppo_forward.1} parent=11 // pred_region
          _
        $region36: #{_ppo_forward.1} parent=11 // pred_fallthru
          _
        // Predicated region
        $region37: #{_ppo_forward.1} parent=11 // pred_check
          %p549 = pneg %p197
        $region38: #{_ppo_forward.1} parent=11 // pred_check_branch
          %551 = sbr.rel (%p549) target = $region40
        $region39: #{_ppo_forward.1} parent=11 // pred_region
          _
        $region40: #{_ppo_forward.1} parent=11 // pred_fallthru
          _
        // Predicated region
        $region41: #{_ppo_forward.1} parent=11 // pred_check
          %p552 = pneg %p218
        $region42: #{_ppo_forward.1} parent=11 // pred_check_branch
          %554 = sbr.rel (%p552) target = $region44
        $region43: #{_ppo_forward.1} parent=11 // pred_region
          _
        $region44: #{_ppo_forward.1} parent=11 // pred_fallthru
          _
        // Predicated region
        $region45: #{_ppo_forward.1} parent=11 // pred_check
          %p555 = pneg %p239
        $region46: #{_ppo_forward.1} parent=11 // pred_check_branch
          %557 = sbr.rel (%p555) target = $region48
        $region47: #{_ppo_forward.1} parent=11 // pred_region
          _
        $region48: #{_ppo_forward.1} parent=11 // pred_fallthru
          _
        // Predicated region
        $region49: #{_ppo_forward.1} parent=11 // pred_check
          %p558 = pneg %p260
        $region50: #{_ppo_forward.1} parent=11 // pred_check_branch
          %560 = sbr.rel (%p558) target = $region52
        $region51: #{_ppo_forward.1} parent=11 // pred_region
          _
        $region52: #{_ppo_forward.1} parent=11 // pred_fallthru
          _
        // Predicated region
        $region53: #{_ppo_forward.1} parent=11 // pred_check
          %p561 = pneg %p281
        $region54: #{_ppo_forward.1} parent=11 // pred_check_branch
          %563 = sbr.rel (%p561) target = $region56
        $region55: #{_ppo_forward.1} parent=11 // pred_region
          _
        $region56: #{_ppo_forward.1} parent=11 // pred_fallthru
          _
        // Predicated region
        $region57: #{_ppo_forward.1} parent=11 // pred_check
          %p564 = pneg %p302
        $region58: #{_ppo_forward.1} parent=11 // pred_check_branch
          %566 = sbr.rel (%p564) target = $region60
        $region59: #{_ppo_forward.1} parent=11 // pred_region
          _
        $region60: #{_ppo_forward.1} parent=11 // pred_fallthru
          _
        // Predicated region
        $region61: #{_ppo_forward.1} parent=11 // pred_check
          %p567 = pneg %p323
        $region62: #{_ppo_forward.1} parent=11 // pred_check_branch
          %569 = sbr.rel (%p567) target = $region64
        $region63: #{_ppo_forward.1} parent=11 // pred_region
          _
        $region64: #{_ppo_forward.1} parent=11 // pred_fallthru
          _
        // Predicated region
        $region65: #{_ppo_forward.1} parent=11 // pred_check
          %p570 = pneg %p344
        $region66: #{_ppo_forward.1} parent=11 // pred_check_branch
          %572 = sbr.rel (%p570) target = $region68
        $region67: #{_ppo_forward.1} parent=11 // pred_region
          _
        $region68: #{_ppo_forward.1} parent=11 // pred_fallthru
          _
        // Predicated region
        $region69: #{_ppo_forward.1} parent=11 // pred_check
          %p573 = pneg %p365
        $region70: #{_ppo_forward.1} parent=11 // pred_check_branch
          %575 = sbr.rel (%p573) target = $region72
        $region71: #{_ppo_forward.1} parent=11 // pred_region
          _
        $region72: #{_ppo_forward.1} parent=11 // pred_fallthru
          _
        // Predicated region
        $region73: #{_ppo_forward.1} parent=11 // pred_check
          %p576 = pneg %p386
        $region74: #{_ppo_forward.1} parent=11 // pred_check_branch
          %578 = sbr.rel (%p576) target = $region76
        $region75: #{_ppo_forward.1} parent=11 // pred_region
          _
        $region76: #{_ppo_forward.1} parent=11 // pred_fallthru
          _
        // Predicated region
        $region77: #{_ppo_forward.1} parent=11 // pred_check
          %p579 = pneg %p407
        $region78: #{_ppo_forward.1} parent=11 // pred_check_branch
          %581 = sbr.rel (%p579) target = $region80
        $region79: #{_ppo_forward.1} parent=11 // pred_region
          _
        $region80: #{_ppo_forward.1} parent=11 // pred_fallthru
          _
        // Predicated region
        $region81: #{_ppo_forward.1} parent=11 // pred_check
          %p582 = pneg %p428
        $region82: #{_ppo_forward.1} parent=11 // pred_check_branch
          %584 = sbr.rel (%p582) target = $region84
        $region83: #{_ppo_forward.1} parent=11 // pred_region
          _
        $region84: #{_ppo_forward.1} parent=11 // pred_fallthru
          _
        // Predicated region
        $region85: #{_ppo_forward.1} parent=11 // pred_check
          %p585 = pneg %p449
        $region86: #{_ppo_forward.1} parent=11 // pred_check_branch
          %587 = sbr.rel (%p585) target = $region88
        $region87: #{_ppo_forward.1} parent=11 // pred_region
          _
        $region88: #{_ppo_forward.1} parent=11 // pred_fallthru
          _
        // Predicated region
        $region89: #{_ppo_forward.1} parent=11 // pred_check
          %p588 = pneg %p470
        $region90: #{_ppo_forward.1} parent=11 // pred_check_branch
          %590 = sbr.rel (%p588) target = $region92
        $region91: #{_ppo_forward.1} parent=11 // pred_region
          _
        $region92: #{_ppo_forward.1} parent=11 // pred_fallthru
          _
      $region12: #{_ppo_forward.1} parent=5 // pred_fallthru
        _
      %p591 = scmp.lt.s32.totalorder %s33, 2
      // Predicated region
      $region93: #{_ppo_forward.1} parent=5 // pred_check
        %p592 = pneg %p591
      $region94: #{_ppo_forward.1} parent=5 // pred_check_branch
        %594 = sbr.rel (%p592) target = $region96
      $region95: #{_ppo_forward.1} parent=5 // pred_region
        _
      $region96: #{_ppo_forward.1} parent=5 // pred_fallthru
        _
      %p595 = scmp.le.s32.totalorder 1, %s33
      %p596 = scmp.lt.s32.totalorder %s33, 3
      %p597 = pnand %p595, %p596
      %p598 = pneg %p597
      // Predicated region
      $region97: #{_ppo_forward.1} parent=5 // pred_check
        _
      $region98: #{_ppo_forward.1} parent=5 // pred_check_branch
        %600 = sbr.rel (%p597) target = $region100
      $region99: #{_ppo_forward.1} parent=5 // pred_region
        %s601 = ssub.s32 %s33, 1
        %p602 = pneg %p66
        %p603 = pneg %p63
        %p604 = scmp.lt.s32.totalorder %s43, 0
        %s605 = scalar_select %p604, %s43, 0
        %s606 = smul.addr %s605, 4
        %s607 = scalar_lea.vmem %s1, %s606
        %p608 = pneg %p92
        %p609 = pneg %p89
        %p610 = pneg %p113
        %p611 = pneg %p110
        %p612 = pneg %p134
        %p613 = pneg %p131
        %p614 = pneg %p155
        %p615 = pneg %p152
        %p616 = pneg %p176
        %p617 = pneg %p173
        %p618 = pneg %p197
        %p619 = pneg %p194
        %p620 = pneg %p218
        %p621 = pneg %p215
        %p622 = pneg %p239
        %p623 = pneg %p236
        %p624 = pneg %p260
        %p625 = pneg %p257
        %p626 = pneg %p281
        %p627 = pneg %p278
        %p628 = pneg %p302
        %p629 = pneg %p299
        %p630 = pneg %p323
        %p631 = pneg %p320
        %p632 = pneg %p344
        %p633 = pneg %p341
        %p634 = pneg %p365
        %p635 = pneg %p362
        %p636 = pneg %p386
        %p637 = pneg %p383
        %p638 = pneg %p407
        %p639 = pneg %p404
        %p640 = pneg %p428
        %p641 = pneg %p425
        %p642 = pneg %p449
        %p643 = pneg %p446
        %p644 = pneg %p470
        %p645 = pneg %p467
        %p646 = pneg %p491
        %p647 = pneg %p488
        %p648 = pneg %p512
        %p649 = pneg %p509
        %p650 = scmp.lt.s32.totalorder %s43, 0
        %s651 = scalar_select %p650, %s43, 0
        %s652 = smul.addr %s651, 4
        %s653 = scalar_lea.vmem %s1, %s652
        %p655 = scmp.eq.s32.totalorder %s42, 0
        %p656 = scmp.eq.s32.totalorder %s43, 0
        %p657 = pnand %p655, %p656
        %p658 = pneg %p657
        // Predicated region
        $region101: #{_ppo_forward.1} parent=99 // pred_check
          _
        $region102: #{_ppo_forward.1} parent=99 // pred_check_branch
          %660 = sbr.rel (%p657) target = $region104
        $region103: #{_ppo_forward.1} parent=99 // pred_region
          %v661 = vld [vmem:[%s6] sm:$0x1]
          %v662 = vmax.f32 %v661, 0.0
          %v663 = vld [vmem:[%s5] sm:$0xff]
          %v664 = vld [vmem:[%s5 + $0x8] sm:$0xff]
          %v665 = vld [vmem:[%s5 + $0x10] sm:$0xff]
          %v666 = vld [vmem:[%s5 + $0x18] sm:$0xff]
          %v667 = vld [vmem:[%s5 + $0x20] sm:$0xff]
          %v668 = vld [vmem:[%s5 + $0x28] sm:$0xff]
          %v669 = vld [vmem:[%s5 + $0x30] sm:$0xff]
          %v670 = vld [vmem:[%s5 + $0x38] sm:$0xff]
          %v671 = vld [vmem:[%s5 + $0x40] sm:$0xff]
          %v672 = vld [vmem:[%s5 + $0x48] sm:$0xff]
          %v673 = vld [vmem:[%s5 + $0x50] sm:$0xff]
          %v674 = vld [vmem:[%s5 + $0x58] sm:$0xff]
          %v675 = vld [vmem:[%s5 + $0x60] sm:$0xff]
          %v676 = vld [vmem:[%s5 + $0x68] sm:$0xff]
          %v677 = vld [vmem:[%s5 + $0x70] sm:$0xff]
          %v678 = vld [vmem:[%s5 + $0x78] sm:$0xff]
          %679 = vmatprep.subr.mxu0 0.0
          %680 = vmatpush1.msra.mxu0 %v663
          %681 = vmatprep.subr.mxu0 0.0
          %682 = vmatpush1.msra.mxu0 %v664
          %683 = vmatprep.subr.mxu0 0.0
          %684 = vmatpush1.msra.mxu0 %v665
          %685 = vmatprep.subr.mxu0 0.0
          %686 = vmatpush1.msra.mxu0 %v666
          %687 = vmatprep.subr.mxu0 0.0
          %688 = vmatpush1.msra.mxu0 %v667
          %689 = vmatprep.subr.mxu0 0.0
          %690 = vmatpush1.msra.mxu0 %v668
          %691 = vmatprep.subr.mxu0 0.0
          %692 = vmatpush1.msra.mxu0 %v669
          %693 = vmatprep.subr.mxu0 0.0
          %694 = vmatpush1.msra.mxu0 %v670
          %695 = vmatprep.subr.mxu0 0.0
          %696 = vmatpush1.msra.mxu0 %v671
          %697 = vmatprep.subr.mxu0 0.0
          %698 = vmatpush1.msra.mxu0 %v672
          %699 = vmatprep.subr.mxu0 0.0
          %700 = vmatpush1.msra.mxu0 %v673
          %701 = vmatprep.subr.mxu0 0.0
          %702 = vmatpush1.msra.mxu0 %v674
          %703 = vmatprep.subr.mxu0 0.0
          %704 = vmatpush1.msra.mxu0 %v675
          %705 = vmatprep.subr.mxu0 0.0
          %706 = vmatpush1.msra.mxu0 %v676
          %707 = vmatprep.subr.mxu0 0.0
          %708 = vmatpush1.msra.mxu0 %v677
          %709 = vmatprep.subr.mxu0 0.0
          %710 = vmatpush1.msra.mxu0 %v678
          %711 = vmatprep.subr.mxu0 0.0
          %712 = vmatpush1.msra.mxu0 0.0
          %713 = vmatprep.subr.mxu0 0.0
          %714 = vmatpush1.msra.mxu0 0.0
          %715 = vmatprep.subr.mxu0 0.0
          %716 = vmatpush1.msra.mxu0 0.0
          %717 = vmatprep.subr.mxu0 0.0
          %718 = vmatpush1.msra.mxu0 0.0
          %719 = vmatprep.subr.mxu0 0.0
          %720 = vmatpush1.msra.mxu0 0.0
          %721 = vmatprep.subr.mxu0 0.0
          %722 = vmatpush1.msra.mxu0 0.0
          %723 = vmatprep.subr.mxu0 0.0
          %724 = vmatpush1.msra.mxu0 0.0
          %725 = vmatprep.subr.mxu0 0.0
          %726 = vmatpush1.msra.mxu0 0.0
          %727 = vmatprep.subr.mxu0 0.0
          %728 = vmatpush1.msra.mxu0 0.0
          %729 = vmatprep.subr.mxu0 0.0
          %730 = vmatpush1.msra.mxu0 0.0
          %731 = vmatprep.subr.mxu0 0.0
          %732 = vmatpush1.msra.mxu0 0.0
          %733 = vmatprep.subr.mxu0 0.0
          %734 = vmatpush1.msra.mxu0 0.0
          %735 = vmatprep.subr.mxu0 0.0
          %736 = vmatpush1.msra.mxu0 0.0
          %737 = vmatprep.subr.mxu0 0.0
          %738 = vmatpush1.msra.mxu0 0.0
          %739 = vmatprep.subr.mxu0 0.0
          %740 = vmatpush1.msra.mxu0 0.0
          %741 = vmatprep.subr.mxu0 0.0
          %742 = vmatpush1.msra.mxu0 0.0
          %743 = vmatprep.mubr.f32.mxu0 0.0
          %744 = vmatmul.mubr.f32.gmra.mrb[0].mxu0 %v662
          %v745 = vpop.f32.mrb[0].mxu0
          %v746 = vadd.f32 0.0, %v745
          %v747 = vpop.f32.mrb[0].mxu0
          %748 = vdwg.mxu0
          %v749 = vld [vmem:[%s0] sm:$0xff]
          %v750 = vld [vmem:[%s0 + $0x8] sm:$0xff]
          %v751 = vld [vmem:[%s0 + $0x10] sm:$0xff]
          %v752 = vld [vmem:[%s0 + $0x18] sm:$0xff]
          %v753 = vld [vmem:[%s0 + $0x20] sm:$0xff]
          %v754 = vld [vmem:[%s0 + $0x28] sm:$0xff]
          %v755 = vld [vmem:[%s0 + $0x30] sm:$0xff]
          %v756 = vld [vmem:[%s0 + $0x38] sm:$0xff]
          %v757 = vld [vmem:[%s0 + $0x40] sm:$0xff]
          %v758 = vld [vmem:[%s0 + $0x48] sm:$0xff]
          %v759 = vld [vmem:[%s0 + $0x50] sm:$0xff]
          %v760 = vld [vmem:[%s0 + $0x58] sm:$0xff]
          %v761 = vld [vmem:[%s0 + $0x60] sm:$0xff]
          %v762 = vld [vmem:[%s0 + $0x68] sm:$0xff]
          %v763 = vld [vmem:[%s0 + $0x70] sm:$0xff]
          %v764 = vld [vmem:[%s0 + $0x78] sm:$0xff]
          %v765 = vld [vmem:[%s3] sm:$0xf]
          %v766 = vld [vmem:[%s2] sm:$0xff]
          %v767 = vld [vmem:[%s2 + $0x8] sm:$0xff]
          %v768 = vld [vmem:[%s2 + $0x10] sm:$0xff]
          %v769 = vld [vmem:[%s2 + $0x18] sm:$0xff]
          %v770 = vld [vmem:[%s2 + $0x20] sm:$0xff]
          %v771 = vld [vmem:[%s2 + $0x28] sm:$0xff]
          %v772 = vld [vmem:[%s2 + $0x30] sm:$0xff]
          %v773 = vld [vmem:[%s2 + $0x38] sm:$0xff]
          %v774 = vld [vmem:[%s2 + $0x40] sm:$0xff]
          %v775 = vld [vmem:[%s2 + $0x48] sm:$0xff]
          %v776 = vld [vmem:[%s2 + $0x50] sm:$0xff]
          %v777 = vld [vmem:[%s2 + $0x58] sm:$0xff]
          %v778 = vld [vmem:[%s2 + $0x60] sm:$0xff]
          %v779 = vld [vmem:[%s2 + $0x68] sm:$0xff]
          %v780 = vld [vmem:[%s2 + $0x70] sm:$0xff]
          %v781 = vld [vmem:[%s2 + $0x78] sm:$0xff]
          %783 = vset.pattern.permute.xlu0 0
          %784 = vperm.xlu0 %783, %v766
          %v785 = vpop.permute.xlu0 %784
          %788 = vset.pattern.permute.xlu0 0
          %789 = vperm.xlu0 %788, %v767
          %v790 = vpop.permute.xlu0 %789
          %793 = vset.pattern.permute.xlu0 0
          %794 = vperm.xlu0 %793, %v768
          %v795 = vpop.permute.xlu0 %794
          %798 = vset.pattern.permute.xlu0 0
          %799 = vperm.xlu0 %798, %v769
          %v800 = vpop.permute.xlu0 %799
          %803 = vset.pattern.permute.xlu0 0
          %804 = vperm.xlu0 %803, %v770
          %v805 = vpop.permute.xlu0 %804
          %808 = vset.pattern.permute.xlu0 0
          %809 = vperm.xlu0 %808, %v771
          %v810 = vpop.permute.xlu0 %809
          %813 = vset.pattern.permute.xlu0 0
          %814 = vperm.xlu0 %813, %v772
          %v815 = vpop.permute.xlu0 %814
          %818 = vset.pattern.permute.xlu0 0
          %819 = vperm.xlu0 %818, %v773
          %v820 = vpop.permute.xlu0 %819
          %823 = vset.pattern.permute.xlu0 0
          %824 = vperm.xlu0 %823, %v774
          %v825 = vpop.permute.xlu0 %824
          %828 = vset.pattern.permute.xlu0 0
          %829 = vperm.xlu0 %828, %v775
          %v830 = vpop.permute.xlu0 %829
          %833 = vset.pattern.permute.xlu0 0
          %834 = vperm.xlu0 %833, %v776
          %v835 = vpop.permute.xlu0 %834
          %838 = vset.pattern.permute.xlu0 0
          %839 = vperm.xlu0 %838, %v777
          %v840 = vpop.permute.xlu0 %839
          %843 = vset.pattern.permute.xlu0 0
          %844 = vperm.xlu0 %843, %v778
          %v845 = vpop.permute.xlu0 %844
          %848 = vset.pattern.permute.xlu0 0
          %849 = vperm.xlu0 %848, %v779
          %v850 = vpop.permute.xlu0 %849
          %853 = vset.pattern.permute.xlu0 0
          %854 = vperm.xlu0 %853, %v780
          %v855 = vpop.permute.xlu0 %854
          %858 = vset.pattern.permute.xlu0 0
          %859 = vperm.xlu0 %858, %v781
          %v860 = vpop.permute.xlu0 %859
          %v862 = vlaneseq
          %v863 = vshrl.u32 %v862, 7
          %v864 = vsub.s32 0, %v863
          %v865 = vrot.slane %v746, %v864
          %v866 = vmul.f32 %v785, %v865
          %v867 = vmul.f32 %v790, %v865
          %v868 = vmul.f32 %v795, %v865
          %v869 = vmul.f32 %v800, %v865
          %v870 = vmul.f32 %v805, %v865
          %v871 = vmul.f32 %v810, %v865
          %v872 = vmul.f32 %v815, %v865
          %v873 = vmul.f32 %v820, %v865
          %v874 = vmul.f32 %v825, %v865
          %v875 = vmul.f32 %v830, %v865
          %v876 = vmul.f32 %v835, %v865
          %v877 = vmul.f32 %v840, %v865
          %v878 = vmul.f32 %v845, %v865
          %v879 = vmul.f32 %v850, %v865
          %v880 = vmul.f32 %v855, %v865
          %v881 = vmul.f32 %v860, %v865
          %vm882 = vcmask 31744
          %v884 = vsel %vm882, %v749, 0
          %v887 = vsel %vm882, %v750, 0
          %v890 = vsel %vm882, %v751, 0
          %v893 = vsel %vm882, %v752, 0
          %v896 = vsel %vm882, %v753, 0
          %v899 = vsel %vm882, %v754, 0
          %v902 = vsel %vm882, %v755, 0
          %v905 = vsel %vm882, %v756, 0
          %v908 = vsel %vm882, %v757, 0
          %v911 = vsel %vm882, %v758, 0
          %v914 = vsel %vm882, %v759, 0
          %v917 = vsel %vm882, %v760, 0
          %v920 = vsel %vm882, %v761, 0
          %v923 = vsel %vm882, %v762, 0
          %v926 = vsel %vm882, %v763, 0
          %v929 = vsel %vm882, %v764, 0
          %vm931 = vcmask 1043456
          %v933 = vsel %vm931, %v765, 0
          %935 = vmatprep.subr.mxu0 0.0
          %936 = vmatpush1.msra.mxu0 %v933
          %937 = vmatprep.subr.mxu0 0.0
          %938 = vmatpush1.msra.mxu0 0.0
          %939 = vmatprep.subr.mxu0 0.0
          %940 = vmatpush1.msra.mxu0 0.0
          %941 = vmatprep.subr.mxu0 0.0
          %942 = vmatpush1.msra.mxu0 0.0
          %943 = vmatprep.subr.mxu0 0.0
          %944 = vmatpush1.msra.mxu0 0.0
          %945 = vmatprep.subr.mxu0 0.0
          %946 = vmatpush1.msra.mxu0 0.0
          %947 = vmatprep.subr.mxu0 0.0
          %948 = vmatpush1.msra.mxu0 0.0
          %949 = vmatprep.subr.mxu0 0.0
          %950 = vmatpush1.msra.mxu0 0.0
          %951 = vmatprep.subr.mxu0 0.0
          %952 = vmatpush1.msra.mxu0 0.0
          %953 = vmatprep.subr.mxu0 0.0
          %954 = vmatpush1.msra.mxu0 0.0
          %955 = vmatprep.subr.mxu0 0.0
          %956 = vmatpush1.msra.mxu0 0.0
          %957 = vmatprep.subr.mxu0 0.0
          %958 = vmatpush1.msra.mxu0 0.0
          %959 = vmatprep.subr.mxu0 0.0
          %960 = vmatpush1.msra.mxu0 0.0
          %961 = vmatprep.subr.mxu0 0.0
          %962 = vmatpush1.msra.mxu0 0.0
          %963 = vmatprep.subr.mxu0 0.0
          %964 = vmatpush1.msra.mxu0 0.0
          %965 = vmatprep.subr.mxu0 0.0
          %966 = vmatpush1.msra.mxu0 0.0
          %967 = vmatprep.subr.mxu0 0.0
          %968 = vmatpush1.msra.mxu0 0.0
          %969 = vmatprep.subr.mxu0 0.0
          %970 = vmatpush1.msra.mxu0 0.0
          %971 = vmatprep.subr.mxu0 0.0
          %972 = vmatpush1.msra.mxu0 0.0
          %973 = vmatprep.subr.mxu0 0.0
          %974 = vmatpush1.msra.mxu0 0.0
          %975 = vmatprep.subr.mxu0 0.0
          %976 = vmatpush1.msra.mxu0 0.0
          %977 = vmatprep.subr.mxu0 0.0
          %978 = vmatpush1.msra.mxu0 0.0
          %979 = vmatprep.subr.mxu0 0.0
          %980 = vmatpush1.msra.mxu0 0.0
          %981 = vmatprep.subr.mxu0 0.0
          %982 = vmatpush1.msra.mxu0 0.0
          %983 = vmatprep.subr.mxu0 0.0
          %984 = vmatpush1.msra.mxu0 0.0
          %985 = vmatprep.subr.mxu0 0.0
          %986 = vmatpush1.msra.mxu0 0.0
          %987 = vmatprep.subr.mxu0 0.0
          %988 = vmatpush1.msra.mxu0 0.0
          %989 = vmatprep.subr.mxu0 0.0
          %990 = vmatpush1.msra.mxu0 0.0
          %991 = vmatprep.subr.mxu0 0.0
          %992 = vmatpush1.msra.mxu0 0.0
          %993 = vmatprep.subr.mxu0 0.0
          %994 = vmatpush1.msra.mxu0 0.0
          %995 = vmatprep.subr.mxu0 0.0
          %996 = vmatpush1.msra.mxu0 0.0
          %997 = vmatprep.subr.mxu0 0.0
          %998 = vmatpush1.msra.mxu0 0.0
          %999 = vmatprep.mubr.f32.mxu0 0.0
          %1000 = vmatmul.mubr.f32.gmra.mrb[0].mxu0 %v884
          %v1001 = vpop.f32.mrb[0].mxu0
          %v1002 = vadd.f32 %v866, %v1001
          %v1003 = vpop.f32.mrb[0].mxu0
          %1004 = vmatprep.mubr.f32.mxu0 0.0
          %1005 = vmatmul.mubr.f32.gmra.mrb[0].mxu0 %v887
          %v1006 = vpop.f32.mrb[0].mxu0
          %v1007 = vadd.f32 %v867, %v1006
          %v1008 = vpop.f32.mrb[0].mxu0
          %1009 = vmatprep.mubr.f32.mxu0 0.0
          %1010 = vmatmul.mubr.f32.gmra.mrb[0].mxu0 %v890
          %v1011 = vpop.f32.mrb[0].mxu0
          %v1012 = vadd.f32 %v868, %v1011
          %v1013 = vpop.f32.mrb[0].mxu0
          %1014 = vmatprep.mubr.f32.mxu0 0.0
          %1015 = vmatmul.mubr.f32.gmra.mrb[0].mxu0 %v893
          %v1016 = vpop.f32.mrb[0].mxu0
          %v1017 = vadd.f32 %v869, %v1016
          %v1018 = vpop.f32.mrb[0].mxu0
          %1019 = vmatprep.mubr.f32.mxu0 0.0
          %1020 = vmatmul.mubr.f32.gmra.mrb[0].mxu0 %v896
          %v1021 = vpop.f32.mrb[0].mxu0
          %v1022 = vadd.f32 %v870, %v1021
          %v1023 = vpop.f32.mrb[0].mxu0
          %1024 = vmatprep.mubr.f32.mxu0 0.0
          %1025 = vmatmul.mubr.f32.gmra.mrb[0].mxu0 %v899
          %v1026 = vpop.f32.mrb[0].mxu0
          %v1027 = vadd.f32 %v871, %v1026
          %v1028 = vpop.f32.mrb[0].mxu0
          %1029 = vmatprep.mubr.f32.mxu0 0.0
          %1030 = vmatmul.mubr.f32.gmra.mrb[0].mxu0 %v902
          %v1031 = vpop.f32.mrb[0].mxu0
          %v1032 = vadd.f32 %v872, %v1031
          %v1033 = vpop.f32.mrb[0].mxu0
          %1034 = vmatprep.mubr.f32.mxu0 0.0
          %1035 = vmatmul.mubr.f32.gmra.mrb[0].mxu0 %v905
          %v1036 = vpop.f32.mrb[0].mxu0
          %v1037 = vadd.f32 %v873, %v1036
          %v1038 = vpop.f32.mrb[0].mxu0
          %1039 = vmatprep.mubr.f32.mxu0 0.0
          %1040 = vmatmul.mubr.f32.gmra.mrb[0].mxu0 %v908
          %v1041 = vpop.f32.mrb[0].mxu0
          %v1042 = vadd.f32 %v874, %v1041
          %v1043 = vpop.f32.mrb[0].mxu0
          %1044 = vmatprep.mubr.f32.mxu0 0.0
          %1045 = vmatmul.mubr.f32.gmra.mrb[0].mxu0 %v911
          %v1046 = vpop.f32.mrb[0].mxu0
          %v1047 = vadd.f32 %v875, %v1046
          %v1048 = vpop.f32.mrb[0].mxu0
          %1049 = vmatprep.mubr.f32.mxu0 0.0
          %1050 = vmatmul.mubr.f32.gmra.mrb[0].mxu0 %v914
          %v1051 = vpop.f32.mrb[0].mxu0
          %v1052 = vadd.f32 %v876, %v1051
          %v1053 = vpop.f32.mrb[0].mxu0
          %1054 = vmatprep.mubr.f32.mxu0 0.0
          %1055 = vmatmul.mubr.f32.gmra.mrb[0].mxu0 %v917
          %v1056 = vpop.f32.mrb[0].mxu0
          %v1057 = vadd.f32 %v877, %v1056
          %v1058 = vpop.f32.mrb[0].mxu0
          %1059 = vmatprep.mubr.f32.mxu0 0.0
          %1060 = vmatmul.mubr.f32.gmra.mrb[0].mxu0 %v920
          %v1061 = vpop.f32.mrb[0].mxu0
          %v1062 = vadd.f32 %v878, %v1061
          %v1063 = vpop.f32.mrb[0].mxu0
          %1064 = vmatprep.mubr.f32.mxu0 0.0
          %1065 = vmatmul.mubr.f32.gmra.mrb[0].mxu0 %v923
          %v1066 = vpop.f32.mrb[0].mxu0
          %v1067 = vadd.f32 %v879, %v1066
          %v1068 = vpop.f32.mrb[0].mxu0
          %1069 = vmatprep.mubr.f32.mxu0 0.0
          %1070 = vmatmul.mubr.f32.gmra.mrb[0].mxu0 %v926
          %v1071 = vpop.f32.mrb[0].mxu0
          %v1072 = vadd.f32 %v880, %v1071
          %v1073 = vpop.f32.mrb[0].mxu0
          %1074 = vmatprep.mubr.f32.mxu0 0.0
          %1075 = vmatmul.mubr.f32.gmra.mrb[0].mxu0 %v929
          %v1076 = vpop.f32.mrb[0].mxu0
          %v1077 = vadd.f32 %v881, %v1076
          %v1078 = vpop.f32.mrb[0].mxu0
          %1079 = vdwg.mxu0
          %v1080 = vmax.f32 %v1002, 0.0
          %v1081 = vmax.f32 %v1007, 0.0
          %v1082 = vmax.f32 %v1012, 0.0
          %v1083 = vmax.f32 %v1017, 0.0
          %v1084 = vmax.f32 %v1022, 0.0
          %v1085 = vmax.f32 %v1027, 0.0
          %v1086 = vmax.f32 %v1032, 0.0
          %v1087 = vmax.f32 %v1037, 0.0
          %v1088 = vmax.f32 %v1042, 0.0
          %v1089 = vmax.f32 %v1047, 0.0
          %v1090 = vmax.f32 %v1052, 0.0
          %v1091 = vmax.f32 %v1057, 0.0
          %v1092 = vmax.f32 %v1062, 0.0
          %v1093 = vmax.f32 %v1067, 0.0
          %v1094 = vmax.f32 %v1072, 0.0
          %v1095 = vmax.f32 %v1077, 0.0
          %1096 = vst [vmem:[#allocation2] sm:$0xff] %v1080
          %1097 = vst [vmem:[#allocation2 + $0x8] sm:$0xff] %v1081
          %1098 = vst [vmem:[#allocation2 + $0x10] sm:$0xff] %v1082
          %1099 = vst [vmem:[#allocation2 + $0x18] sm:$0xff] %v1083
          %1100 = vst [vmem:[#allocation2 + $0x20] sm:$0xff] %v1084
          %1101 = vst [vmem:[#allocation2 + $0x28] sm:$0xff] %v1085
          %1102 = vst [vmem:[#allocation2 + $0x30] sm:$0xff] %v1086
          %1103 = vst [vmem:[#allocation2 + $0x38] sm:$0xff] %v1087
          %1104 = vst [vmem:[#allocation2 + $0x40] sm:$0xff] %v1088
          %1105 = vst [vmem:[#allocation2 + $0x48] sm:$0xff] %v1089
          %1106 = vst [vmem:[#allocation2 + $0x50] sm:$0xff] %v1090
          %1107 = vst [vmem:[#allocation2 + $0x58] sm:$0xff] %v1091
          %1108 = vst [vmem:[#allocation2 + $0x60] sm:$0xff] %v1092
          %1109 = vst [vmem:[#allocation2 + $0x68] sm:$0xff] %v1093
          %1110 = vst [vmem:[#allocation2 + $0x70] sm:$0xff] %v1094
          %1111 = vst [vmem:[#allocation2 + $0x78] sm:$0xff] %v1095
        $region104: #{_ppo_forward.1} parent=99 // pred_fallthru
          _
        %s1112 = sadd.s32 %s42, 1
        // Predicated region
        $region105: #{_ppo_forward.1} parent=99 // pred_check
          %p1113 = pneg %p656
        $region106: #{_ppo_forward.1} parent=99 // pred_check_branch
          %1115 = sbr.rel (%p1113) target = $region108
        $region107: #{_ppo_forward.1} parent=99 // pred_region
          %1116 = vst [vmem:[#allocation3] sm:$0xff] 0.0
          %1117 = vst [vmem:[#allocation3 + $0x8] sm:$0xff] 0.0
          %1118 = vst [vmem:[#allocation3 + $0x10] sm:$0xff] 0.0
          %1119 = vst [vmem:[#allocation3 + $0x18] sm:$0xff] 0.0
          %1120 = vst [vmem:[#allocation3 + $0x20] sm:$0xff] 0.0
          %1121 = vst [vmem:[#allocation3 + $0x28] sm:$0xff] 0.0
          %1122 = vst [vmem:[#allocation3 + $0x30] sm:$0xff] 0.0
          %1123 = vst [vmem:[#allocation3 + $0x38] sm:$0xff] 0.0
          %1124 = vst [vmem:[#allocation3 + $0x40] sm:$0xff] 0.0
          %1125 = vst [vmem:[#allocation3 + $0x48] sm:$0xff] 0.0
          %1126 = vst [vmem:[#allocation3 + $0x50] sm:$0xff] 0.0
          %1127 = vst [vmem:[#allocation3 + $0x58] sm:$0xff] 0.0
          %1128 = vst [vmem:[#allocation3 + $0x60] sm:$0xff] 0.0
          %1129 = vst [vmem:[#allocation3 + $0x68] sm:$0xff] 0.0
          %1130 = vst [vmem:[#allocation3 + $0x70] sm:$0xff] 0.0
          %1131 = vst [vmem:[#allocation3 + $0x78] sm:$0xff] 0.0
        $region108: #{_ppo_forward.1} parent=99 // pred_fallthru
          _
        %v1132 = vld [vmem:[#allocation2] sm:$0xff]
        %v1133 = vld [vmem:[#allocation2 + $0x8] sm:$0xff]
        %v1134 = vld [vmem:[#allocation2 + $0x10] sm:$0xff]
        %v1135 = vld [vmem:[#allocation2 + $0x18] sm:$0xff]
        %v1136 = vld [vmem:[#allocation2 + $0x20] sm:$0xff]
        %v1137 = vld [vmem:[#allocation2 + $0x28] sm:$0xff]
        %v1138 = vld [vmem:[#allocation2 + $0x30] sm:$0xff]
        %v1139 = vld [vmem:[#allocation2 + $0x38] sm:$0xff]
        %v1140 = vld [vmem:[#allocation2 + $0x40] sm:$0xff]
        %v1141 = vld [vmem:[#allocation2 + $0x48] sm:$0xff]
        %v1142 = vld [vmem:[#allocation2 + $0x50] sm:$0xff]
        %v1143 = vld [vmem:[#allocation2 + $0x58] sm:$0xff]
        %v1144 = vld [vmem:[#allocation2 + $0x60] sm:$0xff]
        %v1145 = vld [vmem:[#allocation2 + $0x68] sm:$0xff]
        %v1146 = vld [vmem:[#allocation2 + $0x70] sm:$0xff]
        %v1147 = vld [vmem:[#allocation2 + $0x78] sm:$0xff]
        %v1148 = vld [vmem:[#allocation3] sm:$0xff]
        %v1149 = vld [vmem:[#allocation3 + $0x8] sm:$0xff]
        %v1150 = vld [vmem:[#allocation3 + $0x10] sm:$0xff]
        %v1151 = vld [vmem:[#allocation3 + $0x18] sm:$0xff]
        %v1152 = vld [vmem:[#allocation3 + $0x20] sm:$0xff]
        %v1153 = vld [vmem:[#allocation3 + $0x28] sm:$0xff]
        %v1154 = vld [vmem:[#allocation3 + $0x30] sm:$0xff]
        %v1155 = vld [vmem:[#allocation3 + $0x38] sm:$0xff]
        %v1156 = vld [vmem:[#allocation3 + $0x40] sm:$0xff]
        %v1157 = vld [vmem:[#allocation3 + $0x48] sm:$0xff]
        %v1158 = vld [vmem:[#allocation3 + $0x50] sm:$0xff]
        %v1159 = vld [vmem:[#allocation3 + $0x58] sm:$0xff]
        %v1160 = vld [vmem:[#allocation3 + $0x60] sm:$0xff]
        %v1161 = vld [vmem:[#allocation3 + $0x68] sm:$0xff]
        %v1162 = vld [vmem:[#allocation3 + $0x70] sm:$0xff]
        %v1163 = vld [vmem:[#allocation3 + $0x78] sm:$0xff]
        %v1164 = vld [vmem:[%s653] sm:$0xf]
        %v1165 = vld [vmem:[%s653 + $0x4] sm:$0xf]
        %v1166 = vld [vmem:[%s653 + $0x8] sm:$0xf]
        %v1167 = vld [vmem:[%s653 + $0xc] sm:$0xf]
        %v1168 = vld [vmem:[%s653 + $0x10] sm:$0xf]
        %v1169 = vld [vmem:[%s653 + $0x14] sm:$0xf]
        %v1170 = vld [vmem:[%s653 + $0x18] sm:$0xf]
        %v1171 = vld [vmem:[%s653 + $0x1c] sm:$0xf]
        %v1172 = vld [vmem:[%s653 + $0x20] sm:$0xf]
        %v1173 = vld [vmem:[%s653 + $0x24] sm:$0xf]
        %v1174 = vld [vmem:[%s653 + $0x28] sm:$0xf]
        %v1175 = vld [vmem:[%s653 + $0x2c] sm:$0xf]
        %v1176 = vld [vmem:[%s653 + $0x30] sm:$0xf]
        %v1177 = vld [vmem:[%s653 + $0x34] sm:$0xf]
        %v1178 = vld [vmem:[%s653 + $0x38] sm:$0xf]
        %v1179 = vld [vmem:[%s653 + $0x3c] sm:$0xf]
        %v1180 = vpack.c.bf16 %v1133, %v1132
        %v1181 = vpack.c.bf16 %v1135, %v1134
        %v1182 = vpack.c.bf16 %v1137, %v1136
        %v1183 = vpack.c.bf16 %v1139, %v1138
        %v1184 = vpack.c.bf16 %v1141, %v1140
        %v1185 = vpack.c.bf16 %v1143, %v1142
        %v1186 = vpack.c.bf16 %v1145, %v1144
        %v1187 = vpack.c.bf16 %v1147, %v1146
        %v1204 = vunpack.c.l.b16 %v1164
        %v1205 = vunpack.c.l.b16 %v1165
        %v1206 = vunpack.c.l.b16 %v1166
        %v1207 = vunpack.c.l.b16 %v1167
        %v1208 = vunpack.c.l.b16 %v1168
        %v1209 = vunpack.c.l.b16 %v1169
        %v1210 = vunpack.c.l.b16 %v1170
        %v1211 = vunpack.c.l.b16 %v1171
        %v1212 = vunpack.c.l.b16 %v1172
        %v1213 = vunpack.c.l.b16 %v1173
        %v1214 = vunpack.c.l.b16 %v1174
        %v1215 = vunpack.c.l.b16 %v1175
        %v1216 = vunpack.c.l.b16 %v1176
        %v1217 = vunpack.c.l.b16 %v1177
        %v1218 = vunpack.c.l.b16 %v1178
        %v1219 = vunpack.c.l.b16 %v1179
        %v1220 = vpack.c.b16 %v1205, %v1204
        %v1221 = vpack.c.b16 %v1207, %v1206
        %v1222 = vpack.c.b16 %v1209, %v1208
        %v1223 = vpack.c.b16 %v1211, %v1210
        %v1224 = vpack.c.b16 %v1213, %v1212
        %v1225 = vpack.c.b16 %v1215, %v1214
        %v1226 = vpack.c.b16 %v1217, %v1216
        %v1227 = vpack.c.b16 %v1219, %v1218
        %1236 = vmatprep.subr.bf16.mxu0 0
        %1237 = vmatpush1.bf16.msra.mxu0 %v1180
        %1238 = vmatprep.subr.bf16.mxu0 0
        %1239 = vmatpush1.bf16.msra.mxu0 %v1181
        %1240 = vmatprep.subr.bf16.mxu0 0
        %1241 = vmatpush1.bf16.msra.mxu0 %v1182
        %1242 = vmatprep.subr.bf16.mxu0 0
        %1243 = vmatpush1.bf16.msra.mxu0 %v1183
        %1244 = vmatprep.subr.bf16.mxu0 0
        %1245 = vmatpush1.bf16.msra.mxu0 %v1184
        %1246 = vmatprep.subr.bf16.mxu0 0
        %1247 = vmatpush1.bf16.msra.mxu0 %v1185
        %1248 = vmatprep.subr.bf16.mxu0 0
        %1249 = vmatpush1.bf16.msra.mxu0 %v1186
        %1250 = vmatprep.subr.bf16.mxu0 0
        %1251 = vmatpush1.bf16.msra.mxu0 %v1187
        %1252 = vmatprep.subr.bf16.mxu0 0
        %1253 = vmatpush1.bf16.msra.mxu0 0
        %1254 = vmatprep.subr.bf16.mxu0 0
        %1255 = vmatpush1.bf16.msra.mxu0 0
        %1256 = vmatprep.subr.bf16.mxu0 0
        %1257 = vmatpush1.bf16.msra.mxu0 0
        %1258 = vmatprep.subr.bf16.mxu0 0
        %1259 = vmatpush1.bf16.msra.mxu0 0
        %1260 = vmatprep.subr.bf16.mxu0 0
        %1261 = vmatpush1.bf16.msra.mxu0 0
        %1262 = vmatprep.subr.bf16.mxu0 0
        %1263 = vmatpush1.bf16.msra.mxu0 0
        %1264 = vmatprep.subr.bf16.mxu0 0
        %1265 = vmatpush1.bf16.msra.mxu0 0
        %1266 = vmatprep.subr.bf16.mxu0 0
        %1267 = vmatpush1.bf16.msra.mxu0 0
        %1268 = vmatprep.mubr.bf16.mxu0 0
        %1269 = vmatmul.mubr.bf16.gmra.mrb[0].mxu0 %v1220
        %v1270 = vpop.f32.mrb[0].mxu0
        %v1271 = vadd.f32 0.0, %v1270
        %v1272 = vpop.f32.mrb[0].mxu0
        %v1273 = vpop.f32.mrb[0].mxu0
        %v1274 = vadd.f32 0.0, %v1273
        %v1275 = vpop.f32.mrb[0].mxu0
        %1276 = vmatprep.mubr.bf16.mxu0 0
        %1277 = vmatmul.mubr.bf16.gmra.mrb[0].mxu0 %v1221
        %v1278 = vpop.f32.mrb[0].mxu0
        %v1279 = vadd.f32 0.0, %v1278
        %v1280 = vpop.f32.mrb[0].mxu0
        %v1281 = vpop.f32.mrb[0].mxu0
        %v1282 = vadd.f32 0.0, %v1281
        %v1283 = vpop.f32.mrb[0].mxu0
        %1284 = vmatprep.mubr.bf16.mxu0 0
        %1285 = vmatmul.mubr.bf16.gmra.mrb[0].mxu0 %v1222
        %v1286 = vpop.f32.mrb[0].mxu0
        %v1287 = vadd.f32 0.0, %v1286
        %v1288 = vpop.f32.mrb[0].mxu0
        %v1289 = vpop.f32.mrb[0].mxu0
        %v1290 = vadd.f32 0.0, %v1289
        %v1291 = vpop.f32.mrb[0].mxu0
        %1292 = vmatprep.mubr.bf16.mxu0 0
        %1293 = vmatmul.mubr.bf16.gmra.mrb[0].mxu0 %v1223
        %v1294 = vpop.f32.mrb[0].mxu0
        %v1295 = vadd.f32 0.0, %v1294
        %v1296 = vpop.f32.mrb[0].mxu0
        %v1297 = vpop.f32.mrb[0].mxu0
        %v1298 = vadd.f32 0.0, %v1297
        %v1299 = vpop.f32.mrb[0].mxu0
        %1300 = vmatprep.mubr.bf16.mxu0 0
        %1301 = vmatmul.mubr.bf16.gmra.mrb[0].mxu0 %v1224
        %v1302 = vpop.f32.mrb[0].mxu0
        %v1303 = vadd.f32 0.0, %v1302
        %v1304 = vpop.f32.mrb[0].mxu0
        %v1305 = vpop.f32.mrb[0].mxu0
        %v1306 = vadd.f32 0.0, %v1305
        %v1307 = vpop.f32.mrb[0].mxu0
        %1308 = vmatprep.mubr.bf16.mxu0 0
        %1309 = vmatmul.mubr.bf16.gmra.mrb[0].mxu0 %v1225
        %v1310 = vpop.f32.mrb[0].mxu0
        %v1311 = vadd.f32 0.0, %v1310
        %v1312 = vpop.f32.mrb[0].mxu0
        %v1313 = vpop.f32.mrb[0].mxu0
        %v1314 = vadd.f32 0.0, %v1313
        %v1315 = vpop.f32.mrb[0].mxu0
        %1316 = vmatprep.mubr.bf16.mxu0 0
        %1317 = vmatmul.mubr.bf16.gmra.mrb[0].mxu0 %v1226
        %v1318 = vpop.f32.mrb[0].mxu0
        %v1319 = vadd.f32 0.0, %v1318
        %v1320 = vpop.f32.mrb[0].mxu0
        %v1321 = vpop.f32.mrb[0].mxu0
        %v1322 = vadd.f32 0.0, %v1321
        %v1323 = vpop.f32.mrb[0].mxu0
        %1324 = vmatprep.mubr.bf16.mxu0 0
        %1325 = vmatmul.mubr.bf16.gmra.mrb[0].mxu0 %v1227
        %v1326 = vpop.f32.mrb[0].mxu0
        %v1327 = vadd.f32 0.0, %v1326
        %v1328 = vpop.f32.mrb[0].mxu0
        %v1329 = vpop.f32.mrb[0].mxu0
        %v1330 = vadd.f32 0.0, %v1329
        %v1331 = vpop.f32.mrb[0].mxu0
        %1332 = vdwg.mxu0
        %v1333 = vadd.f32 %v1148, %v1271
        %v1334 = vadd.f32 %v1149, %v1274
        %v1335 = vadd.f32 %v1150, %v1279
        %v1336 = vadd.f32 %v1151, %v1282
        %v1337 = vadd.f32 %v1152, %v1287
        %v1338 = vadd.f32 %v1153, %v1290
        %v1339 = vadd.f32 %v1154, %v1295
        %v1340 = vadd.f32 %v1155, %v1298
        %v1341 = vadd.f32 %v1156, %v1303
        %v1342 = vadd.f32 %v1157, %v1306
        %v1343 = vadd.f32 %v1158, %v1311
        %v1344 = vadd.f32 %v1159, %v1314
        %v1345 = vadd.f32 %v1160, %v1319
        %v1346 = vadd.f32 %v1161, %v1322
        %v1347 = vadd.f32 %v1162, %v1327
        %v1348 = vadd.f32 %v1163, %v1330
        %1349 = vst [vmem:[#allocation3] sm:$0xff] %v1333
        %1350 = vst [vmem:[#allocation3 + $0x8] sm:$0xff] %v1334
        %1351 = vst [vmem:[#allocation3 + $0x10] sm:$0xff] %v1335
        %1352 = vst [vmem:[#allocation3 + $0x18] sm:$0xff] %v1336
        %1353 = vst [vmem:[#allocation3 + $0x20] sm:$0xff] %v1337
        %1354 = vst [vmem:[#allocation3 + $0x28] sm:$0xff] %v1338
        %1355 = vst [vmem:[#allocation3 + $0x30] sm:$0xff] %v1339
        %1356 = vst [vmem:[#allocation3 + $0x38] sm:$0xff] %v1340
        %1357 = vst [vmem:[#allocation3 + $0x40] sm:$0xff] %v1341
        %1358 = vst [vmem:[#allocation3 + $0x48] sm:$0xff] %v1342
        %1359 = vst [vmem:[#allocation3 + $0x50] sm:$0xff] %v1343
        %1360 = vst [vmem:[#allocation3 + $0x58] sm:$0xff] %v1344
        %1361 = vst [vmem:[#allocation3 + $0x60] sm:$0xff] %v1345
        %1362 = vst [vmem:[#allocation3 + $0x68] sm:$0xff] %v1346
        %1363 = vst [vmem:[#allocation3 + $0x70] sm:$0xff] %v1347
        %1364 = vst [vmem:[#allocation3 + $0x78] sm:$0xff] %v1348
        // Predicated region
        $region109: #{_ppo_forward.1} parent=99 // pred_check
          %p1365 = pneg %p656
        $region110: #{_ppo_forward.1} parent=99 // pred_check_branch
          %1367 = sbr.rel (%p1365) target = $region112
        $region111: #{_ppo_forward.1} parent=99 // pred_region
          %s1368 = scalar_lea.vmem %s6, %s1112
          %v1369 = vld [vmem:[%s1368] sm:$0x1]
          %v1370 = vmax.f32 %v1369, 0.0
          %s1371 = smul.u32 %s1112, 128
          %s1372 = scalar_lea.vmem %s5, %s1371
          %v1373 = vld [vmem:[%s1372] sm:$0xff]
          %v1374 = vld [vmem:[%s1372 + $0x8] sm:$0xff]
          %v1375 = vld [vmem:[%s1372 + $0x10] sm:$0xff]
          %v1376 = vld [vmem:[%s1372 + $0x18] sm:$0xff]
          %v1377 = vld [vmem:[%s1372 + $0x20] sm:$0xff]
          %v1378 = vld [vmem:[%s1372 + $0x28] sm:$0xff]
          %v1379 = vld [vmem:[%s1372 + $0x30] sm:$0xff]
          %v1380 = vld [vmem:[%s1372 + $0x38] sm:$0xff]
          %v1381 = vld [vmem:[%s1372 + $0x40] sm:$0xff]
          %v1382 = vld [vmem:[%s1372 + $0x48] sm:$0xff]
          %v1383 = vld [vmem:[%s1372 + $0x50] sm:$0xff]
          %v1384 = vld [vmem:[%s1372 + $0x58] sm:$0xff]
          %v1385 = vld [vmem:[%s1372 + $0x60] sm:$0xff]
          %v1386 = vld [vmem:[%s1372 + $0x68] sm:$0xff]
          %v1387 = vld [vmem:[%s1372 + $0x70] sm:$0xff]
          %v1388 = vld [vmem:[%s1372 + $0x78] sm:$0xff]
          %1389 = vmatprep.subr.mxu0 0.0
          %1390 = vmatpush1.msra.mxu0 %v1373
          %1391 = vmatprep.subr.mxu0 0.0
          %1392 = vmatpush1.msra.mxu0 %v1374
          %1393 = vmatprep.subr.mxu0 0.0
          %1394 = vmatpush1.msra.mxu0 %v1375
          %1395 = vmatprep.subr.mxu0 0.0
          %1396 = vmatpush1.msra.mxu0 %v1376
          %1397 = vmatprep.subr.mxu0 0.0
          %1398 = vmatpush1.msra.mxu0 %v1377
          %1399 = vmatprep.subr.mxu0 0.0
          %1400 = vmatpush1.msra.mxu0 %v1378
          %1401 = vmatprep.subr.mxu0 0.0
          %1402 = vmatpush1.msra.mxu0 %v1379
          %1403 = vmatprep.subr.mxu0 0.0
          %1404 = vmatpush1.msra.mxu0 %v1380
          %1405 = vmatprep.subr.mxu0 0.0
          %1406 = vmatpush1.msra.mxu0 %v1381
          %1407 = vmatprep.subr.mxu0 0.0
          %1408 = vmatpush1.msra.mxu0 %v1382
          %1409 = vmatprep.subr.mxu0 0.0
          %1410 = vmatpush1.msra.mxu0 %v1383
          %1411 = vmatprep.subr.mxu0 0.0
          %1412 = vmatpush1.msra.mxu0 %v1384
          %1413 = vmatprep.subr.mxu0 0.0
          %1414 = vmatpush1.msra.mxu0 %v1385
          %1415 = vmatprep.subr.mxu0 0.0
          %1416 = vmatpush1.msra.mxu0 %v1386
          %1417 = vmatprep.subr.mxu0 0.0
          %1418 = vmatpush1.msra.mxu0 %v1387
          %1419 = vmatprep.subr.mxu0 0.0
          %1420 = vmatpush1.msra.mxu0 %v1388
          %1421 = vmatprep.subr.mxu0 0.0
          %1422 = vmatpush1.msra.mxu0 0.0
          %1423 = vmatprep.subr.mxu0 0.0
          %1424 = vmatpush1.msra.mxu0 0.0
          %1425 = vmatprep.subr.mxu0 0.0
          %1426 = vmatpush1.msra.mxu0 0.0
          %1427 = vmatprep.subr.mxu0 0.0
          %1428 = vmatpush1.msra.mxu0 0.0
          %1429 = vmatprep.subr.mxu0 0.0
          %1430 = vmatpush1.msra.mxu0 0.0
          %1431 = vmatprep.subr.mxu0 0.0
          %1432 = vmatpush1.msra.mxu0 0.0
          %1433 = vmatprep.subr.mxu0 0.0
          %1434 = vmatpush1.msra.mxu0 0.0
          %1435 = vmatprep.subr.mxu0 0.0
          %1436 = vmatpush1.msra.mxu0 0.0
          %1437 = vmatprep.subr.mxu0 0.0
          %1438 = vmatpush1.msra.mxu0 0.0
          %1439 = vmatprep.subr.mxu0 0.0
          %1440 = vmatpush1.msra.mxu0 0.0
          %1441 = vmatprep.subr.mxu0 0.0
          %1442 = vmatpush1.msra.mxu0 0.0
          %1443 = vmatprep.subr.mxu0 0.0
          %1444 = vmatpush1.msra.mxu0 0.0
          %1445 = vmatprep.subr.mxu0 0.0
          %1446 = vmatpush1.msra.mxu0 0.0
          %1447 = vmatprep.subr.mxu0 0.0
          %1448 = vmatpush1.msra.mxu0 0.0
          %1449 = vmatprep.subr.mxu0 0.0
          %1450 = vmatpush1.msra.mxu0 0.0
          %1451 = vmatprep.subr.mxu0 0.0
          %1452 = vmatpush1.msra.mxu0 0.0
          %1453 = vmatprep.mubr.f32.mxu0 0.0
          %1454 = vmatmul.mubr.f32.gmra.mrb[0].mxu0 %v1370
          %v1455 = vpop.f32.mrb[0].mxu0
          %v1456 = vadd.f32 0.0, %v1455
          %v1457 = vpop.f32.mrb[0].mxu0
          %1458 = vdwg.mxu0
          %v1459 = vld [vmem:[%s0] sm:$0xff]
          %v1460 = vld [vmem:[%s0 + $0x8] sm:$0xff]
          %v1461 = vld [vmem:[%s0 + $0x10] sm:$0xff]
          %v1462 = vld [vmem:[%s0 + $0x18] sm:$0xff]
          %v1463 = vld [vmem:[%s0 + $0x20] sm:$0xff]
          %v1464 = vld [vmem:[%s0 + $0x28] sm:$0xff]
          %v1465 = vld [vmem:[%s0 + $0x30] sm:$0xff]
          %v1466 = vld [vmem:[%s0 + $0x38] sm:$0xff]
          %v1467 = vld [vmem:[%s0 + $0x40] sm:$0xff]
          %v1468 = vld [vmem:[%s0 + $0x48] sm:$0xff]
          %v1469 = vld [vmem:[%s0 + $0x50] sm:$0xff]
          %v1470 = vld [vmem:[%s0 + $0x58] sm:$0xff]
          %v1471 = vld [vmem:[%s0 + $0x60] sm:$0xff]
          %v1472 = vld [vmem:[%s0 + $0x68] sm:$0xff]
          %v1473 = vld [vmem:[%s0 + $0x70] sm:$0xff]
          %v1474 = vld [vmem:[%s0 + $0x78] sm:$0xff]
          %s1475 = smul.u32 %s1112, 4
          %s1476 = scalar_lea.vmem %s3, %s1475
          %v1477 = vld [vmem:[%s1476] sm:$0xf]
          %v1478 = vld [vmem:[#allocation3] sm:$0xff]
          %v1479 = vld [vmem:[#allocation3 + $0x8] sm:$0xff]
          %v1480 = vld [vmem:[#allocation3 + $0x10] sm:$0xff]
          %v1481 = vld [vmem:[#allocation3 + $0x18] sm:$0xff]
          %v1482 = vld [vmem:[#allocation3 + $0x20] sm:$0xff]
          %v1483 = vld [vmem:[#allocation3 + $0x28] sm:$0xff]
          %v1484 = vld [vmem:[#allocation3 + $0x30] sm:$0xff]
          %v1485 = vld [vmem:[#allocation3 + $0x38] sm:$0xff]
          %v1486 = vld [vmem:[#allocation3 + $0x40] sm:$0xff]
          %v1487 = vld [vmem:[#allocation3 + $0x48] sm:$0xff]
          %v1488 = vld [vmem:[#allocation3 + $0x50] sm:$0xff]
          %v1489 = vld [vmem:[#allocation3 + $0x58] sm:$0xff]
          %v1490 = vld [vmem:[#allocation3 + $0x60] sm:$0xff]
          %v1491 = vld [vmem:[#allocation3 + $0x68] sm:$0xff]
          %v1492 = vld [vmem:[#allocation3 + $0x70] sm:$0xff]
          %v1493 = vld [vmem:[#allocation3 + $0x78] sm:$0xff]
          %s1494 = scalar_lea.vmem %s4, %s1371
          %v1495 = vld [vmem:[%s1494] sm:$0xff]
          %v1496 = vld [vmem:[%s1494 + $0x8] sm:$0xff]
          %v1497 = vld [vmem:[%s1494 + $0x10] sm:$0xff]
          %v1498 = vld [vmem:[%s1494 + $0x18] sm:$0xff]
          %v1499 = vld [vmem:[%s1494 + $0x20] sm:$0xff]
          %v1500 = vld [vmem:[%s1494 + $0x28] sm:$0xff]
          %v1501 = vld [vmem:[%s1494 + $0x30] sm:$0xff]
          %v1502 = vld [vmem:[%s1494 + $0x38] sm:$0xff]
          %v1503 = vld [vmem:[%s1494 + $0x40] sm:$0xff]
          %v1504 = vld [vmem:[%s1494 + $0x48] sm:$0xff]
          %v1505 = vld [vmem:[%s1494 + $0x50] sm:$0xff]
          %v1506 = vld [vmem:[%s1494 + $0x58] sm:$0xff]
          %v1507 = vld [vmem:[%s1494 + $0x60] sm:$0xff]
          %v1508 = vld [vmem:[%s1494 + $0x68] sm:$0xff]
          %v1509 = vld [vmem:[%s1494 + $0x70] sm:$0xff]
          %v1510 = vld [vmem:[%s1494 + $0x78] sm:$0xff]
          %1511 = vmatprep.subr.mxu0 0.0
          %1512 = vmatpush1.msra.mxu0 %v1495
          %1513 = vmatprep.subr.mxu0 0.0
          %1514 = vmatpush1.msra.mxu0 %v1496
          %1515 = vmatprep.subr.mxu0 0.0
          %1516 = vmatpush1.msra.mxu0 %v1497
          %1517 = vmatprep.subr.mxu0 0.0
          %1518 = vmatpush1.msra.mxu0 %v1498
          %1519 = vmatprep.subr.mxu0 0.0
          %1520 = vmatpush1.msra.mxu0 %v1499
          %1521 = vmatprep.subr.mxu0 0.0
          %1522 = vmatpush1.msra.mxu0 %v1500
          %1523 = vmatprep.subr.mxu0 0.0
          %1524 = vmatpush1.msra.mxu0 %v1501
          %1525 = vmatprep.subr.mxu0 0.0
          %1526 = vmatpush1.msra.mxu0 %v1502
          %1527 = vmatprep.subr.mxu0 0.0
          %1528 = vmatpush1.msra.mxu0 %v1503
          %1529 = vmatprep.subr.mxu0 0.0
          %1530 = vmatpush1.msra.mxu0 %v1504
          %1531 = vmatprep.subr.mxu0 0.0
          %1532 = vmatpush1.msra.mxu0 %v1505
          %1533 = vmatprep.subr.mxu0 0.0
          %1534 = vmatpush1.msra.mxu0 %v1506
          %1535 = vmatprep.subr.mxu0 0.0
          %1536 = vmatpush1.msra.mxu0 %v1507
          %1537 = vmatprep.subr.mxu0 0.0
          %1538 = vmatpush1.msra.mxu0 %v1508
          %1539 = vmatprep.subr.mxu0 0.0
          %1540 = vmatpush1.msra.mxu0 %v1509
          %1541 = vmatprep.subr.mxu0 0.0
          %1542 = vmatpush1.msra.mxu0 %v1510
          %1543 = vmatprep.subr.mxu0 0.0
          %1544 = vmatpush1.msra.mxu0 0.0
          %1545 = vmatprep.subr.mxu0 0.0
          %1546 = vmatpush1.msra.mxu0 0.0
          %1547 = vmatprep.subr.mxu0 0.0
          %1548 = vmatpush1.msra.mxu0 0.0
          %1549 = vmatprep.subr.mxu0 0.0
          %1550 = vmatpush1.msra.mxu0 0.0
          %1551 = vmatprep.subr.mxu0 0.0
          %1552 = vmatpush1.msra.mxu0 0.0
          %1553 = vmatprep.subr.mxu0 0.0
          %1554 = vmatpush1.msra.mxu0 0.0
          %1555 = vmatprep.subr.mxu0 0.0
          %1556 = vmatpush1.msra.mxu0 0.0
          %1557 = vmatprep.subr.mxu0 0.0
          %1558 = vmatpush1.msra.mxu0 0.0
          %1559 = vmatprep.subr.mxu0 0.0
          %1560 = vmatpush1.msra.mxu0 0.0
          %1561 = vmatprep.subr.mxu0 0.0
          %1562 = vmatpush1.msra.mxu0 0.0
          %1563 = vmatprep.subr.mxu0 0.0
          %1564 = vmatpush1.msra.mxu0 0.0
          %1565 = vmatprep.subr.mxu0 0.0
          %1566 = vmatpush1.msra.mxu0 0.0
          %1567 = vmatprep.subr.mxu0 0.0
          %1568 = vmatpush1.msra.mxu0 0.0
          %1569 = vmatprep.subr.mxu0 0.0
          %1570 = vmatpush1.msra.mxu0 0.0
          %1571 = vmatprep.subr.mxu0 0.0
          %1572 = vmatpush1.msra.mxu0 0.0
          %1573 = vmatprep.subr.mxu0 0.0
          %1574 = vmatpush1.msra.mxu0 0.0
          %1575 = vmatprep.mubr.f32.mxu0 0.0
          %1576 = vmatmul.mubr.f32.gmra.mrb[0].mxu0 %v1478
          %v1577 = vpop.f32.mrb[0].mxu0
          %v1578 = vadd.f32 0.0, %v1577
          %v1579 = vpop.f32.mrb[0].mxu0
          %1580 = vmatprep.mubr.f32.mxu0 0.0
          %1581 = vmatmul.mubr.f32.gmra.mrb[0].mxu0 %v1479
          %v1582 = vpop.f32.mrb[0].mxu0
          %v1583 = vadd.f32 0.0, %v1582
          %v1584 = vpop.f32.mrb[0].mxu0
          %1585 = vmatprep.mubr.f32.mxu0 0.0
          %1586 = vmatmul.mubr.f32.gmra.mrb[0].mxu0 %v1480
          %v1587 = vpop.f32.mrb[0].mxu0
          %v1588 = vadd.f32 0.0, %v1587
          %v1589 = vpop.f32.mrb[0].mxu0
          %1590 = vmatprep.mubr.f32.mxu0 0.0
          %1591 = vmatmul.mubr.f32.gmra.mrb[0].mxu0 %v1481
          %v1592 = vpop.f32.mrb[0].mxu0
          %v1593 = vadd.f32 0.0, %v1592
          %v1594 = vpop.f32.mrb[0].mxu0
          %1595 = vmatprep.mubr.f32.mxu0 0.0
          %1596 = vmatmul.mubr.f32.gmra.mrb[0].mxu0 %v1482
          %v1597 = vpop.f32.mrb[0].mxu0
          %v1598 = vadd.f32 0.0, %v1597
          %v1599 = vpop.f32.mrb[0].mxu0
          %1600 = vmatprep.mubr.f32.mxu0 0.0
          %1601 = vmatmul.mubr.f32.gmra.mrb[0].mxu0 %v1483
          %v1602 = vpop.f32.mrb[0].mxu0
          %v1603 = vadd.f32 0.0, %v1602
          %v1604 = vpop.f32.mrb[0].mxu0
          %1605 = vmatprep.mubr.f32.mxu0 0.0
          %1606 = vmatmul.mubr.f32.gmra.mrb[0].mxu0 %v1484
          %v1607 = vpop.f32.mrb[0].mxu0
          %v1608 = vadd.f32 0.0, %v1607
          %v1609 = vpop.f32.mrb[0].mxu0
          %1610 = vmatprep.mubr.f32.mxu0 0.0
          %1611 = vmatmul.mubr.f32.gmra.mrb[0].mxu0 %v1485
          %v1612 = vpop.f32.mrb[0].mxu0
          %v1613 = vadd.f32 0.0, %v1612
          %v1614 = vpop.f32.mrb[0].mxu0
          %1615 = vmatprep.mubr.f32.mxu0 0.0
          %1616 = vmatmul.mubr.f32.gmra.mrb[0].mxu0 %v1486
          %v1617 = vpop.f32.mrb[0].mxu0
          %v1618 = vadd.f32 0.0, %v1617
          %v1619 = vpop.f32.mrb[0].mxu0
          %1620 = vmatprep.mubr.f32.mxu0 0.0
          %1621 = vmatmul.mubr.f32.gmra.mrb[0].mxu0 %v1487
          %v1622 = vpop.f32.mrb[0].mxu0
          %v1623 = vadd.f32 0.0, %v1622
          %v1624 = vpop.f32.mrb[0].mxu0
          %1625 = vmatprep.mubr.f32.mxu0 0.0
          %1626 = vmatmul.mubr.f32.gmra.mrb[0].mxu0 %v1488
          %v1627 = vpop.f32.mrb[0].mxu0
          %v1628 = vadd.f32 0.0, %v1627
          %v1629 = vpop.f32.mrb[0].mxu0
          %1630 = vmatprep.mubr.f32.mxu0 0.0
          %1631 = vmatmul.mubr.f32.gmra.mrb[0].mxu0 %v1489
          %v1632 = vpop.f32.mrb[0].mxu0
          %v1633 = vadd.f32 0.0, %v1632
          %v1634 = vpop.f32.mrb[0].mxu0
          %1635 = vmatprep.mubr.f32.mxu0 0.0
          %1636 = vmatmul.mubr.f32.gmra.mrb[0].mxu0 %v1490
          %v1637 = vpop.f32.mrb[0].mxu0
          %v1638 = vadd.f32 0.0, %v1637
          %v1639 = vpop.f32.mrb[0].mxu0
          %1640 = vmatprep.mubr.f32.mxu0 0.0
          %1641 = vmatmul.mubr.f32.gmra.mrb[0].mxu0 %v1491
          %v1642 = vpop.f32.mrb[0].mxu0
          %v1643 = vadd.f32 0.0, %v1642
          %v1644 = vpop.f32.mrb[0].mxu0
          %1645 = vmatprep.mubr.f32.mxu0 0.0
          %1646 = vmatmul.mubr.f32.gmra.mrb[0].mxu0 %v1492
          %v1647 = vpop.f32.mrb[0].mxu0
          %v1648 = vadd.f32 0.0, %v1647
          %v1649 = vpop.f32.mrb[0].mxu0
          %1650 = vmatprep.mubr.f32.mxu0 0.0
          %1651 = vmatmul.mubr.f32.gmra.mrb[0].mxu0 %v1493
          %v1652 = vpop.f32.mrb[0].mxu0
          %v1653 = vadd.f32 0.0, %v1652
          %v1654 = vpop.f32.mrb[0].mxu0
          %1655 = vdwg.mxu0
          %vm1656 = vcmask 31744
          %v1658 = vsel %vm1656, %v1459, 0
          %v1661 = vsel %vm1656, %v1460, 0
          %v1664 = vsel %vm1656, %v1461, 0
          %v1667 = vsel %vm1656, %v1462, 0
          %v1670 = vsel %vm1656, %v1463, 0
          %v1673 = vsel %vm1656, %v1464, 0
          %v1676 = vsel %vm1656, %v1465, 0
          %v1679 = vsel %vm1656, %v1466, 0
          %v1682 = vsel %vm1656, %v1467, 0
          %v1685 = vsel %vm1656, %v1468, 0
          %v1688 = vsel %vm1656, %v1469, 0
          %v1691 = vsel %vm1656, %v1470, 0
          %v1694 = vsel %vm1656, %v1471, 0
          %v1697 = vsel %vm1656, %v1472, 0
          %v1700 = vsel %vm1656, %v1473, 0
          %v1703 = vsel %vm1656, %v1474, 0
          %vm1705 = vcmask 1043456
          %v1707 = vsel %vm1705, %v1477, 0
          %1709 = vmatprep.subr.mxu0 0.0
          %1710 = vmatpush1.msra.mxu0 %v1707
          %1711 = vmatprep.subr.mxu0 0.0
          %1712 = vmatpush1.msra.mxu0 0.0
          %1713 = vmatprep.subr.mxu0 0.0
          %1714 = vmatpush1.msra.mxu0 0.0
          %1715 = vmatprep.subr.mxu0 0.0
          %1716 = vmatpush1.msra.mxu0 0.0
          %1717 = vmatprep.subr.mxu0 0.0
          %1718 = vmatpush1.msra.mxu0 0.0
          %1719 = vmatprep.subr.mxu0 0.0
          %1720 = vmatpush1.msra.mxu0 0.0
          %1721 = vmatprep.subr.mxu0 0.0
          %1722 = vmatpush1.msra.mxu0 0.0
          %1723 = vmatprep.subr.mxu0 0.0
          %1724 = vmatpush1.msra.mxu0 0.0
          %1725 = vmatprep.subr.mxu0 0.0
          %1726 = vmatpush1.msra.mxu0 0.0
          %1727 = vmatprep.subr.mxu0 0.0
          %1728 = vmatpush1.msra.mxu0 0.0
          %1729 = vmatprep.subr.mxu0 0.0
          %1730 = vmatpush1.msra.mxu0 0.0
          %1731 = vmatprep.subr.mxu0 0.0
          %1732 = vmatpush1.msra.mxu0 0.0
          %1733 = vmatprep.subr.mxu0 0.0
          %1734 = vmatpush1.msra.mxu0 0.0
          %1735 = vmatprep.subr.mxu0 0.0
          %1736 = vmatpush1.msra.mxu0 0.0
          %1737 = vmatprep.subr.mxu0 0.0
          %1738 = vmatpush1.msra.mxu0 0.0
          %1739 = vmatprep.subr.mxu0 0.0
          %1740 = vmatpush1.msra.mxu0 0.0
          %1741 = vmatprep.subr.mxu0 0.0
          %1742 = vmatpush1.msra.mxu0 0.0
          %1743 = vmatprep.subr.mxu0 0.0
          %1744 = vmatpush1.msra.mxu0 0.0
          %1745 = vmatprep.subr.mxu0 0.0
          %1746 = vmatpush1.msra.mxu0 0.0
          %1747 = vmatprep.subr.mxu0 0.0
          %1748 = vmatpush1.msra.mxu0 0.0
          %1749 = vmatprep.subr.mxu0 0.0
          %1750 = vmatpush1.msra.mxu0 0.0
          %1751 = vmatprep.subr.mxu0 0.0
          %1752 = vmatpush1.msra.mxu0 0.0
          %1753 = vmatprep.subr.mxu0 0.0
          %1754 = vmatpush1.msra.mxu0 0.0
          %1755 = vmatprep.subr.mxu0 0.0
          %1756 = vmatpush1.msra.mxu0 0.0
          %1757 = vmatprep.subr.mxu0 0.0
          %1758 = vmatpush1.msra.mxu0 0.0
          %1759 = vmatprep.subr.mxu0 0.0
          %1760 = vmatpush1.msra.mxu0 0.0
          %1761 = vmatprep.subr.mxu0 0.0
          %1762 = vmatpush1.msra.mxu0 0.0
          %1763 = vmatprep.subr.mxu0 0.0
          %1764 = vmatpush1.msra.mxu0 0.0
          %1765 = vmatprep.subr.mxu0 0.0
          %1766 = vmatpush1.msra.mxu0 0.0
          %1767 = vmatprep.subr.mxu0 0.0
          %1768 = vmatpush1.msra.mxu0 0.0
          %1769 = vmatprep.subr.mxu0 0.0
          %1770 = vmatpush1.msra.mxu0 0.0
          %1771 = vmatprep.subr.mxu0 0.0
          %1772 = vmatpush1.msra.mxu0 0.0
          %1773 = vmatprep.mubr.f32.mxu0 0.0
          %1774 = vmatmul.mubr.f32.gmra.mrb[0].mxu0 %v1658
          %v1775 = vpop.f32.mrb[0].mxu0
          %v1776 = vadd.f32 %v1578, %v1775
          %v1777 = vpop.f32.mrb[0].mxu0
          %1778 = vmatprep.mubr.f32.mxu0 0.0
          %1779 = vmatmul.mubr.f32.gmra.mrb[0].mxu0 %v1661
          %v1780 = vpop.f32.mrb[0].mxu0
          %v1781 = vadd.f32 %v1583, %v1780
          %v1782 = vpop.f32.mrb[0].mxu0
          %1783 = vmatprep.mubr.f32.mxu0 0.0
          %1784 = vmatmul.mubr.f32.gmra.mrb[0].mxu0 %v1664
          %v1785 = vpop.f32.mrb[0].mxu0
          %v1786 = vadd.f32 %v1588, %v1785
          %v1787 = vpop.f32.mrb[0].mxu0
          %1788 = vmatprep.mubr.f32.mxu0 0.0
          %1789 = vmatmul.mubr.f32.gmra.mrb[0].mxu0 %v1667
          %v1790 = vpop.f32.mrb[0].mxu0
          %v1791 = vadd.f32 %v1593, %v1790
          %v1792 = vpop.f32.mrb[0].mxu0
          %1793 = vmatprep.mubr.f32.mxu0 0.0
          %1794 = vmatmul.mubr.f32.gmra.mrb[0].mxu0 %v1670
          %v1795 = vpop.f32.mrb[0].mxu0
          %v1796 = vadd.f32 %v1598, %v1795
          %v1797 = vpop.f32.mrb[0].mxu0
          %1798 = vmatprep.mubr.f32.mxu0 0.0
          %1799 = vmatmul.mubr.f32.gmra.mrb[0].mxu0 %v1673
          %v1800 = vpop.f32.mrb[0].mxu0
          %v1801 = vadd.f32 %v1603, %v1800
          %v1802 = vpop.f32.mrb[0].mxu0
          %1803 = vmatprep.mubr.f32.mxu0 0.0
          %1804 = vmatmul.mubr.f32.gmra.mrb[0].mxu0 %v1676
          %v1805 = vpop.f32.mrb[0].mxu0
          %v1806 = vadd.f32 %v1608, %v1805
          %v1807 = vpop.f32.mrb[0].mxu0
          %1808 = vmatprep.mubr.f32.mxu0 0.0
          %1809 = vmatmul.mubr.f32.gmra.mrb[0].mxu0 %v1679
          %v1810 = vpop.f32.mrb[0].mxu0
          %v1811 = vadd.f32 %v1613, %v1810
          %v1812 = vpop.f32.mrb[0].mxu0
          %1813 = vmatprep.mubr.f32.mxu0 0.0
          %1814 = vmatmul.mubr.f32.gmra.mrb[0].mxu0 %v1682
          %v1815 = vpop.f32.mrb[0].mxu0
          %v1816 = vadd.f32 %v1618, %v1815
          %v1817 = vpop.f32.mrb[0].mxu0
          %1818 = vmatprep.mubr.f32.mxu0 0.0
          %1819 = vmatmul.mubr.f32.gmra.mrb[0].mxu0 %v1685
          %v1820 = vpop.f32.mrb[0].mxu0
          %v1821 = vadd.f32 %v1623, %v1820
          %v1822 = vpop.f32.mrb[0].mxu0
          %1823 = vmatprep.mubr.f32.mxu0 0.0
          %1824 = vmatmul.mubr.f32.gmra.mrb[0].mxu0 %v1688
          %v1825 = vpop.f32.mrb[0].mxu0
          %v1826 = vadd.f32 %v1628, %v1825
          %v1827 = vpop.f32.mrb[0].mxu0
          %1828 = vmatprep.mubr.f32.mxu0 0.0
          %1829 = vmatmul.mubr.f32.gmra.mrb[0].mxu0 %v1691
          %v1830 = vpop.f32.mrb[0].mxu0
          %v1831 = vadd.f32 %v1633, %v1830
          %v1832 = vpop.f32.mrb[0].mxu0
          %1833 = vmatprep.mubr.f32.mxu0 0.0
          %1834 = vmatmul.mubr.f32.gmra.mrb[0].mxu0 %v1694
          %v1835 = vpop.f32.mrb[0].mxu0
          %v1836 = vadd.f32 %v1638, %v1835
          %v1837 = vpop.f32.mrb[0].mxu0
          %1838 = vmatprep.mubr.f32.mxu0 0.0
          %1839 = vmatmul.mubr.f32.gmra.mrb[0].mxu0 %v1697
          %v1840 = vpop.f32.mrb[0].mxu0
          %v1841 = vadd.f32 %v1643, %v1840
          %v1842 = vpop.f32.mrb[0].mxu0
          %1843 = vmatprep.mubr.f32.mxu0 0.0
          %1844 = vmatmul.mubr.f32.gmra.mrb[0].mxu0 %v1700
          %v1845 = vpop.f32.mrb[0].mxu0
          %v1846 = vadd.f32 %v1648, %v1845
          %v1847 = vpop.f32.mrb[0].mxu0
          %1848 = vmatprep.mubr.f32.mxu0 0.0
          %1849 = vmatmul.mubr.f32.gmra.mrb[0].mxu0 %v1703
          %v1850 = vpop.f32.mrb[0].mxu0
          %v1851 = vadd.f32 %v1653, %v1850
          %v1852 = vpop.f32.mrb[0].mxu0
          %1853 = vdwg.mxu0
          %v1854 = vld [vmem:[%s2] sm:$0xff]
          %v1855 = vld [vmem:[%s2 + $0x8] sm:$0xff]
          %v1856 = vld [vmem:[%s2 + $0x10] sm:$0xff]
          %v1857 = vld [vmem:[%s2 + $0x18] sm:$0xff]
          %v1858 = vld [vmem:[%s2 + $0x20] sm:$0xff]
          %v1859 = vld [vmem:[%s2 + $0x28] sm:$0xff]
          %v1860 = vld [vmem:[%s2 + $0x30] sm:$0xff]
          %v1861 = vld [vmem:[%s2 + $0x38] sm:$0xff]
          %v1862 = vld [vmem:[%s2 + $0x40] sm:$0xff]
          %v1863 = vld [vmem:[%s2 + $0x48] sm:$0xff]
          %v1864 = vld [vmem:[%s2 + $0x50] sm:$0xff]
          %v1865 = vld [vmem:[%s2 + $0x58] sm:$0xff]
          %v1866 = vld [vmem:[%s2 + $0x60] sm:$0xff]
          %v1867 = vld [vmem:[%s2 + $0x68] sm:$0xff]
          %v1868 = vld [vmem:[%s2 + $0x70] sm:$0xff]
          %v1869 = vld [vmem:[%s2 + $0x78] sm:$0xff]
          %1871 = vset.pattern.permute.xlu0 0
          %1872 = vperm.xlu0 %1871, %v1854
          %v1873 = vpop.permute.xlu0 %1872
          %1876 = vset.pattern.permute.xlu0 0
          %1877 = vperm.xlu0 %1876, %v1855
          %v1878 = vpop.permute.xlu0 %1877
          %1881 = vset.pattern.permute.xlu0 0
          %1882 = vperm.xlu0 %1881, %v1856
          %v1883 = vpop.permute.xlu0 %1882
          %1886 = vset.pattern.permute.xlu0 0
          %1887 = vperm.xlu0 %1886, %v1857
          %v1888 = vpop.permute.xlu0 %1887
          %1891 = vset.pattern.permute.xlu0 0
          %1892 = vperm.xlu0 %1891, %v1858
          %v1893 = vpop.permute.xlu0 %1892
          %1896 = vset.pattern.permute.xlu0 0
          %1897 = vperm.xlu0 %1896, %v1859
          %v1898 = vpop.permute.xlu0 %1897
          %1901 = vset.pattern.permute.xlu0 0
          %1902 = vperm.xlu0 %1901, %v1860
          %v1903 = vpop.permute.xlu0 %1902
          %1906 = vset.pattern.permute.xlu0 0
          %1907 = vperm.xlu0 %1906, %v1861
          %v1908 = vpop.permute.xlu0 %1907
          %1911 = vset.pattern.permute.xlu0 0
          %1912 = vperm.xlu0 %1911, %v1862
          %v1913 = vpop.permute.xlu0 %1912
          %1916 = vset.pattern.permute.xlu0 0
          %1917 = vperm.xlu0 %1916, %v1863
          %v1918 = vpop.permute.xlu0 %1917
          %1921 = vset.pattern.permute.xlu0 0
          %1922 = vperm.xlu0 %1921, %v1864
          %v1923 = vpop.permute.xlu0 %1922
          %1926 = vset.pattern.permute.xlu0 0
          %1927 = vperm.xlu0 %1926, %v1865
          %v1928 = vpop.permute.xlu0 %1927
          %1931 = vset.pattern.permute.xlu0 0
          %1932 = vperm.xlu0 %1931, %v1866
          %v1933 = vpop.permute.xlu0 %1932
          %1936 = vset.pattern.permute.xlu0 0
          %1937 = vperm.xlu0 %1936, %v1867
          %v1938 = vpop.permute.xlu0 %1937
          %1941 = vset.pattern.permute.xlu0 0
          %1942 = vperm.xlu0 %1941, %v1868
          %v1943 = vpop.permute.xlu0 %1942
          %1946 = vset.pattern.permute.xlu0 0
          %1947 = vperm.xlu0 %1946, %v1869
          %v1948 = vpop.permute.xlu0 %1947
          %v1950 = vlaneseq
          %v1951 = vshrl.u32 %v1950, 7
          %v1952 = vsub.s32 0, %v1951
          %v1953 = vrot.slane %v1456, %v1952
          %v1954 = vmul.f32 %v1873, %v1953
          %v1955 = vmul.f32 %v1878, %v1953
          %v1956 = vmul.f32 %v1883, %v1953
          %v1957 = vmul.f32 %v1888, %v1953
          %v1958 = vmul.f32 %v1893, %v1953
          %v1959 = vmul.f32 %v1898, %v1953
          %v1960 = vmul.f32 %v1903, %v1953
          %v1961 = vmul.f32 %v1908, %v1953
          %v1962 = vmul.f32 %v1913, %v1953
          %v1963 = vmul.f32 %v1918, %v1953
          %v1964 = vmul.f32 %v1923, %v1953
          %v1965 = vmul.f32 %v1928, %v1953
          %v1966 = vmul.f32 %v1933, %v1953
          %v1967 = vmul.f32 %v1938, %v1953
          %v1968 = vmul.f32 %v1943, %v1953
          %v1969 = vmul.f32 %v1948, %v1953
          %v1970 = vadd.f32 %v1776, %v1954
          %v1971 = vadd.f32 %v1781, %v1955
          %v1972 = vadd.f32 %v1786, %v1956
          %v1973 = vadd.f32 %v1791, %v1957
          %v1974 = vadd.f32 %v1796, %v1958
          %v1975 = vadd.f32 %v1801, %v1959
          %v1976 = vadd.f32 %v1806, %v1960
          %v1977 = vadd.f32 %v1811, %v1961
          %v1978 = vadd.f32 %v1816, %v1962
          %v1979 = vadd.f32 %v1821, %v1963
          %v1980 = vadd.f32 %v1826, %v1964
          %v1981 = vadd.f32 %v1831, %v1965
          %v1982 = vadd.f32 %v1836, %v1966
          %v1983 = vadd.f32 %v1841, %v1967
          %v1984 = vadd.f32 %v1846, %v1968
          %v1985 = vadd.f32 %v1851, %v1969
          %v1986 = vmax.f32 %v1970, 0.0
          %v1987 = vmax.f32 %v1971, 0.0
          %v1988 = vmax.f32 %v1972, 0.0
          %v1989 = vmax.f32 %v1973, 0.0
          %v1990 = vmax.f32 %v1974, 0.0
          %v1991 = vmax.f32 %v1975, 0.0
          %v1992 = vmax.f32 %v1976, 0.0
          %v1993 = vmax.f32 %v1977, 0.0
          %v1994 = vmax.f32 %v1978, 0.0
          %v1995 = vmax.f32 %v1979, 0.0
          %v1996 = vmax.f32 %v1980, 0.0
          %v1997 = vmax.f32 %v1981, 0.0
          %v1998 = vmax.f32 %v1982, 0.0
          %v1999 = vmax.f32 %v1983, 0.0
          %v2000 = vmax.f32 %v1984, 0.0
          %v2001 = vmax.f32 %v1985, 0.0
          %2002 = vst [vmem:[#allocation2] sm:$0xff] %v1986
          %2003 = vst [vmem:[#allocation2 + $0x8] sm:$0xff] %v1987
          %2004 = vst [vmem:[#allocation2 + $0x10] sm:$0xff] %v1988
          %2005 = vst [vmem:[#allocation2 + $0x18] sm:$0xff] %v1989
          %2006 = vst [vmem:[#allocation2 + $0x20] sm:$0xff] %v1990
          %2007 = vst [vmem:[#allocation2 + $0x28] sm:$0xff] %v1991
          %2008 = vst [vmem:[#allocation2 + $0x30] sm:$0xff] %v1992
          %2009 = vst [vmem:[#allocation2 + $0x38] sm:$0xff] %v1993
          %2010 = vst [vmem:[#allocation2 + $0x40] sm:$0xff] %v1994
          %2011 = vst [vmem:[#allocation2 + $0x48] sm:$0xff] %v1995
          %2012 = vst [vmem:[#allocation2 + $0x50] sm:$0xff] %v1996
          %2013 = vst [vmem:[#allocation2 + $0x58] sm:$0xff] %v1997
          %2014 = vst [vmem:[#allocation2 + $0x60] sm:$0xff] %v1998
          %2015 = vst [vmem:[#allocation2 + $0x68] sm:$0xff] %v1999
          %2016 = vst [vmem:[#allocation2 + $0x70] sm:$0xff] %v2000
          %2017 = vst [vmem:[#allocation2 + $0x78] sm:$0xff] %v2001
        $region112: #{_ppo_forward.1} parent=99 // pred_fallthru
          _
        %p2018 = scmp.eq.s32.totalorder %s42, 1
        %p2019 = pnand %p2018, %p656
        %p2020 = pneg %p2019
        // Predicated region
        $region113: #{_ppo_forward.1} parent=99 // pred_check
          _
        $region114: #{_ppo_forward.1} parent=99 // pred_check_branch
          %2022 = sbr.rel (%p2019) target = $region116
        $region115: #{_ppo_forward.1} parent=99 // pred_region
          %v2023 = vld [vmem:[#allocation2] sm:$0xff]
          %v2024 = vld [vmem:[#allocation2 + $0x8] sm:$0xff]
          %v2025 = vld [vmem:[#allocation2 + $0x10] sm:$0xff]
          %v2026 = vld [vmem:[#allocation2 + $0x18] sm:$0xff]
          %v2027 = vld [vmem:[#allocation2 + $0x20] sm:$0xff]
          %v2028 = vld [vmem:[#allocation2 + $0x28] sm:$0xff]
          %v2029 = vld [vmem:[#allocation2 + $0x30] sm:$0xff]
          %v2030 = vld [vmem:[#allocation2 + $0x38] sm:$0xff]
          %v2031 = vld [vmem:[#allocation2 + $0x40] sm:$0xff]
          %v2032 = vld [vmem:[#allocation2 + $0x48] sm:$0xff]
          %v2033 = vld [vmem:[#allocation2 + $0x50] sm:$0xff]
          %v2034 = vld [vmem:[#allocation2 + $0x58] sm:$0xff]
          %v2035 = vld [vmem:[#allocation2 + $0x60] sm:$0xff]
          %v2036 = vld [vmem:[#allocation2 + $0x68] sm:$0xff]
          %v2037 = vld [vmem:[#allocation2 + $0x70] sm:$0xff]
          %v2038 = vld [vmem:[#allocation2 + $0x78] sm:$0xff]
          %v2039 = vld [vmem:[%s7] sm:$0xff]
          %v2040 = vld [vmem:[%s7 + $0x8] sm:$0xff]
          %v2041 = vld [vmem:[%s7 + $0x10] sm:$0xff]
          %v2042 = vld [vmem:[%s7 + $0x18] sm:$0xff]
          %v2043 = vld [vmem:[%s7 + $0x20] sm:$0xff]
          %v2044 = vld [vmem:[%s7 + $0x28] sm:$0xff]
          %v2045 = vld [vmem:[%s7 + $0x30] sm:$0xff]
          %v2046 = vld [vmem:[%s7 + $0x38] sm:$0xff]
          %v2047 = vld [vmem:[%s7 + $0x40] sm:$0xff]
          %v2048 = vld [vmem:[%s7 + $0x48] sm:$0xff]
          %v2049 = vld [vmem:[%s7 + $0x50] sm:$0xff]
          %v2050 = vld [vmem:[%s7 + $0x58] sm:$0xff]
          %v2051 = vld [vmem:[%s7 + $0x60] sm:$0xff]
          %v2052 = vld [vmem:[%s7 + $0x68] sm:$0xff]
          %v2053 = vld [vmem:[%s7 + $0x70] sm:$0xff]
          %v2054 = vld [vmem:[%s7 + $0x78] sm:$0xff]
          %v2055 = vld [vmem:[%s8] sm:$0x1]
          %v2057 = vlaneseq
          %v2058 = vshrl.u32 %v2057, 7
          %v2059 = vsub.s32 0, %v2058
          %v2060 = vrot.slane %v2055, %v2059
          %2062 = vmatprep.subr.mxu0 0.0
          %2063 = vmatpush1.msra.mxu0 %v2039
          %2064 = vmatprep.subr.mxu0 0.0
          %2065 = vmatpush1.msra.mxu0 %v2040
          %2066 = vmatprep.subr.mxu0 0.0
          %2067 = vmatpush1.msra.mxu0 %v2041
          %2068 = vmatprep.subr.mxu0 0.0
          %2069 = vmatpush1.msra.mxu0 %v2042
          %2070 = vmatprep.subr.mxu0 0.0
          %2071 = vmatpush1.msra.mxu0 %v2043
          %2072 = vmatprep.subr.mxu0 0.0
          %2073 = vmatpush1.msra.mxu0 %v2044
          %2074 = vmatprep.subr.mxu0 0.0
          %2075 = vmatpush1.msra.mxu0 %v2045
          %2076 = vmatprep.subr.mxu0 0.0
          %2077 = vmatpush1.msra.mxu0 %v2046
          %2078 = vmatprep.subr.mxu0 0.0
          %2079 = vmatpush1.msra.mxu0 %v2047
          %2080 = vmatprep.subr.mxu0 0.0
          %2081 = vmatpush1.msra.mxu0 %v2048
          %2082 = vmatprep.subr.mxu0 0.0
          %2083 = vmatpush1.msra.mxu0 %v2049
          %2084 = vmatprep.subr.mxu0 0.0
          %2085 = vmatpush1.msra.mxu0 %v2050
          %2086 = vmatprep.subr.mxu0 0.0
          %2087 = vmatpush1.msra.mxu0 %v2051
          %2088 = vmatprep.subr.mxu0 0.0
          %2089 = vmatpush1.msra.mxu0 %v2052
          %2090 = vmatprep.subr.mxu0 0.0
          %2091 = vmatpush1.msra.mxu0 %v2053
          %2092 = vmatprep.subr.mxu0 0.0
          %2093 = vmatpush1.msra.mxu0 %v2054
          %2094 = vmatprep.subr.mxu0 0.0
          %2095 = vmatpush1.msra.mxu0 0.0
          %2096 = vmatprep.subr.mxu0 0.0
          %2097 = vmatpush1.msra.mxu0 0.0
          %2098 = vmatprep.subr.mxu0 0.0
          %2099 = vmatpush1.msra.mxu0 0.0
          %2100 = vmatprep.subr.mxu0 0.0
          %2101 = vmatpush1.msra.mxu0 0.0
          %2102 = vmatprep.subr.mxu0 0.0
          %2103 = vmatpush1.msra.mxu0 0.0
          %2104 = vmatprep.subr.mxu0 0.0
          %2105 = vmatpush1.msra.mxu0 0.0
          %2106 = vmatprep.subr.mxu0 0.0
          %2107 = vmatpush1.msra.mxu0 0.0
          %2108 = vmatprep.subr.mxu0 0.0
          %2109 = vmatpush1.msra.mxu0 0.0
          %2110 = vmatprep.subr.mxu0 0.0
          %2111 = vmatpush1.msra.mxu0 0.0
          %2112 = vmatprep.subr.mxu0 0.0
          %2113 = vmatpush1.msra.mxu0 0.0
          %2114 = vmatprep.subr.mxu0 0.0
          %2115 = vmatpush1.msra.mxu0 0.0
          %2116 = vmatprep.subr.mxu0 0.0
          %2117 = vmatpush1.msra.mxu0 0.0
          %2118 = vmatprep.subr.mxu0 0.0
          %2119 = vmatpush1.msra.mxu0 0.0
          %2120 = vmatprep.subr.mxu0 0.0
          %2121 = vmatpush1.msra.mxu0 0.0
          %2122 = vmatprep.subr.mxu0 0.0
          %2123 = vmatpush1.msra.mxu0 0.0
          %2124 = vmatprep.subr.mxu0 0.0
          %2125 = vmatpush1.msra.mxu0 0.0
          %2126 = vmatprep.mubr.f32.mxu0 0.0
          %2127 = vmatmul.mubr.f32.gmra.mrb[0].mxu0 %v2023
          %v2128 = vpop.f32.mrb[0].mxu0
          %v2129 = vadd.f32 %v2060, %v2128
          %v2130 = vpop.f32.mrb[0].mxu0
          %2131 = vmatprep.mubr.f32.mxu0 0.0
          %2132 = vmatmul.mubr.f32.gmra.mrb[0].mxu0 %v2024
          %v2133 = vpop.f32.mrb[0].mxu0
          %v2134 = vadd.f32 %v2060, %v2133
          %v2135 = vpop.f32.mrb[0].mxu0
          %2136 = vmatprep.mubr.f32.mxu0 0.0
          %2137 = vmatmul.mubr.f32.gmra.mrb[0].mxu0 %v2025
          %v2138 = vpop.f32.mrb[0].mxu0
          %v2139 = vadd.f32 %v2060, %v2138
          %v2140 = vpop.f32.mrb[0].mxu0
          %2141 = vmatprep.mubr.f32.mxu0 0.0
          %2142 = vmatmul.mubr.f32.gmra.mrb[0].mxu0 %v2026
          %v2143 = vpop.f32.mrb[0].mxu0
          %v2144 = vadd.f32 %v2060, %v2143
          %v2145 = vpop.f32.mrb[0].mxu0
          %2146 = vmatprep.mubr.f32.mxu0 0.0
          %2147 = vmatmul.mubr.f32.gmra.mrb[0].mxu0 %v2027
          %v2148 = vpop.f32.mrb[0].mxu0
          %v2149 = vadd.f32 %v2060, %v2148
          %v2150 = vpop.f32.mrb[0].mxu0
          %2151 = vmatprep.mubr.f32.mxu0 0.0
          %2152 = vmatmul.mubr.f32.gmra.mrb[0].mxu0 %v2028
          %v2153 = vpop.f32.mrb[0].mxu0
          %v2154 = vadd.f32 %v2060, %v2153
          %v2155 = vpop.f32.mrb[0].mxu0
          %2156 = vmatprep.mubr.f32.mxu0 0.0
          %2157 = vmatmul.mubr.f32.gmra.mrb[0].mxu0 %v2029
          %v2158 = vpop.f32.mrb[0].mxu0
          %v2159 = vadd.f32 %v2060, %v2158
          %v2160 = vpop.f32.mrb[0].mxu0
          %2161 = vmatprep.mubr.f32.mxu0 0.0
          %2162 = vmatmul.mubr.f32.gmra.mrb[0].mxu0 %v2030
          %v2163 = vpop.f32.mrb[0].mxu0
          %v2164 = vadd.f32 %v2060, %v2163
          %v2165 = vpop.f32.mrb[0].mxu0
          %2166 = vmatprep.mubr.f32.mxu0 0.0
          %2167 = vmatmul.mubr.f32.gmra.mrb[0].mxu0 %v2031
          %v2168 = vpop.f32.mrb[0].mxu0
          %v2169 = vadd.f32 %v2060, %v2168
          %v2170 = vpop.f32.mrb[0].mxu0
          %2171 = vmatprep.mubr.f32.mxu0 0.0
          %2172 = vmatmul.mubr.f32.gmra.mrb[0].mxu0 %v2032
          %v2173 = vpop.f32.mrb[0].mxu0
          %v2174 = vadd.f32 %v2060, %v2173
          %v2175 = vpop.f32.mrb[0].mxu0
          %2176 = vmatprep.mubr.f32.mxu0 0.0
          %2177 = vmatmul.mubr.f32.gmra.mrb[0].mxu0 %v2033
          %v2178 = vpop.f32.mrb[0].mxu0
          %v2179 = vadd.f32 %v2060, %v2178
          %v2180 = vpop.f32.mrb[0].mxu0
          %2181 = vmatprep.mubr.f32.mxu0 0.0
          %2182 = vmatmul.mubr.f32.gmra.mrb[0].mxu0 %v2034
          %v2183 = vpop.f32.mrb[0].mxu0
          %v2184 = vadd.f32 %v2060, %v2183
          %v2185 = vpop.f32.mrb[0].mxu0
          %2186 = vmatprep.mubr.f32.mxu0 0.0
          %2187 = vmatmul.mubr.f32.gmra.mrb[0].mxu0 %v2035
          %v2188 = vpop.f32.mrb[0].mxu0
          %v2189 = vadd.f32 %v2060, %v2188
          %v2190 = vpop.f32.mrb[0].mxu0
          %2191 = vmatprep.mubr.f32.mxu0 0.0
          %2192 = vmatmul.mubr.f32.gmra.mrb[0].mxu0 %v2036
          %v2193 = vpop.f32.mrb[0].mxu0
          %v2194 = vadd.f32 %v2060, %v2193
          %v2195 = vpop.f32.mrb[0].mxu0
          %2196 = vmatprep.mubr.f32.mxu0 0.0
          %2197 = vmatmul.mubr.f32.gmra.mrb[0].mxu0 %v2037
          %v2198 = vpop.f32.mrb[0].mxu0
          %v2199 = vadd.f32 %v2060, %v2198
          %v2200 = vpop.f32.mrb[0].mxu0
          %2201 = vmatprep.mubr.f32.mxu0 0.0
          %2202 = vmatmul.mubr.f32.gmra.mrb[0].mxu0 %v2038
          %v2203 = vpop.f32.mrb[0].mxu0
          %v2204 = vadd.f32 %v2060, %v2203
          %v2205 = vpop.f32.mrb[0].mxu0
          %2206 = vdwg.mxu0
          %v2207 = vmax.f32 %v2129, 0.0
          %v2208 = vmax.f32 %v2134, 0.0
          %v2209 = vmax.f32 %v2139, 0.0
          %v2210 = vmax.f32 %v2144, 0.0
          %v2211 = vmax.f32 %v2149, 0.0
          %v2212 = vmax.f32 %v2154, 0.0
          %v2213 = vmax.f32 %v2159, 0.0
          %v2214 = vmax.f32 %v2164, 0.0
          %v2215 = vmax.f32 %v2169, 0.0
          %v2216 = vmax.f32 %v2174, 0.0
          %v2217 = vmax.f32 %v2179, 0.0
          %v2218 = vmax.f32 %v2184, 0.0
          %v2219 = vmax.f32 %v2189, 0.0
          %v2220 = vmax.f32 %v2194, 0.0
          %v2221 = vmax.f32 %v2199, 0.0
          %v2222 = vmax.f32 %v2204, 0.0
          %v2223 = vld [vmem:[%s9] sm:$0xff]
          %v2224 = vld [vmem:[%s9 + $0x8] sm:$0xff]
          %v2225 = vld [vmem:[%s9 + $0x10] sm:$0xff]
          %v2226 = vld [vmem:[%s9 + $0x18] sm:$0xff]
          %v2227 = vld [vmem:[%s9 + $0x20] sm:$0xff]
          %v2228 = vld [vmem:[%s9 + $0x28] sm:$0xff]
          %v2229 = vld [vmem:[%s9 + $0x30] sm:$0xff]
          %v2230 = vld [vmem:[%s9 + $0x38] sm:$0xff]
          %v2231 = vld [vmem:[%s10] sm:$0x1]
          %v2233 = vlaneseq
          %v2234 = vshrl.u32 %v2233, 7
          %v2235 = vsub.s32 0, %v2234
          %v2236 = vrot.slane %v2231, %v2235
          %vm2238 = vcmask 523264
          %v2240 = vsel %vm2238, %v2207, 0
          %v2243 = vsel %vm2238, %v2208, 0
          %v2246 = vsel %vm2238, %v2209, 0
          %v2249 = vsel %vm2238, %v2210, 0
          %v2252 = vsel %vm2238, %v2211, 0
          %v2255 = vsel %vm2238, %v2212, 0
          %v2258 = vsel %vm2238, %v2213, 0
          %v2261 = vsel %vm2238, %v2214, 0
          %v2264 = vsel %vm2238, %v2215, 0
          %v2267 = vsel %vm2238, %v2216, 0
          %v2270 = vsel %vm2238, %v2217, 0
          %v2273 = vsel %vm2238, %v2218, 0
          %v2276 = vsel %vm2238, %v2219, 0
          %v2279 = vsel %vm2238, %v2220, 0
          %v2282 = vsel %vm2238, %v2221, 0
          %v2285 = vsel %vm2238, %v2222, 0
          %2287 = vmatprep.subr.mxu0 0.0
          %2288 = vmatpush1.msra.mxu0 %v2223
          %2289 = vmatprep.subr.mxu0 0.0
          %2290 = vmatpush1.msra.mxu0 %v2224
          %2291 = vmatprep.subr.mxu0 0.0
          %2292 = vmatpush1.msra.mxu0 %v2225
          %2293 = vmatprep.subr.mxu0 0.0
          %2294 = vmatpush1.msra.mxu0 %v2226
          %2295 = vmatprep.subr.mxu0 0.0
          %2296 = vmatpush1.msra.mxu0 %v2227
          %2297 = vmatprep.subr.mxu0 0.0
          %2298 = vmatpush1.msra.mxu0 %v2228
          %2299 = vmatprep.subr.mxu0 0.0
          %2300 = vmatpush1.msra.mxu0 %v2229
          %2301 = vmatprep.subr.mxu0 0.0
          %2302 = vmatpush1.msra.mxu0 %v2230
          %2303 = vmatprep.subr.mxu0 0.0
          %2304 = vmatpush1.msra.mxu0 0.0
          %2305 = vmatprep.subr.mxu0 0.0
          %2306 = vmatpush1.msra.mxu0 0.0
          %2307 = vmatprep.subr.mxu0 0.0
          %2308 = vmatpush1.msra.mxu0 0.0
          %2309 = vmatprep.subr.mxu0 0.0
          %2310 = vmatpush1.msra.mxu0 0.0
          %2311 = vmatprep.subr.mxu0 0.0
          %2312 = vmatpush1.msra.mxu0 0.0
          %2313 = vmatprep.subr.mxu0 0.0
          %2314 = vmatpush1.msra.mxu0 0.0
          %2315 = vmatprep.subr.mxu0 0.0
          %2316 = vmatpush1.msra.mxu0 0.0
          %2317 = vmatprep.subr.mxu0 0.0
          %2318 = vmatpush1.msra.mxu0 0.0
          %2319 = vmatprep.subr.mxu0 0.0
          %2320 = vmatpush1.msra.mxu0 0.0
          %2321 = vmatprep.subr.mxu0 0.0
          %2322 = vmatpush1.msra.mxu0 0.0
          %2323 = vmatprep.subr.mxu0 0.0
          %2324 = vmatpush1.msra.mxu0 0.0
          %2325 = vmatprep.subr.mxu0 0.0
          %2326 = vmatpush1.msra.mxu0 0.0
          %2327 = vmatprep.subr.mxu0 0.0
          %2328 = vmatpush1.msra.mxu0 0.0
          %2329 = vmatprep.subr.mxu0 0.0
          %2330 = vmatpush1.msra.mxu0 0.0
          %2331 = vmatprep.subr.mxu0 0.0
          %2332 = vmatpush1.msra.mxu0 0.0
          %2333 = vmatprep.subr.mxu0 0.0
          %2334 = vmatpush1.msra.mxu0 0.0
          %2335 = vmatprep.subr.mxu0 0.0
          %2336 = vmatpush1.msra.mxu0 0.0
          %2337 = vmatprep.subr.mxu0 0.0
          %2338 = vmatpush1.msra.mxu0 0.0
          %2339 = vmatprep.subr.mxu0 0.0
          %2340 = vmatpush1.msra.mxu0 0.0
          %2341 = vmatprep.subr.mxu0 0.0
          %2342 = vmatpush1.msra.mxu0 0.0
          %2343 = vmatprep.subr.mxu0 0.0
          %2344 = vmatpush1.msra.mxu0 0.0
          %2345 = vmatprep.subr.mxu0 0.0
          %2346 = vmatpush1.msra.mxu0 0.0
          %2347 = vmatprep.subr.mxu0 0.0
          %2348 = vmatpush1.msra.mxu0 0.0
          %2349 = vmatprep.subr.mxu0 0.0
          %2350 = vmatpush1.msra.mxu0 0.0
          %2351 = vmatprep.mubr.f32.mxu0 0.0
          %2352 = vmatmul.mubr.f32.gmra.mrb[0].mxu0 %v2240
          %v2353 = vpop.f32.mrb[0].mxu0
          %v2354 = vadd.f32 %v2236, %v2353
          %v2355 = vpop.f32.mrb[0].mxu0
          %2356 = vmatprep.mubr.f32.mxu0 0.0
          %2357 = vmatmul.mubr.f32.gmra.mrb[0].mxu0 %v2243
          %v2358 = vpop.f32.mrb[0].mxu0
          %v2359 = vadd.f32 %v2236, %v2358
          %v2360 = vpop.f32.mrb[0].mxu0
          %2361 = vmatprep.mubr.f32.mxu0 0.0
          %2362 = vmatmul.mubr.f32.gmra.mrb[0].mxu0 %v2246
          %v2363 = vpop.f32.mrb[0].mxu0
          %v2364 = vadd.f32 %v2236, %v2363
          %v2365 = vpop.f32.mrb[0].mxu0
          %2366 = vmatprep.mubr.f32.mxu0 0.0
          %2367 = vmatmul.mubr.f32.gmra.mrb[0].mxu0 %v2249
          %v2368 = vpop.f32.mrb[0].mxu0
          %v2369 = vadd.f32 %v2236, %v2368
          %v2370 = vpop.f32.mrb[0].mxu0
          %2371 = vmatprep.mubr.f32.mxu0 0.0
          %2372 = vmatmul.mubr.f32.gmra.mrb[0].mxu0 %v2252
          %v2373 = vpop.f32.mrb[0].mxu0
          %v2374 = vadd.f32 %v2236, %v2373
          %v2375 = vpop.f32.mrb[0].mxu0
          %2376 = vmatprep.mubr.f32.mxu0 0.0
          %2377 = vmatmul.mubr.f32.gmra.mrb[0].mxu0 %v2255
          %v2378 = vpop.f32.mrb[0].mxu0
          %v2379 = vadd.f32 %v2236, %v2378
          %v2380 = vpop.f32.mrb[0].mxu0
          %2381 = vmatprep.mubr.f32.mxu0 0.0
          %2382 = vmatmul.mubr.f32.gmra.mrb[0].mxu0 %v2258
          %v2383 = vpop.f32.mrb[0].mxu0
          %v2384 = vadd.f32 %v2236, %v2383
          %v2385 = vpop.f32.mrb[0].mxu0
          %2386 = vmatprep.mubr.f32.mxu0 0.0
          %2387 = vmatmul.mubr.f32.gmra.mrb[0].mxu0 %v2261
          %v2388 = vpop.f32.mrb[0].mxu0
          %v2389 = vadd.f32 %v2236, %v2388
          %v2390 = vpop.f32.mrb[0].mxu0
          %2391 = vmatprep.mubr.f32.mxu0 0.0
          %2392 = vmatmul.mubr.f32.gmra.mrb[0].mxu0 %v2264
          %v2393 = vpop.f32.mrb[0].mxu0
          %v2394 = vadd.f32 %v2236, %v2393
          %v2395 = vpop.f32.mrb[0].mxu0
          %2396 = vmatprep.mubr.f32.mxu0 0.0
          %2397 = vmatmul.mubr.f32.gmra.mrb[0].mxu0 %v2267
          %v2398 = vpop.f32.mrb[0].mxu0
          %v2399 = vadd.f32 %v2236, %v2398
          %v2400 = vpop.f32.mrb[0].mxu0
          %2401 = vmatprep.mubr.f32.mxu0 0.0
          %2402 = vmatmul.mubr.f32.gmra.mrb[0].mxu0 %v2270
          %v2403 = vpop.f32.mrb[0].mxu0
          %v2404 = vadd.f32 %v2236, %v2403
          %v2405 = vpop.f32.mrb[0].mxu0
          %2406 = vmatprep.mubr.f32.mxu0 0.0
          %2407 = vmatmul.mubr.f32.gmra.mrb[0].mxu0 %v2273
          %v2408 = vpop.f32.mrb[0].mxu0
          %v2409 = vadd.f32 %v2236, %v2408
          %v2410 = vpop.f32.mrb[0].mxu0
          %2411 = vmatprep.mubr.f32.mxu0 0.0
          %2412 = vmatmul.mubr.f32.gmra.mrb[0].mxu0 %v2276
          %v2413 = vpop.f32.mrb[0].mxu0
          %v2414 = vadd.f32 %v2236, %v2413
          %v2415 = vpop.f32.mrb[0].mxu0
          %2416 = vmatprep.mubr.f32.mxu0 0.0
          %2417 = vmatmul.mubr.f32.gmra.mrb[0].mxu0 %v2279
          %v2418 = vpop.f32.mrb[0].mxu0
          %v2419 = vadd.f32 %v2236, %v2418
          %v2420 = vpop.f32.mrb[0].mxu0
          %2421 = vmatprep.mubr.f32.mxu0 0.0
          %2422 = vmatmul.mubr.f32.gmra.mrb[0].mxu0 %v2282
          %v2423 = vpop.f32.mrb[0].mxu0
          %v2424 = vadd.f32 %v2236, %v2423
          %v2425 = vpop.f32.mrb[0].mxu0
          %2426 = vmatprep.mubr.f32.mxu0 0.0
          %2427 = vmatmul.mubr.f32.gmra.mrb[0].mxu0 %v2285
          %v2428 = vpop.f32.mrb[0].mxu0
          %v2429 = vadd.f32 %v2236, %v2428
          %v2430 = vpop.f32.mrb[0].mxu0
          %2431 = vdwg.mxu0
          %v2432 = vmax.f32 %v2354, 0.0
          %v2433 = vmax.f32 %v2359, 0.0
          %v2434 = vmax.f32 %v2364, 0.0
          %v2435 = vmax.f32 %v2369, 0.0
          %v2436 = vmax.f32 %v2374, 0.0
          %v2437 = vmax.f32 %v2379, 0.0
          %v2438 = vmax.f32 %v2384, 0.0
          %v2439 = vmax.f32 %v2389, 0.0
          %v2440 = vmax.f32 %v2394, 0.0
          %v2441 = vmax.f32 %v2399, 0.0
          %v2442 = vmax.f32 %v2404, 0.0
          %v2443 = vmax.f32 %v2409, 0.0
          %v2444 = vmax.f32 %v2414, 0.0
          %v2445 = vmax.f32 %v2419, 0.0
          %v2446 = vmax.f32 %v2424, 0.0
          %v2447 = vmax.f32 %v2429, 0.0
          %v2448 = vld [vmem:[%s11] sm:$0xff]
          %v2449 = vld [vmem:[%s11 + $0x8] sm:$0xff]
          %v2450 = vld [vmem:[%s11 + $0x10] sm:$0xff]
          %v2451 = vld [vmem:[%s11 + $0x18] sm:$0xff]
          %v2452 = vld [vmem:[#allocation4] sm:$0x1]
          %v2454 = vlaneseq
          %v2455 = vshrl.u32 %v2454, 7
          %v2456 = vsub.s32 0, %v2455
          %v2457 = vrot.slane %v2452, %v2456
          %vm2459 = vcmask 261120
          %v2461 = vsel %vm2459, %v2432, 0
          %v2464 = vsel %vm2459, %v2433, 0
          %v2467 = vsel %vm2459, %v2434, 0
          %v2470 = vsel %vm2459, %v2435, 0
          %v2473 = vsel %vm2459, %v2436, 0
          %v2476 = vsel %vm2459, %v2437, 0
          %v2479 = vsel %vm2459, %v2438, 0
          %v2482 = vsel %vm2459, %v2439, 0
          %v2485 = vsel %vm2459, %v2440, 0
          %v2488 = vsel %vm2459, %v2441, 0
          %v2491 = vsel %vm2459, %v2442, 0
          %v2494 = vsel %vm2459, %v2443, 0
          %v2497 = vsel %vm2459, %v2444, 0
          %v2500 = vsel %vm2459, %v2445, 0
          %v2503 = vsel %vm2459, %v2446, 0
          %v2506 = vsel %vm2459, %v2447, 0
          %2508 = vmatprep.subr.mxu0 0.0
          %2509 = vmatpush1.msra.mxu0 %v2448
          %2510 = vmatprep.subr.mxu0 0.0
          %2511 = vmatpush1.msra.mxu0 %v2449
          %2512 = vmatprep.subr.mxu0 0.0
          %2513 = vmatpush1.msra.mxu0 %v2450
          %2514 = vmatprep.subr.mxu0 0.0
          %2515 = vmatpush1.msra.mxu0 %v2451
          %2516 = vmatprep.subr.mxu0 0.0
          %2517 = vmatpush1.msra.mxu0 0.0
          %2518 = vmatprep.subr.mxu0 0.0
          %2519 = vmatpush1.msra.mxu0 0.0
          %2520 = vmatprep.subr.mxu0 0.0
          %2521 = vmatpush1.msra.mxu0 0.0
          %2522 = vmatprep.subr.mxu0 0.0
          %2523 = vmatpush1.msra.mxu0 0.0
          %2524 = vmatprep.subr.mxu0 0.0
          %2525 = vmatpush1.msra.mxu0 0.0
          %2526 = vmatprep.subr.mxu0 0.0
          %2527 = vmatpush1.msra.mxu0 0.0
          %2528 = vmatprep.subr.mxu0 0.0
          %2529 = vmatpush1.msra.mxu0 0.0
          %2530 = vmatprep.subr.mxu0 0.0
          %2531 = vmatpush1.msra.mxu0 0.0
          %2532 = vmatprep.subr.mxu0 0.0
          %2533 = vmatpush1.msra.mxu0 0.0
          %2534 = vmatprep.subr.mxu0 0.0
          %2535 = vmatpush1.msra.mxu0 0.0
          %2536 = vmatprep.subr.mxu0 0.0
          %2537 = vmatpush1.msra.mxu0 0.0
          %2538 = vmatprep.subr.mxu0 0.0
          %2539 = vmatpush1.msra.mxu0 0.0
          %2540 = vmatprep.subr.mxu0 0.0
          %2541 = vmatpush1.msra.mxu0 0.0
          %2542 = vmatprep.subr.mxu0 0.0
          %2543 = vmatpush1.msra.mxu0 0.0
          %2544 = vmatprep.subr.mxu0 0.0
          %2545 = vmatpush1.msra.mxu0 0.0
          %2546 = vmatprep.subr.mxu0 0.0
          %2547 = vmatpush1.msra.mxu0 0.0
          %2548 = vmatprep.subr.mxu0 0.0
          %2549 = vmatpush1.msra.mxu0 0.0
          %2550 = vmatprep.subr.mxu0 0.0
          %2551 = vmatpush1.msra.mxu0 0.0
          %2552 = vmatprep.subr.mxu0 0.0
          %2553 = vmatpush1.msra.mxu0 0.0
          %2554 = vmatprep.subr.mxu0 0.0
          %2555 = vmatpush1.msra.mxu0 0.0
          %2556 = vmatprep.subr.mxu0 0.0
          %2557 = vmatpush1.msra.mxu0 0.0
          %2558 = vmatprep.subr.mxu0 0.0
          %2559 = vmatpush1.msra.mxu0 0.0
          %2560 = vmatprep.subr.mxu0 0.0
          %2561 = vmatpush1.msra.mxu0 0.0
          %2562 = vmatprep.subr.mxu0 0.0
          %2563 = vmatpush1.msra.mxu0 0.0
          %2564 = vmatprep.subr.mxu0 0.0
          %2565 = vmatpush1.msra.mxu0 0.0
          %2566 = vmatprep.subr.mxu0 0.0
          %2567 = vmatpush1.msra.mxu0 0.0
          %2568 = vmatprep.subr.mxu0 0.0
          %2569 = vmatpush1.msra.mxu0 0.0
          %2570 = vmatprep.subr.mxu0 0.0
          %2571 = vmatpush1.msra.mxu0 0.0
          %2572 = vmatprep.mubr.f32.mxu0 0.0
          %2573 = vmatmul.mubr.f32.gmra.mrb[0].mxu0 %v2461
          %v2574 = vpop.f32.mrb[0].mxu0
          %v2575 = vadd.f32 %v2457, %v2574
          %v2576 = vpop.f32.mrb[0].mxu0
          %2577 = vmatprep.mubr.f32.mxu0 0.0
          %2578 = vmatmul.mubr.f32.gmra.mrb[0].mxu0 %v2464
          %v2579 = vpop.f32.mrb[0].mxu0
          %v2580 = vadd.f32 %v2457, %v2579
          %v2581 = vpop.f32.mrb[0].mxu0
          %2582 = vmatprep.mubr.f32.mxu0 0.0
          %2583 = vmatmul.mubr.f32.gmra.mrb[0].mxu0 %v2467
          %v2584 = vpop.f32.mrb[0].mxu0
          %v2585 = vadd.f32 %v2457, %v2584
          %v2586 = vpop.f32.mrb[0].mxu0
          %2587 = vmatprep.mubr.f32.mxu0 0.0
          %2588 = vmatmul.mubr.f32.gmra.mrb[0].mxu0 %v2470
          %v2589 = vpop.f32.mrb[0].mxu0
          %v2590 = vadd.f32 %v2457, %v2589
          %v2591 = vpop.f32.mrb[0].mxu0
          %2592 = vmatprep.mubr.f32.mxu0 0.0
          %2593 = vmatmul.mubr.f32.gmra.mrb[0].mxu0 %v2473
          %v2594 = vpop.f32.mrb[0].mxu0
          %v2595 = vadd.f32 %v2457, %v2594
          %v2596 = vpop.f32.mrb[0].mxu0
          %2597 = vmatprep.mubr.f32.mxu0 0.0
          %2598 = vmatmul.mubr.f32.gmra.mrb[0].mxu0 %v2476
          %v2599 = vpop.f32.mrb[0].mxu0
          %v2600 = vadd.f32 %v2457, %v2599
          %v2601 = vpop.f32.mrb[0].mxu0
          %2602 = vmatprep.mubr.f32.mxu0 0.0
          %2603 = vmatmul.mubr.f32.gmra.mrb[0].mxu0 %v2479
          %v2604 = vpop.f32.mrb[0].mxu0
          %v2605 = vadd.f32 %v2457, %v2604
          %v2606 = vpop.f32.mrb[0].mxu0
          %2607 = vmatprep.mubr.f32.mxu0 0.0
          %2608 = vmatmul.mubr.f32.gmra.mrb[0].mxu0 %v2482
          %v2609 = vpop.f32.mrb[0].mxu0
          %v2610 = vadd.f32 %v2457, %v2609
          %v2611 = vpop.f32.mrb[0].mxu0
          %2612 = vmatprep.mubr.f32.mxu0 0.0
          %2613 = vmatmul.mubr.f32.gmra.mrb[0].mxu0 %v2485
          %v2614 = vpop.f32.mrb[0].mxu0
          %v2615 = vadd.f32 %v2457, %v2614
          %v2616 = vpop.f32.mrb[0].mxu0
          %2617 = vmatprep.mubr.f32.mxu0 0.0
          %2618 = vmatmul.mubr.f32.gmra.mrb[0].mxu0 %v2488
          %v2619 = vpop.f32.mrb[0].mxu0
          %v2620 = vadd.f32 %v2457, %v2619
          %v2621 = vpop.f32.mrb[0].mxu0
          %2622 = vmatprep.mubr.f32.mxu0 0.0
          %2623 = vmatmul.mubr.f32.gmra.mrb[0].mxu0 %v2491
          %v2624 = vpop.f32.mrb[0].mxu0
          %v2625 = vadd.f32 %v2457, %v2624
          %v2626 = vpop.f32.mrb[0].mxu0
          %2627 = vmatprep.mubr.f32.mxu0 0.0
          %2628 = vmatmul.mubr.f32.gmra.mrb[0].mxu0 %v2494
          %v2629 = vpop.f32.mrb[0].mxu0
          %v2630 = vadd.f32 %v2457, %v2629
          %v2631 = vpop.f32.mrb[0].mxu0
          %2632 = vmatprep.mubr.f32.mxu0 0.0
          %2633 = vmatmul.mubr.f32.gmra.mrb[0].mxu0 %v2497
          %v2634 = vpop.f32.mrb[0].mxu0
          %v2635 = vadd.f32 %v2457, %v2634
          %v2636 = vpop.f32.mrb[0].mxu0
          %2637 = vmatprep.mubr.f32.mxu0 0.0
          %2638 = vmatmul.mubr.f32.gmra.mrb[0].mxu0 %v2500
          %v2639 = vpop.f32.mrb[0].mxu0
          %v2640 = vadd.f32 %v2457, %v2639
          %v2641 = vpop.f32.mrb[0].mxu0
          %2642 = vmatprep.mubr.f32.mxu0 0.0
          %2643 = vmatmul.mubr.f32.gmra.mrb[0].mxu0 %v2503
          %v2644 = vpop.f32.mrb[0].mxu0
          %v2645 = vadd.f32 %v2457, %v2644
          %v2646 = vpop.f32.mrb[0].mxu0
          %2647 = vmatprep.mubr.f32.mxu0 0.0
          %2648 = vmatmul.mubr.f32.gmra.mrb[0].mxu0 %v2506
          %v2649 = vpop.f32.mrb[0].mxu0
          %v2650 = vadd.f32 %v2457, %v2649
          %v2651 = vpop.f32.mrb[0].mxu0
          %2652 = vdwg.mxu0
          %vm2653 = vcmask 7168
          %2654 = vst.msk [vmem:[%s20] sm:$0xff] %vm2653, %v2575
          %2655 = vst.msk [vmem:[%s20 + $0x8] sm:$0xff] %vm2653, %v2580
          %2656 = vst.msk [vmem:[%s20 + $0x10] sm:$0xff] %vm2653, %v2585
          %2657 = vst.msk [vmem:[%s20 + $0x18] sm:$0xff] %vm2653, %v2590
          %2658 = vst.msk [vmem:[%s20 + $0x20] sm:$0xff] %vm2653, %v2595
          %2659 = vst.msk [vmem:[%s20 + $0x28] sm:$0xff] %vm2653, %v2600
          %2660 = vst.msk [vmem:[%s20 + $0x30] sm:$0xff] %vm2653, %v2605
          %2661 = vst.msk [vmem:[%s20 + $0x38] sm:$0xff] %vm2653, %v2610
          %2662 = vst.msk [vmem:[%s20 + $0x40] sm:$0xff] %vm2653, %v2615
          %2663 = vst.msk [vmem:[%s20 + $0x48] sm:$0xff] %vm2653, %v2620
          %2664 = vst.msk [vmem:[%s20 + $0x50] sm:$0xff] %vm2653, %v2625
          %2665 = vst.msk [vmem:[%s20 + $0x58] sm:$0xff] %vm2653, %v2630
          %2666 = vst.msk [vmem:[%s20 + $0x60] sm:$0xff] %vm2653, %v2635
          %2667 = vst.msk [vmem:[%s20 + $0x68] sm:$0xff] %vm2653, %v2640
          %2668 = vst.msk [vmem:[%s20 + $0x70] sm:$0xff] %vm2653, %v2645
          %2669 = vst.msk [vmem:[%s20 + $0x78] sm:$0xff] %vm2653, %v2650
          %v2670 = vadd.f32 %v2023, %v2024
          %v2671 = vadd.f32 %v2670, %v2025
          %v2672 = vadd.f32 %v2671, %v2026
          %v2673 = vadd.f32 %v2672, %v2027
          %v2674 = vadd.f32 %v2673, %v2028
          %v2675 = vadd.f32 %v2674, %v2029
          %v2676 = vadd.f32 %v2675, %v2030
          %v2677 = vadd.f32 %v2676, %v2031
          %v2678 = vadd.f32 %v2677, %v2032
          %v2679 = vadd.f32 %v2678, %v2033
          %v2680 = vadd.f32 %v2679, %v2034
          %v2681 = vadd.f32 %v2680, %v2035
          %v2682 = vadd.f32 %v2681, %v2036
          %v2683 = vadd.f32 %v2682, %v2037
          %v2684 = vadd.f32 %v2683, %v2038
          %v2685 = vrot.slane %v2684, 4
          %v2686 = vadd.f32 %v2684, %v2685
          %v2687 = vrot.slane %v2686, 2
          %v2688 = vadd.f32 %v2686, %v2687
          %v2689 = vrot.slane %v2688, 1
          %v2690 = vadd.f32 %v2688, %v2689
          %v2691 = vmax.f32 %v2023, %v2027
          %v2692 = vmax.f32 %v2024, %v2028
          %v2693 = vmax.f32 %v2025, %v2029
          %v2694 = vmax.f32 %v2026, %v2030
          %v2695 = vmax.f32 %v2691, %v2031
          %v2696 = vmax.f32 %v2692, %v2032
          %v2697 = vmax.f32 %v2693, %v2033
          %v2698 = vmax.f32 %v2694, %v2034
          %v2699 = vmax.f32 %v2695, %v2035
          %v2700 = vmax.f32 %v2696, %v2036
          %v2701 = vmax.f32 %v2697, %v2037
          %v2702 = vmax.f32 %v2698, %v2038
          %v2703 = vmax.f32 %v2699, %v2700
          %v2704 = vmax.f32 %v2701, %v2702
          %v2705 = vmax.f32 %v2703, %v2704
          %v2706 = vrot.slane %v2705, 4
          %v2707 = vmax.f32 %v2705, %v2706
          %v2708 = vrot.slane %v2707, 2
          %v2709 = vmax.f32 %v2707, %v2708
          %v2710 = vrot.slane %v2709, 1
          %v2711 = vmax.f32 %v2709, %v2710
          %v2712 = vld [vmem:[%s13] sm:$0xff]
          %v2713 = vld [vmem:[%s13 + $0x8] sm:$0xff]
          %v2714 = vld [vmem:[%s13 + $0x10] sm:$0xff]
          %v2715 = vld [vmem:[%s13 + $0x18] sm:$0xff]
          %v2716 = vld [vmem:[%s13 + $0x20] sm:$0xff]
          %v2717 = vld [vmem:[%s13 + $0x28] sm:$0xff]
          %v2718 = vld [vmem:[%s13 + $0x30] sm:$0xff]
          %v2719 = vld [vmem:[%s13 + $0x38] sm:$0xff]
          %v2720 = vld [vmem:[%s13 + $0x40] sm:$0xff]
          %v2721 = vld [vmem:[%s13 + $0x48] sm:$0xff]
          %v2722 = vld [vmem:[%s13 + $0x50] sm:$0xff]
          %v2723 = vld [vmem:[%s13 + $0x58] sm:$0xff]
          %v2724 = vld [vmem:[%s13 + $0x60] sm:$0xff]
          %v2725 = vld [vmem:[%s13 + $0x68] sm:$0xff]
          %v2726 = vld [vmem:[%s13 + $0x70] sm:$0xff]
          %v2727 = vld [vmem:[%s13 + $0x78] sm:$0xff]
          %v2728 = vld [vmem:[%s13 + $0x80] sm:$0xff]
          %v2729 = vld [vmem:[%s13 + $0x88] sm:$0xff]
          %v2730 = vld [vmem:[%s13 + $0x90] sm:$0xff]
          %v2731 = vld [vmem:[%s13 + $0x98] sm:$0xff]
          %v2732 = vld [vmem:[%s13 + $0xa0] sm:$0xff]
          %v2733 = vld [vmem:[%s13 + $0xa8] sm:$0xff]
          %v2734 = vld [vmem:[%s13 + $0xb0] sm:$0xff]
          %v2735 = vld [vmem:[%s13 + $0xb8] sm:$0xff]
          %v2736 = vld [vmem:[%s13 + $0xc0] sm:$0xff]
          %v2737 = vld [vmem:[%s13 + $0xc8] sm:$0xff]
          %v2738 = vld [vmem:[%s13 + $0xd0] sm:$0xff]
          %v2739 = vld [vmem:[%s13 + $0xd8] sm:$0xff]
          %v2740 = vld [vmem:[%s13 + $0xe0] sm:$0xff]
          %v2741 = vld [vmem:[%s13 + $0xe8] sm:$0xff]
          %v2742 = vld [vmem:[%s13 + $0xf0] sm:$0xff]
          %v2743 = vld [vmem:[%s13 + $0xf8] sm:$0xff]
          %v2744 = vld [vmem:[%s14] sm:$0xff]
          %v2745 = vld [vmem:[%s14 + $0x8] sm:$0xff]
          %v2746 = vld [vmem:[%s14 + $0x10] sm:$0xff]
          %v2747 = vld [vmem:[%s14 + $0x18] sm:$0xff]
          %v2748 = vld [vmem:[%s14 + $0x20] sm:$0xff]
          %v2749 = vld [vmem:[%s14 + $0x28] sm:$0xff]
          %v2750 = vld [vmem:[%s14 + $0x30] sm:$0xff]
          %v2751 = vld [vmem:[%s14 + $0x38] sm:$0xff]
          %v2752 = vld [vmem:[%s14 + $0x40] sm:$0xff]
          %v2753 = vld [vmem:[%s14 + $0x48] sm:$0xff]
          %v2754 = vld [vmem:[%s14 + $0x50] sm:$0xff]
          %v2755 = vld [vmem:[%s14 + $0x58] sm:$0xff]
          %v2756 = vld [vmem:[%s14 + $0x60] sm:$0xff]
          %v2757 = vld [vmem:[%s14 + $0x68] sm:$0xff]
          %v2758 = vld [vmem:[%s14 + $0x70] sm:$0xff]
          %v2759 = vld [vmem:[%s14 + $0x78] sm:$0xff]
          %v2760 = vld [vmem:[%s14 + $0x80] sm:$0xff]
          %v2761 = vld [vmem:[%s14 + $0x88] sm:$0xff]
          %v2762 = vld [vmem:[%s14 + $0x90] sm:$0xff]
          %v2763 = vld [vmem:[%s14 + $0x98] sm:$0xff]
          %v2764 = vld [vmem:[%s14 + $0xa0] sm:$0xff]
          %v2765 = vld [vmem:[%s14 + $0xa8] sm:$0xff]
          %v2766 = vld [vmem:[%s14 + $0xb0] sm:$0xff]
          %v2767 = vld [vmem:[%s14 + $0xb8] sm:$0xff]
          %v2768 = vld [vmem:[%s14 + $0xc0] sm:$0xff]
          %v2769 = vld [vmem:[%s14 + $0xc8] sm:$0xff]
          %v2770 = vld [vmem:[%s14 + $0xd0] sm:$0xff]
          %v2771 = vld [vmem:[%s14 + $0xd8] sm:$0xff]
          %v2772 = vld [vmem:[%s14 + $0xe0] sm:$0xff]
          %v2773 = vld [vmem:[%s14 + $0xe8] sm:$0xff]
          %v2774 = vld [vmem:[%s14 + $0xf0] sm:$0xff]
          %v2775 = vld [vmem:[%s14 + $0xf8] sm:$0xff]
          %2776 = vmatprep.subr.mxu0 %v2745
          %2777 = vmatpush1.msra.mxu0 %v2744
          %2778 = vmatprep.subr.mxu0 %v2747
          %2779 = vmatpush1.msra.mxu0 %v2746
          %2780 = vmatprep.subr.mxu0 %v2749
          %2781 = vmatpush1.msra.mxu0 %v2748
          %2782 = vmatprep.subr.mxu0 %v2751
          %2783 = vmatpush1.msra.mxu0 %v2750
          %2784 = vmatprep.subr.mxu0 %v2753
          %2785 = vmatpush1.msra.mxu0 %v2752
          %2786 = vmatprep.subr.mxu0 %v2755
          %2787 = vmatpush1.msra.mxu0 %v2754
          %2788 = vmatprep.subr.mxu0 %v2757
          %2789 = vmatpush1.msra.mxu0 %v2756
          %2790 = vmatprep.subr.mxu0 %v2759
          %2791 = vmatpush1.msra.mxu0 %v2758
          %2792 = vmatprep.subr.mxu0 %v2761
          %2793 = vmatpush1.msra.mxu0 %v2760
          %2794 = vmatprep.subr.mxu0 %v2763
          %2795 = vmatpush1.msra.mxu0 %v2762
          %2796 = vmatprep.subr.mxu0 %v2765
          %2797 = vmatpush1.msra.mxu0 %v2764
          %2798 = vmatprep.subr.mxu0 %v2767
          %2799 = vmatpush1.msra.mxu0 %v2766
          %2800 = vmatprep.subr.mxu0 %v2769
          %2801 = vmatpush1.msra.mxu0 %v2768
          %2802 = vmatprep.subr.mxu0 %v2771
          %2803 = vmatpush1.msra.mxu0 %v2770
          %2804 = vmatprep.subr.mxu0 %v2773
          %2805 = vmatpush1.msra.mxu0 %v2772
          %2806 = vmatprep.subr.mxu0 %v2775
          %2807 = vmatpush1.msra.mxu0 %v2774
          %2808 = vmatprep.subr.mxu0 0.0
          %2809 = vmatpush1.msra.mxu0 0.0
          %2810 = vmatprep.subr.mxu0 0.0
          %2811 = vmatpush1.msra.mxu0 0.0
          %2812 = vmatprep.subr.mxu0 0.0
          %2813 = vmatpush1.msra.mxu0 0.0
          %2814 = vmatprep.subr.mxu0 0.0
          %2815 = vmatpush1.msra.mxu0 0.0
          %2816 = vmatprep.subr.mxu0 0.0
          %2817 = vmatpush1.msra.mxu0 0.0
          %2818 = vmatprep.subr.mxu0 0.0
          %2819 = vmatpush1.msra.mxu0 0.0
          %2820 = vmatprep.subr.mxu0 0.0
          %2821 = vmatpush1.msra.mxu0 0.0
          %2822 = vmatprep.subr.mxu0 0.0
          %2823 = vmatpush1.msra.mxu0 0.0
          %2824 = vmatprep.subr.mxu0 0.0
          %2825 = vmatpush1.msra.mxu0 0.0
          %2826 = vmatprep.subr.mxu0 0.0
          %2827 = vmatpush1.msra.mxu0 0.0
          %2828 = vmatprep.subr.mxu0 0.0
          %2829 = vmatpush1.msra.mxu0 0.0
          %2830 = vmatprep.subr.mxu0 0.0
          %2831 = vmatpush1.msra.mxu0 0.0
          %2832 = vmatprep.subr.mxu0 0.0
          %2833 = vmatpush1.msra.mxu0 0.0
          %2834 = vmatprep.subr.mxu0 0.0
          %2835 = vmatpush1.msra.mxu0 0.0
          %2836 = vmatprep.subr.mxu0 0.0
          %2837 = vmatpush1.msra.mxu0 0.0
          %2838 = vmatprep.subr.mxu0 0.0
          %2839 = vmatpush1.msra.mxu0 0.0
          %2840 = vmatprep.mubr.f32.mxu0 0.0
          %2841 = vmatmul.mubr.f32.gmra.mrb[0].mxu0 %v2711
          %v2842 = vpop.f32.mrb[0].mxu0
          %v2843 = vadd.f32 0.0, %v2842
          %v2844 = vpop.f32.mrb[0].mxu0
          %v2845 = vadd.f32 0.0, %v2844
          %2846 = vdwg.mxu0
          %2847 = vmatprep.subr.mxu0 %v2713
          %2848 = vmatpush1.msra.mxu0 %v2712
          %2849 = vmatprep.subr.mxu0 %v2715
          %2850 = vmatpush1.msra.mxu0 %v2714
          %2851 = vmatprep.subr.mxu0 %v2717
          %2852 = vmatpush1.msra.mxu0 %v2716
          %2853 = vmatprep.subr.mxu0 %v2719
          %2854 = vmatpush1.msra.mxu0 %v2718
          %2855 = vmatprep.subr.mxu0 %v2721
          %2856 = vmatpush1.msra.mxu0 %v2720
          %2857 = vmatprep.subr.mxu0 %v2723
          %2858 = vmatpush1.msra.mxu0 %v2722
          %2859 = vmatprep.subr.mxu0 %v2725
          %2860 = vmatpush1.msra.mxu0 %v2724
          %2861 = vmatprep.subr.mxu0 %v2727
          %2862 = vmatpush1.msra.mxu0 %v2726
          %2863 = vmatprep.subr.mxu0 %v2729
          %2864 = vmatpush1.msra.mxu0 %v2728
          %2865 = vmatprep.subr.mxu0 %v2731
          %2866 = vmatpush1.msra.mxu0 %v2730
          %2867 = vmatprep.subr.mxu0 %v2733
          %2868 = vmatpush1.msra.mxu0 %v2732
          %2869 = vmatprep.subr.mxu0 %v2735
          %2870 = vmatpush1.msra.mxu0 %v2734
          %2871 = vmatprep.subr.mxu0 %v2737
          %2872 = vmatpush1.msra.mxu0 %v2736
          %2873 = vmatprep.subr.mxu0 %v2739
          %2874 = vmatpush1.msra.mxu0 %v2738
          %2875 = vmatprep.subr.mxu0 %v2741
          %2876 = vmatpush1.msra.mxu0 %v2740
          %2877 = vmatprep.subr.mxu0 %v2743
          %2878 = vmatpush1.msra.mxu0 %v2742
          %2879 = vmatprep.subr.mxu0 0.0
          %2880 = vmatpush1.msra.mxu0 0.0
          %2881 = vmatprep.subr.mxu0 0.0
          %2882 = vmatpush1.msra.mxu0 0.0
          %2883 = vmatprep.subr.mxu0 0.0
          %2884 = vmatpush1.msra.mxu0 0.0
          %2885 = vmatprep.subr.mxu0 0.0
          %2886 = vmatpush1.msra.mxu0 0.0
          %2887 = vmatprep.subr.mxu0 0.0
          %2888 = vmatpush1.msra.mxu0 0.0
          %2889 = vmatprep.subr.mxu0 0.0
          %2890 = vmatpush1.msra.mxu0 0.0
          %2891 = vmatprep.subr.mxu0 0.0
          %2892 = vmatpush1.msra.mxu0 0.0
          %2893 = vmatprep.subr.mxu0 0.0
          %2894 = vmatpush1.msra.mxu0 0.0
          %2895 = vmatprep.subr.mxu0 0.0
          %2896 = vmatpush1.msra.mxu0 0.0
          %2897 = vmatprep.subr.mxu0 0.0
          %2898 = vmatpush1.msra.mxu0 0.0
          %2899 = vmatprep.subr.mxu0 0.0
          %2900 = vmatpush1.msra.mxu0 0.0
          %2901 = vmatprep.subr.mxu0 0.0
          %2902 = vmatpush1.msra.mxu0 0.0
          %2903 = vmatprep.subr.mxu0 0.0
          %2904 = vmatpush1.msra.mxu0 0.0
          %2905 = vmatprep.subr.mxu0 0.0
          %2906 = vmatpush1.msra.mxu0 0.0
          %2907 = vmatprep.subr.mxu0 0.0
          %2908 = vmatpush1.msra.mxu0 0.0
          %2909 = vmatprep.subr.mxu0 0.0
          %2910 = vmatpush1.msra.mxu0 0.0
          %2911 = vmatprep.mubr.f32.mxu0 0.0
          %2912 = vmatmul.mubr.f32.gmra.mrb[0].mxu0 %v2690
          %v2913 = vpop.f32.mrb[0].mxu0
          %v2914 = vadd.f32 %v2843, %v2913
          %v2915 = vpop.f32.mrb[0].mxu0
          %v2916 = vadd.f32 %v2845, %v2915
          %2917 = vdwg.mxu0
          %v2918 = vld [vmem:[%s15] sm:$0x3]
          %v2920 = vlaneseq
          %v2921 = vshrl.u32 %v2920, 7
          %v2922 = vsub.s32 0, %v2921
          %v2923 = vrot.slane %v2918, %v2922
          %v2924 = vlaneseq
          %v2925 = vshrl.u32 %v2924, 7
          %v2926 = vsub.s32 1, %v2925
          %v2927 = vrot.slane %v2918, %v2926
          %v2930 = vadd.f32 %v2914, %v2923
          %v2931 = vadd.f32 %v2916, %v2927
          %v2932 = vmax.f32 %v2930, 0.0
          %v2933 = vmax.f32 %v2931, 0.0
          %v2934 = vld [vmem:[%s16] sm:$0xff]
          %v2935 = vld [vmem:[%s16 + $0x8] sm:$0xff]
          %v2936 = vld [vmem:[%s16 + $0x10] sm:$0xff]
          %v2937 = vld [vmem:[%s16 + $0x18] sm:$0xff]
          %v2938 = vld [vmem:[%s16 + $0x20] sm:$0xff]
          %v2939 = vld [vmem:[%s16 + $0x28] sm:$0xff]
          %v2940 = vld [vmem:[%s16 + $0x30] sm:$0xff]
          %v2941 = vld [vmem:[%s16 + $0x38] sm:$0xff]
          %v2942 = vld [vmem:[%s16 + $0x40] sm:$0xff]
          %v2943 = vld [vmem:[%s16 + $0x48] sm:$0xff]
          %v2944 = vld [vmem:[%s16 + $0x50] sm:$0xff]
          %v2945 = vld [vmem:[%s16 + $0x58] sm:$0xff]
          %v2946 = vld [vmem:[%s16 + $0x60] sm:$0xff]
          %v2947 = vld [vmem:[%s16 + $0x68] sm:$0xff]
          %v2948 = vld [vmem:[%s16 + $0x70] sm:$0xff]
          %v2949 = vld [vmem:[%s16 + $0x78] sm:$0xff]
          %v2950 = vld [vmem:[%s16 + $0x80] sm:$0xff]
          %v2951 = vld [vmem:[%s16 + $0x88] sm:$0xff]
          %v2952 = vld [vmem:[%s16 + $0x90] sm:$0xff]
          %v2953 = vld [vmem:[%s16 + $0x98] sm:$0xff]
          %v2954 = vld [vmem:[%s16 + $0xa0] sm:$0xff]
          %v2955 = vld [vmem:[%s16 + $0xa8] sm:$0xff]
          %v2956 = vld [vmem:[%s16 + $0xb0] sm:$0xff]
          %v2957 = vld [vmem:[%s16 + $0xb8] sm:$0xff]
          %v2958 = vld [vmem:[%s16 + $0xc0] sm:$0xff]
          %v2959 = vld [vmem:[%s16 + $0xc8] sm:$0xff]
          %v2960 = vld [vmem:[%s16 + $0xd0] sm:$0xff]
          %v2961 = vld [vmem:[%s16 + $0xd8] sm:$0xff]
          %v2962 = vld [vmem:[%s16 + $0xe0] sm:$0xff]
          %v2963 = vld [vmem:[%s16 + $0xe8] sm:$0xff]
          %v2964 = vld [vmem:[%s16 + $0xf0] sm:$0xff]
          %v2965 = vld [vmem:[%s16 + $0xf8] sm:$0xff]
          %v2966 = vld [vmem:[%s17] sm:$0x1]
          %2967 = vmatprep.subr.mxu0 0.0
          %2968 = vmatpush1.msra.mxu0 %v2934
          %2969 = vmatprep.subr.mxu0 0.0
          %2970 = vmatpush1.msra.mxu0 %v2935
          %2971 = vmatprep.subr.mxu0 0.0
          %2972 = vmatpush1.msra.mxu0 %v2936
          %2973 = vmatprep.subr.mxu0 0.0
          %2974 = vmatpush1.msra.mxu0 %v2937
          %2975 = vmatprep.subr.mxu0 0.0
          %2976 = vmatpush1.msra.mxu0 %v2938
          %2977 = vmatprep.subr.mxu0 0.0
          %2978 = vmatpush1.msra.mxu0 %v2939
          %2979 = vmatprep.subr.mxu0 0.0
          %2980 = vmatpush1.msra.mxu0 %v2940
          %2981 = vmatprep.subr.mxu0 0.0
          %2982 = vmatpush1.msra.mxu0 %v2941
          %2983 = vmatprep.subr.mxu0 0.0
          %2984 = vmatpush1.msra.mxu0 %v2942
          %2985 = vmatprep.subr.mxu0 0.0
          %2986 = vmatpush1.msra.mxu0 %v2943
          %2987 = vmatprep.subr.mxu0 0.0
          %2988 = vmatpush1.msra.mxu0 %v2944
          %2989 = vmatprep.subr.mxu0 0.0
          %2990 = vmatpush1.msra.mxu0 %v2945
          %2991 = vmatprep.subr.mxu0 0.0
          %2992 = vmatpush1.msra.mxu0 %v2946
          %2993 = vmatprep.subr.mxu0 0.0
          %2994 = vmatpush1.msra.mxu0 %v2947
          %2995 = vmatprep.subr.mxu0 0.0
          %2996 = vmatpush1.msra.mxu0 %v2948
          %2997 = vmatprep.subr.mxu0 0.0
          %2998 = vmatpush1.msra.mxu0 %v2949
          %2999 = vmatprep.subr.mxu0 0.0
          %3000 = vmatpush1.msra.mxu0 %v2950
          %3001 = vmatprep.subr.mxu0 0.0
          %3002 = vmatpush1.msra.mxu0 %v2951
          %3003 = vmatprep.subr.mxu0 0.0
          %3004 = vmatpush1.msra.mxu0 %v2952
          %3005 = vmatprep.subr.mxu0 0.0
          %3006 = vmatpush1.msra.mxu0 %v2953
          %3007 = vmatprep.subr.mxu0 0.0
          %3008 = vmatpush1.msra.mxu0 %v2954
          %3009 = vmatprep.subr.mxu0 0.0
          %3010 = vmatpush1.msra.mxu0 %v2955
          %3011 = vmatprep.subr.mxu0 0.0
          %3012 = vmatpush1.msra.mxu0 %v2956
          %3013 = vmatprep.subr.mxu0 0.0
          %3014 = vmatpush1.msra.mxu0 %v2957
          %3015 = vmatprep.subr.mxu0 0.0
          %3016 = vmatpush1.msra.mxu0 %v2958
          %3017 = vmatprep.subr.mxu0 0.0
          %3018 = vmatpush1.msra.mxu0 %v2959
          %3019 = vmatprep.subr.mxu0 0.0
          %3020 = vmatpush1.msra.mxu0 %v2960
          %3021 = vmatprep.subr.mxu0 0.0
          %3022 = vmatpush1.msra.mxu0 %v2961
          %3023 = vmatprep.subr.mxu0 0.0
          %3024 = vmatpush1.msra.mxu0 %v2962
          %3025 = vmatprep.subr.mxu0 0.0
          %3026 = vmatpush1.msra.mxu0 %v2963
          %3027 = vmatprep.subr.mxu0 0.0
          %3028 = vmatpush1.msra.mxu0 %v2964
          %3029 = vmatprep.subr.mxu0 0.0
          %3030 = vmatpush1.msra.mxu0 %v2965
          %3031 = vmatprep.mubr.f32.mxu0 %v2933
          %3032 = vmatmul.mubr.f32.gmra.mrb[0].mxu0 %v2932
          %v3033 = vpop.f32.mrb[0].mxu0
          %v3034 = vadd.f32 %v2966, %v3033
          %v3035 = vpop.f32.mrb[0].mxu0
          %3036 = vdwg.mxu0
          %v3037 = vmax.f32 %v3034, 0.0
          %v3038 = vld [vmem:[%s18] sm:$0xff]
          %v3039 = vld [vmem:[%s18 + $0x8] sm:$0xff]
          %v3040 = vld [vmem:[%s18 + $0x10] sm:$0xff]
          %v3041 = vld [vmem:[%s18 + $0x18] sm:$0xff]
          %v3042 = vld [vmem:[%s18 + $0x20] sm:$0xff]
          %v3043 = vld [vmem:[%s18 + $0x28] sm:$0xff]
          %v3044 = vld [vmem:[%s18 + $0x30] sm:$0xff]
          %v3045 = vld [vmem:[%s18 + $0x38] sm:$0xff]
          %v3046 = vld [vmem:[%s18 + $0x40] sm:$0xff]
          %v3047 = vld [vmem:[%s18 + $0x48] sm:$0xff]
          %v3048 = vld [vmem:[%s18 + $0x50] sm:$0xff]
          %v3049 = vld [vmem:[%s18 + $0x58] sm:$0xff]
          %v3050 = vld [vmem:[%s18 + $0x60] sm:$0xff]
          %v3051 = vld [vmem:[%s18 + $0x68] sm:$0xff]
          %v3052 = vld [vmem:[%s18 + $0x70] sm:$0xff]
          %v3053 = vld [vmem:[%s18 + $0x78] sm:$0xff]
          %v3054 = vld [vmem:[#allocation5] sm:$0x1]
          %3055 = vmatprep.subr.mxu0 0.0
          %3056 = vmatpush1.msra.mxu0 %v3038
          %3057 = vmatprep.subr.mxu0 0.0
          %3058 = vmatpush1.msra.mxu0 %v3039
          %3059 = vmatprep.subr.mxu0 0.0
          %3060 = vmatpush1.msra.mxu0 %v3040
          %3061 = vmatprep.subr.mxu0 0.0
          %3062 = vmatpush1.msra.mxu0 %v3041
          %3063 = vmatprep.subr.mxu0 0.0
          %3064 = vmatpush1.msra.mxu0 %v3042
          %3065 = vmatprep.subr.mxu0 0.0
          %3066 = vmatpush1.msra.mxu0 %v3043
          %3067 = vmatprep.subr.mxu0 0.0
          %3068 = vmatpush1.msra.mxu0 %v3044
          %3069 = vmatprep.subr.mxu0 0.0
          %3070 = vmatpush1.msra.mxu0 %v3045
          %3071 = vmatprep.subr.mxu0 0.0
          %3072 = vmatpush1.msra.mxu0 %v3046
          %3073 = vmatprep.subr.mxu0 0.0
          %3074 = vmatpush1.msra.mxu0 %v3047
          %3075 = vmatprep.subr.mxu0 0.0
          %3076 = vmatpush1.msra.mxu0 %v3048
          %3077 = vmatprep.subr.mxu0 0.0
          %3078 = vmatpush1.msra.mxu0 %v3049
          %3079 = vmatprep.subr.mxu0 0.0
          %3080 = vmatpush1.msra.mxu0 %v3050
          %3081 = vmatprep.subr.mxu0 0.0
          %3082 = vmatpush1.msra.mxu0 %v3051
          %3083 = vmatprep.subr.mxu0 0.0
          %3084 = vmatpush1.msra.mxu0 %v3052
          %3085 = vmatprep.subr.mxu0 0.0
          %3086 = vmatpush1.msra.mxu0 %v3053
          %3087 = vmatprep.subr.mxu0 0.0
          %3088 = vmatpush1.msra.mxu0 0.0
          %3089 = vmatprep.subr.mxu0 0.0
          %3090 = vmatpush1.msra.mxu0 0.0
          %3091 = vmatprep.subr.mxu0 0.0
          %3092 = vmatpush1.msra.mxu0 0.0
          %3093 = vmatprep.subr.mxu0 0.0
          %3094 = vmatpush1.msra.mxu0 0.0
          %3095 = vmatprep.subr.mxu0 0.0
          %3096 = vmatpush1.msra.mxu0 0.0
          %3097 = vmatprep.subr.mxu0 0.0
          %3098 = vmatpush1.msra.mxu0 0.0
          %3099 = vmatprep.subr.mxu0 0.0
          %3100 = vmatpush1.msra.mxu0 0.0
          %3101 = vmatprep.subr.mxu0 0.0
          %3102 = vmatpush1.msra.mxu0 0.0
          %3103 = vmatprep.subr.mxu0 0.0
          %3104 = vmatpush1.msra.mxu0 0.0
          %3105 = vmatprep.subr.mxu0 0.0
          %3106 = vmatpush1.msra.mxu0 0.0
          %3107 = vmatprep.subr.mxu0 0.0
          %3108 = vmatpush1.msra.mxu0 0.0
          %3109 = vmatprep.subr.mxu0 0.0
          %3110 = vmatpush1.msra.mxu0 0.0
          %3111 = vmatprep.subr.mxu0 0.0
          %3112 = vmatpush1.msra.mxu0 0.0
          %3113 = vmatprep.subr.mxu0 0.0
          %3114 = vmatpush1.msra.mxu0 0.0
          %3115 = vmatprep.subr.mxu0 0.0
          %3116 = vmatpush1.msra.mxu0 0.0
          %3117 = vmatprep.subr.mxu0 0.0
          %3118 = vmatpush1.msra.mxu0 0.0
          %3119 = vmatprep.mubr.f32.mxu0 0.0
          %3120 = vmatmul.mubr.f32.gmra.mrb[0].mxu0 %v3037
          %v3121 = vpop.f32.mrb[0].mxu0
          %v3122 = vadd.f32 %v3054, %v3121
          %v3123 = vpop.f32.mrb[0].mxu0
          %3124 = vdwg.mxu0
          %vm3125 = vcmask 0
          %3126 = vst.msk [vmem:[#allocation6] sm:$0x1] %vm3125, %v3122
        $region116: #{_ppo_forward.1} parent=99 // pred_fallthru
          _
        // Predicated region
        $region117: #{_ppo_forward.1} parent=99 // pred_check
          %p3127 = pneg %p488
        $region118: #{_ppo_forward.1} parent=99 // pred_check_branch
          %3129 = sbr.rel (%p3127) target = $region120
        $region119: #{_ppo_forward.1} parent=99 // pred_region
          _
        $region120: #{_ppo_forward.1} parent=99 // pred_fallthru
          _
        // Predicated region
        $region121: #{_ppo_forward.1} parent=99 // pred_check
          %p3130 = pneg %p509
        $region122: #{_ppo_forward.1} parent=99 // pred_check_branch
          %3132 = sbr.rel (%p3130) target = $region124
        $region123: #{_ppo_forward.1} parent=99 // pred_region
          %s3134 = ssub.s32 16, 16
          %3135 = vsyncadd [#allocation7], %s3134
          %s3137 = sshll.u32 [#allocation6], 4
          %s3138 = int_to_ptr.vmem [resolvable:$true] %s3137
          %3140 = dma.vmem_to_hbm [thread:$0]  %s3138, 16, %s21, [#allocation7]
        $region124: #{_ppo_forward.1} parent=99 // pred_fallthru
          _
        // Predicated region
        $region125: #{_ppo_forward.1} parent=99 // pred_check
          %p3141 = pneg %p488
        $region126: #{_ppo_forward.1} parent=99 // pred_check_branch
          %3143 = sbr.rel (%p3141) target = $region128
        $region127: #{_ppo_forward.1} parent=99 // pred_region
          _
        $region128: #{_ppo_forward.1} parent=99 // pred_fallthru
          _
        // Predicated region
        $region129: #{_ppo_forward.1} parent=99 // pred_check
          %p3144 = pneg %p509
        $region130: #{_ppo_forward.1} parent=99 // pred_check_branch
          %3146 = sbr.rel (%p3144) target = $region132
        $region131: #{_ppo_forward.1} parent=99 // pred_region
          %3147 = dma.done [#allocation7], 16
        $region132: #{_ppo_forward.1} parent=99 // pred_fallthru
          _
      $region100: #{_ppo_forward.1} parent=5 // pred_fallthru
        _
      %p3148 = scmp.le.s32.totalorder 2, %s33
      // Predicated region
      $region133: #{_ppo_forward.1} parent=5 // pred_check
        %p3149 = pneg %p3148
      $region134: #{_ppo_forward.1} parent=5 // pred_check_branch
        %3151 = sbr.rel (%p3149) target = $region136
      $region135: #{_ppo_forward.1} parent=5 // pred_region
        %s3152 = ssub.s32 %s33, 2
      $region136: #{_ppo_forward.1} parent=5 // pred_fallthru
        _
    $region6: #{_ppo_forward.1} parent=1 // loop_footer
      %s37 = sadd.s32 1, %s33
    $region7: #{_ppo_forward.1} parent=1 // loop_footer_branch
      %32 = sbr.rel target = $region3
    $region8: #{_ppo_forward.1} parent=1 // loop_exit
      _
    %3153 = vsyncpa [#allocation7], 1
    %s3154 = scalar_lea.sflag [#allocation7], 1
    %3155 = vsyncpa %s3154, 1

</llo_original>
